<compile_context>
chip_gen: v7x
topology: tpu7x:2x2x1
jax: 0.10.0
libtpu: 0.0.40
codegen_flags: <defaults>
</compile_context>

<pallas_src>
import functools

import jax
import jax.numpy as jnp
from jax import lax
from jax.experimental import pallas as pl
from jax.experimental.pallas import tpu as pltpu


# --------------------------- VMEM budget helpers --------------------------- #

def _vmem_budget_bytes():
    """Physical VMEM capacity, with a conservative fallback (v7x per-TC)."""
    try:
        return int(pltpu.get_tpu_info().vmem_capacity_bytes)
    except Exception:
        return 64 * 1024 * 1024


def _layer_vmem_bytes(tile_t, B, E, H, D, stream_bytes):
    """Kernel VMEM estimate: double-buffered streamed blocks + resident refs."""
    streamed = D * 2 * tile_t * B * (E + H) * stream_bytes   # x blocks + out blocks
    weights = D * 3 * (E * H + H * H) * stream_bytes          # W_ih, W_hh (gate-major)
    biases = D * (3 * H + H) * 4                              # folded gi bias + b_hh_n (f32)
    hn = 2 * D * B * H * 4                                    # resident h carry (f32)
    return streamed + weights + biases + hn


def _choose_tile_t(T, B, E, H, D, stream_bytes, budget, target=128):
    """Biggest time-chunk that fits a conservative slice of the VMEM budget."""
    per_step = D * 2 * B * (E + H) * stream_bytes
    fixed = _layer_vmem_bytes(0, B, E, H, D, stream_bytes)
    avail = int(0.4 * budget) - fixed
    if avail <= per_step:
        return 1
    return max(1, min(T, target, avail // per_step))


# ----------------------------- Pallas kernel ------------------------------ #

def _make_gru_layer_kernel(num_directions, tile_t, valid_t, padded_t,
                           compute_dtype):
    """Fused (bi)directional GRU-layer kernel for a T-chunked 1-D grid."""
    D, tT = num_directions, tile_t
    pad = padded_t - valid_t

    def step(x_t, wih, whh, gi_bias, bhh_n, h_prev):
        """One GRU timestep; PyTorch gate order (r, z, n), b_hh_{r,z} folded."""
        hc = h_prev.astype(compute_dtype)
        # Input projection (no h dependency -> off the serial chain).
        gi_r = jnp.dot(x_t, wih[0], preferred_element_type=jnp.float32) + gi_bias[0]
        gi_z = jnp.dot(x_t, wih[1], preferred_element_type=jnp.float32) + gi_bias[1]
        gi_n = jnp.dot(x_t, wih[2], preferred_element_type=jnp.float32) + gi_bias[2]
        # Recurrent projection (the serial critical path).
        gh_r = jnp.dot(hc, whh[0], preferred_element_type=jnp.float32)
        gh_z = jnp.dot(hc, whh[1], preferred_element_type=jnp.float32)
        gh_n = jnp.dot(hc, whh[2], preferred_element_type=jnp.float32)
        r = jax.nn.sigmoid(gi_r + gh_r)
        z = jax.nn.sigmoid(gi_z + gh_z)
        n = jnp.tanh(gi_n + r * (gh_n + bhh_n))
        return n + z * (h_prev - n)            # == (1 - z) * n + z * h_prev

    if D == 2:
        def kernel(x_f_ref, x_b_ref, wih_f_ref, wih_b_ref, whh_f_ref, whh_b_ref,
                   bias_f_ref, bias_b_ref, bhn_f_ref, bhn_b_ref,
                   out_f_ref, out_b_ref, hn_ref):
            i = pl.program_id(0)

            # hn_ref has a constant index_map -> resident across the grid and
            # doubles as the hidden-state carry; zero-init at grid step 0.
            @pl.when(i == 0)
            def _():
                hn_ref[...] = jnp.zeros_like(hn_ref)

            wih_f = [wih_f_ref[g] for g in range(3)]
            wih_b = [wih_b_ref[g] for g in range(3)]
            whh_f = [whh_f_ref[g] for g in range(3)]
            whh_b = [whh_b_ref[g] for g in range(3)]
            bias_f = [bias_f_ref[g] for g in range(3)]
            bias_b = [bias_b_ref[g] for g in range(3)]
            bhn_f = bhn_f_ref[...]
            bhn_b = bhn_b_ref[...]

            h_f = hn_ref[0]
            h_b = hn_ref[1]

            # Fully unrolled chunk; forward walks local time up, reverse walks
            # its (globally reversed) chunk down.  The two recurrences are
            # independent, so their MXU / EUP work overlaps.
            for lt in range(tT):
                h_new_f = step(x_f_ref[lt], wih_f, whh_f, bias_f, bhn_f, h_f)
                h_new_b = step(x_b_ref[tT - 1 - lt], wih_b, whh_b, bias_b,
                               bhn_b, h_b)
                if pad:  # masked tail chunk (T padded to a tile_t multiple)
                    pos = i * tT + lt
                    keep_f = (pos < valid_t).astype(jnp.float32)
                    keep_b = (pos >= pad).astype(jnp.float32)
                    h_new_f = h_f + keep_f * (h_new_f - h_f)
                    h_new_b = h_b + keep_b * (h_new_b - h_b)
                h_f, h_b = h_new_f, h_new_b
                out_f_ref[lt] = h_f.astype(out_f_ref.dtype)
                out_b_ref[tT - 1 - lt] = h_b.astype(out_b_ref.dtype)

            hn_ref[0] = h_f
            hn_ref[1] = h_b

        return kernel

    def kernel(x_ref, wih_ref, whh_ref, bias_ref, bhn_ref, out_ref, hn_ref):
        i = pl.program_id(0)

        @pl.when(i == 0)
        def _():
            hn_ref[...] = jnp.zeros_like(hn_ref)

        wih = [wih_ref[g] for g in range(3)]
        whh = [whh_ref[g] for g in range(3)]
        bias = [bias_ref[g] for g in range(3)]
        bhn = bhn_ref[...]
        h = hn_ref[0]

        for lt in range(tT):
            h_new = step(x_ref[lt], wih, whh, bias, bhn, h)
            if pad:
                pos = i * tT + lt
                keep = (pos < valid_t).astype(jnp.float32)
                h_new = h + keep * (h_new - h)
            h = h_new
            out_ref[lt] = h.astype(out_ref.dtype)

        hn_ref[0] = h

    return kernel


def gru_layer(x_tbe, dir_params, *, tile_t=None, compute_dtype=jnp.bfloat16):
    """One (bi)directional GRU layer as a single Pallas call.

    x_tbe     : [T, B, E] time-major layer input.
    dir_params: list (len = num_directions) of dicts
                {wih [3H,E], whh [3H,H], bih [3H], bhh [3H]} (PyTorch layout).
    returns   : out [T, B, D*H] (compute_dtype), h_n [D, B, H] (float32).
    """
    T, B, E = x_tbe.shape
    D = len(dir_params)
    H = dir_params[0]["whh"].shape[1]
    stream_bytes = jnp.dtype(compute_dtype).itemsize

    budget = _vmem_budget_bytes()
    if tile_t is None:
        tile_t = _choose_tile_t(T, B, E, H, D, stream_bytes, budget)
    tile_t = max(1, min(int(tile_t), T))
    T_pad = -(-T // tile_t) * tile_t          # pad T up to a tile_t multiple
    nT = T_pad // tile_t
    pad = T_pad - T

    needed = _layer_vmem_bytes(tile_t, B, E, H, D, stream_bytes)
    if needed > int(0.85 * budget):
        raise ValueError(f"GRU tile too large for VMEM: needs ~{needed} of "
                         f"{budget} bytes; reduce tile_t.")
    vmem_limit = min(int(0.9 * budget), max(32 << 20, needed + (8 << 20)))

    x = x_tbe.astype(compute_dtype)
    if pad:
        x = jnp.pad(x, ((0, pad), (0, 0), (0, 0)))

    # Gate-major (lane-dense) parameter layouts, pre-transposed so the kernel
    # computes x @ W and h @ W with no in-kernel transposes or lane slices.
    def wih_gm(p):                      # [3H, E] -> [3, E, H]
        return p["wih"].reshape(3, H, E).transpose(0, 2, 1).astype(compute_dtype)

    def whh_gm(p):                      # [3H, H] -> [3, H, H]
        return p["whh"].reshape(3, H, H).transpose(0, 2, 1).astype(compute_dtype)

    def gi_bias(p):                     # b_ih + [b_hh_r, b_hh_z, 0] -> [3, 1, H]
        b = p["bih"].reshape(3, H).astype(jnp.float32)
        bh = p["bhh"].reshape(3, H).astype(jnp.float32)
        return b.at[0].add(bh[0]).at[1].add(bh[1]).reshape(3, 1, H)

    def bhh_n(p):                       # b_hh_n -> [1, H]
        return p["bhh"][2 * H:3 * H].reshape(1, H).astype(jnp.float32)

    inputs, in_specs = [], []
    inputs.append(x)                                     # forward x stream
    in_specs.append(pl.BlockSpec((tile_t, B, E), lambda i: (i, 0, 0)))
    if D == 2:
        inputs.append(x)                                 # reverse x stream
        in_specs.append(
            pl.BlockSpec((tile_t, B, E), lambda i, nT=nT: (nT - 1 - i, 0, 0)))
    for p in dir_params:                                 # W_ih resident in VMEM
        inputs.append(wih_gm(p))
        in_specs.append(pl.BlockSpec((3, E, H), lambda i: (0, 0, 0)))
    for p in dir_params:                                 # W_hh resident
        inputs.append(whh_gm(p))
        in_specs.append(pl.BlockSpec((3, H, H), lambda i: (0, 0, 0)))
    for p in dir_params:                                 # folded gi bias
        inputs.append(gi_bias(p))
        in_specs.append(pl.BlockSpec((3, 1, H), lambda i: (0, 0, 0)))
    for p in dir_params:                                 # b_hh_n
        inputs.append(bhh_n(p))
        in_specs.append(pl.BlockSpec((1, H), lambda i: (0, 0)))

    out_shape = [jax.ShapeDtypeStruct((T_pad, B, H), compute_dtype)]
    out_specs = [pl.BlockSpec((tile_t, B, H), lambda i: (i, 0, 0))]
    if D == 2:
        out_shape.append(jax.ShapeDtypeStruct((T_pad, B, H), compute_dtype))
        out_specs.append(
            pl.BlockSpec((tile_t, B, H), lambda i, nT=nT: (nT - 1 - i, 0, 0)))
    out_shape.append(jax.ShapeDtypeStruct((D, B, H), jnp.float32))
    out_specs.append(pl.BlockSpec((D, B, H), lambda i: (0, 0, 0)))

    kernel = _make_gru_layer_kernel(D, tile_t, T, T_pad, compute_dtype)
    results = pl.pallas_call(
        kernel,
        grid=(nT,),
        in_specs=in_specs,
        out_specs=tuple(out_specs),
        out_shape=tuple(out_shape),
        compiler_params=pltpu.CompilerParams(
            dimension_semantics=("arbitrary",),
            vmem_limit_bytes=vmem_limit),
    )(*inputs)

    if D == 2:
        out_f, out_b, h_n = results
        out = jnp.concatenate([out_f[:T], out_b[:T]], axis=-1)   # [T, B, 2H]
    else:
        out_f, h_n = results
        out = out_f[:T]
    return out, h_n


# ----------------------------- Encoder wrapper ----------------------------- #

def init_encoder_params(key, vocab_size, embedding_dim, hidden_size,
                        num_layers, bidirectional):
    """Deterministic parameter init (mirrors nn.GRU U(-1/sqrt(H), 1/sqrt(H)))."""
    num_directions = 2 if bidirectional else 1
    H = hidden_size // num_directions
    keys = jax.random.split(key, 1 + 4 * num_layers * num_directions)
    params = {
        "embedding": jax.random.normal(keys[0], (vocab_size, embedding_dim),
                                       jnp.float32) * 0.1,
        "layers": [],
    }
    bound = 1.0 / jnp.sqrt(jnp.float32(H))
    k = 1
    for layer in range(num_layers):
        in_size = embedding_dim if layer == 0 else H * num_directions
        dirs = []
        for _ in range(num_directions):
            wih = jax.random.uniform(keys[k], (3 * H, in_size), jnp.float32,
                                     -bound, bound); k += 1
            whh = jax.random.uniform(keys[k], (3 * H, H), jnp.float32,
                                     -bound, bound); k += 1
            bih = jax.random.uniform(keys[k], (3 * H,), jnp.float32,
                                     -bound, bound); k += 1
            bhh = jax.random.uniform(keys[k], (3 * H,), jnp.float32,
                                     -bound, bound); k += 1
            dirs.append({"wih": wih, "whh": whh, "bih": bih, "bhh": bhh})
        params["layers"].append(dirs)
    return params


def encoder_forward(params, inputs_bt, num_layers, bidirectional,
                    tile_t=None, compute_dtype=jnp.bfloat16):
    """Embedding -> dropout(identity) -> (bi)GRU.

    Returns:
      outputs: [B, T, num_directions * H]  (float32)
      h_n    : [num_layers * num_directions, B, H]  (float32)
    """
    del bidirectional  # direction count is implied by the per-layer params
    emb = params["embedding"][inputs_bt]            # [B, T, E]  (dropout = id)
    layer_in = jnp.transpose(emb, (1, 0, 2))        # [T, B, E] time-major

    h_n_parts = []
    for layer in range(num_layers):
        layer_out, h_n = gru_layer(layer_in, params["layers"][layer],
                                   tile_t=tile_t, compute_dtype=compute_dtype)
        h_n_parts.append(h_n)
        layer_in = layer_out                        # [T, B, D*H]

    outputs = jnp.transpose(layer_in, (1, 0, 2)).astype(jnp.float32)
    h_n = jnp.concatenate(h_n_parts, axis=0)        # [L*D, B, H]
    return outputs, h_n


# ------------------------- pure-JAX reference (check) ----------------------- #

def _gru_dir_ref(x_tbe, wih, whh, bih, bhh):
    H = whh.shape[1]

    def step(h, x_t):
        gi = x_t @ wih.T + bih
        gh = h @ whh.T + bhh
        r = jax.nn.sigmoid(gi[:, :H] + gh[:, :H])
        z = jax.nn.sigmoid(gi[:, H:2 * H] + gh[:, H:2 * H])
        n = jnp.tanh(gi[:, 2 * H:] + r * gh[:, 2 * H:])
        h_new = (1.0 - z) * n + z * h
        return h_new, h_new

    h0 = jnp.zeros((x_tbe.shape[1], H), jnp.float32)
    hT, outs = lax.scan(step, h0, x_tbe)
    return outs, hT


def encoder_forward_ref(params, inputs_bt, num_layers, bidirectional):
    num_directions = 2 if bidirectional else 1
    emb = params["embedding"][inputs_bt]
    layer_in = jnp.transpose(emb, (1, 0, 2))
    h_n_parts = []
    for layer in range(num_layers):
        dir_outs = []
        for d in range(num_directions):
            w = params["layers"][layer][d]
            xd = layer_in[::-1] if d == 1 else layer_in
            out, h_n = _gru_dir_ref(xd, w["wih"], w["whh"], w["bih"], w["bhh"])
            if d == 1:
                out = out[::-1]
            dir_outs.append(out)
            h_n_parts.append(h_n)
        layer_in = jnp.concatenate(dir_outs, axis=-1)
    return jnp.transpose(layer_in, (1, 0, 2)), jnp.stack(h_n_parts, axis=0)


# ----------------------------------- main ---------------------------------- #

if __name__ == "__main__":
    VOCAB = 50
    EMBEDDING_DIM = 32       # embedding.embedding_dim
    HIDDEN_SIZE = 32         # config.hidden_size
    NUM_LAYERS = 1           # config.num_layers
    B, T = 2, 8

    key = jax.random.PRNGKey(0)
    k_tok, k_par = jax.random.split(key)
    inputs = jax.random.randint(k_tok, (B, T), 0, VOCAB, dtype=jnp.int32)

    # ----- bidirectional (per-direction H = 16) ----------------------------
    params = init_encoder_params(k_par, VOCAB, EMBEDDING_DIM, HIDDEN_SIZE,
                                 NUM_LAYERS, True)
    ref_out, ref_hn = encoder_forward_ref(params, inputs, NUM_LAYERS, True)

    # (a) bf16-streaming fast path, tile_t=4 -> grid=(2,): exercises the
    #     cross-chunk hidden-state carry + reversed-direction index maps.
    fwd_bf16 = jax.jit(functools.partial(
        encoder_forward, num_layers=NUM_LAYERS, bidirectional=True,
        tile_t=4, compute_dtype=jnp.bfloat16))
    out_bf16, hn_bf16 = fwd_bf16(params, inputs)
    jax.block_until_ready((out_bf16, hn_bf16))
    assert out_bf16.shape == (B, T, HIDDEN_SIZE)
    assert hn_bf16.shape == (NUM_LAYERS * 2, B, HIDDEN_SIZE // 2)
    assert jnp.allclose(out_bf16, ref_out, atol=2e-2, rtol=2e-2)
    assert jnp.allclose(hn_bf16, ref_hn, atol=2e-2, rtol=2e-2)

    # (b) f32 path, tile_t=3 (T=8 padded to 9): exercises the masked tail
    #     chunk in BOTH directions; tight tolerance vs the f32 reference.
    fwd_f32 = jax.jit(functools.partial(
        encoder_forward, num_layers=NUM_LAYERS, bidirectional=True,
        tile_t=3, compute_dtype=jnp.float32))
    out_f32, hn_f32 = fwd_f32(params, inputs)
    jax.block_until_ready((out_f32, hn_f32))
    assert jnp.allclose(out_f32, ref_out, atol=1e-5, rtol=1e-5)
    assert jnp.allclose(hn_f32, ref_hn, atol=1e-5, rtol=1e-5)

    # ----- unidirectional (H = 32), padded tail, f32 ------------------------
    params_u = init_encoder_params(k_par, VOCAB, EMBEDDING_DIM, HIDDEN_SIZE,
                                   NUM_LAYERS, False)
    ref_out_u, ref_hn_u = encoder_forward_ref(params_u, inputs, NUM_LAYERS,
                                              False)
    fwd_u = jax.jit(functools.partial(
        encoder_forward, num_layers=NUM_LAYERS, bidirectional=False,
        tile_t=3, compute_dtype=jnp.float32))
    out_u, hn_u = fwd_u(params_u, inputs)
    jax.block_until_ready((out_u, hn_u))
    assert out_u.shape == (B, T, HIDDEN_SIZE)
    assert hn_u.shape == (NUM_LAYERS, B, HIDDEN_SIZE)
    assert jnp.allclose(out_u, ref_out_u, atol=1e-5, rtol=1e-5)
    assert jnp.allclose(hn_u, ref_hn_u, atol=1e-5, rtol=1e-5)

    print("KERNEL_OK")
</pallas_src>

<mosaic_0001>
module attributes {stable_mosaic.version = 11 : i64} {
  func.func @kernel(%arg0: i32, %arg1: memref<4x2x32xbf16, #tpu.memory_space<vmem>>, %arg2: memref<4x2x32xbf16, #tpu.memory_space<vmem>>, %arg3: memref<3x32x16xbf16, #tpu.memory_space<vmem>>, %arg4: memref<3x32x16xbf16, #tpu.memory_space<vmem>>, %arg5: memref<3x16x16xbf16, #tpu.memory_space<vmem>>, %arg6: memref<3x16x16xbf16, #tpu.memory_space<vmem>>, %arg7: memref<3x1x16xf32, #tpu.memory_space<vmem>>, %arg8: memref<3x1x16xf32, #tpu.memory_space<vmem>>, %arg9: memref<1x16xf32, #tpu.memory_space<vmem>>, %arg10: memref<1x16xf32, #tpu.memory_space<vmem>>, %arg11: memref<4x2x16xbf16, #tpu.memory_space<vmem>>, %arg12: memref<4x2x16xbf16, #tpu.memory_space<vmem>>, %arg13: memref<2x2x16xf32, #tpu.memory_space<vmem>>) attributes {dimension_semantics = [#tpu.dimension_semantics<arbitrary>], iteration_bounds = array<i64: 2>, scalar_prefetch = 0 : i64, scratch_operands = 0 : i64, tpu.core_type = #tpu.core_type<tc>, window_params = [{transform_indices = @transform_0, window_bounds = array<i64: 4, 2, 32>}, {transform_indices = @transform_1, window_bounds = array<i64: 4, 2, 32>}, {pipeline_mode = #tpu.pipeline_mode<synchronous>, transform_indices = @transform_2, window_bounds = array<i64: 3, 32, 16>}, {pipeline_mode = #tpu.pipeline_mode<synchronous>, transform_indices = @transform_3, window_bounds = array<i64: 3, 32, 16>}, {pipeline_mode = #tpu.pipeline_mode<synchronous>, transform_indices = @transform_4, window_bounds = array<i64: 3, 16, 16>}, {pipeline_mode = #tpu.pipeline_mode<synchronous>, transform_indices = @transform_5, window_bounds = array<i64: 3, 16, 16>}, {pipeline_mode = #tpu.pipeline_mode<synchronous>, transform_indices = @transform_6, window_bounds = array<i64: 3, 1, 16>}, {pipeline_mode = #tpu.pipeline_mode<synchronous>, transform_indices = @transform_7, window_bounds = array<i64: 3, 1, 16>}, {pipeline_mode = #tpu.pipeline_mode<synchronous>, transform_indices = @transform_8, window_bounds = array<i64: 1, 16>}, {pipeline_mode = #tpu.pipeline_mode<synchronous>, transform_indices = @transform_9, window_bounds = array<i64: 1, 16>}, {transform_indices = @transform_10, window_bounds = array<i64: 4, 2, 16>}, {transform_indices = @transform_11, window_bounds = array<i64: 4, 2, 16>}, {pipeline_mode = #tpu.pipeline_mode<synchronous>, transform_indices = @transform_12, window_bounds = array<i64: 2, 2, 16>}]} {
    %c0_i32 = arith.constant 0 : i32
    %0 = arith.cmpi eq, %arg0, %c0_i32 : i32
    %1 = arith.extui %0 : i1 to i32
    %c0_i32_0 = arith.constant 0 : i32
    %2 = arith.cmpi ne, %1, %c0_i32_0 : i32
    scf.if %2 {
      %cst_178 = arith.constant 0.000000e+00 : f32
      %363 = vector.broadcast %cst_178 : f32 to vector<2x2x16xf32>
      %c0_179 = arith.constant 0 : index
      %c0_180 = arith.constant 0 : index
      %c0_181 = arith.constant 0 : index
      %364 = vector.load %arg13[%c0_179, %c0_180, %c0_181] : memref<2x2x16xf32, #tpu.memory_space<vmem>>, vector<2x2x16xf32>
      tpu.vector_store %arg13[%c0_179, %c0_180, %c0_181], %363 {strides = array<i32>} : memref<2x2x16xf32, #tpu.memory_space<vmem>>, vector<2x2x16xf32>,
    } else {
    }
    %c0 = arith.constant 0 : index
    %c0_1 = arith.constant 0 : index
    %c0_2 = arith.constant 0 : index
    %3 = vector.load %arg3[%c0, %c0_1, %c0_2] : memref<3x32x16xbf16, #tpu.memory_space<vmem>>, vector<1x32x16xbf16>
    %4 = vector.shape_cast %3 : vector<1x32x16xbf16> to vector<32x16xbf16>
    %c1 = arith.constant 1 : index
    %c0_3 = arith.constant 0 : index
    %c0_4 = arith.constant 0 : index
    %5 = vector.load %arg3[%c1, %c0_3, %c0_4] : memref<3x32x16xbf16, #tpu.memory_space<vmem>>, vector<1x32x16xbf16>
    %6 = vector.shape_cast %5 : vector<1x32x16xbf16> to vector<32x16xbf16>
    %c2 = arith.constant 2 : index
    %c0_5 = arith.constant 0 : index
    %c0_6 = arith.constant 0 : index
    %7 = vector.load %arg3[%c2, %c0_5, %c0_6] : memref<3x32x16xbf16, #tpu.memory_space<vmem>>, vector<1x32x16xbf16>
    %8 = vector.shape_cast %7 : vector<1x32x16xbf16> to vector<32x16xbf16>
    %c0_7 = arith.constant 0 : index
    %c0_8 = arith.constant 0 : index
    %c0_9 = arith.constant 0 : index
    %9 = vector.load %arg4[%c0_7, %c0_8, %c0_9] : memref<3x32x16xbf16, #tpu.memory_space<vmem>>, vector<1x32x16xbf16>
    %10 = vector.shape_cast %9 : vector<1x32x16xbf16> to vector<32x16xbf16>
    %c1_10 = arith.constant 1 : index
    %c0_11 = arith.constant 0 : index
    %c0_12 = arith.constant 0 : index
    %11 = vector.load %arg4[%c1_10, %c0_11, %c0_12] : memref<3x32x16xbf16, #tpu.memory_space<vmem>>, vector<1x32x16xbf16>
    %12 = vector.shape_cast %11 : vector<1x32x16xbf16> to vector<32x16xbf16>
    %c2_13 = arith.constant 2 : index
    %c0_14 = arith.constant 0 : index
    %c0_15 = arith.constant 0 : index
    %13 = vector.load %arg4[%c2_13, %c0_14, %c0_15] : memref<3x32x16xbf16, #tpu.memory_space<vmem>>, vector<1x32x16xbf16>
    %14 = vector.shape_cast %13 : vector<1x32x16xbf16> to vector<32x16xbf16>
    %c0_16 = arith.constant 0 : index
    %c0_17 = arith.constant 0 : index
    %c0_18 = arith.constant 0 : index
    %15 = vector.load %arg5[%c0_16, %c0_17, %c0_18] : memref<3x16x16xbf16, #tpu.memory_space<vmem>>, vector<1x16x16xbf16>
    %16 = vector.shape_cast %15 : vector<1x16x16xbf16> to vector<16x16xbf16>
    %c1_19 = arith.constant 1 : index
    %c0_20 = arith.constant 0 : index
    %c0_21 = arith.constant 0 : index
    %17 = vector.load %arg5[%c1_19, %c0_20, %c0_21] : memref<3x16x16xbf16, #tpu.memory_space<vmem>>, vector<1x16x16xbf16>
    %18 = vector.shape_cast %17 : vector<1x16x16xbf16> to vector<16x16xbf16>
    %c2_22 = arith.constant 2 : index
    %c0_23 = arith.constant 0 : index
    %c0_24 = arith.constant 0 : index
    %19 = vector.load %arg5[%c2_22, %c0_23, %c0_24] : memref<3x16x16xbf16, #tpu.memory_space<vmem>>, vector<1x16x16xbf16>
    %20 = vector.shape_cast %19 : vector<1x16x16xbf16> to vector<16x16xbf16>
    %c0_25 = arith.constant 0 : index
    %c0_26 = arith.constant 0 : index
    %c0_27 = arith.constant 0 : index
    %21 = vector.load %arg6[%c0_25, %c0_26, %c0_27] : memref<3x16x16xbf16, #tpu.memory_space<vmem>>, vector<1x16x16xbf16>
    %22 = vector.shape_cast %21 : vector<1x16x16xbf16> to vector<16x16xbf16>
    %c1_28 = arith.constant 1 : index
    %c0_29 = arith.constant 0 : index
    %c0_30 = arith.constant 0 : index
    %23 = vector.load %arg6[%c1_28, %c0_29, %c0_30] : memref<3x16x16xbf16, #tpu.memory_space<vmem>>, vector<1x16x16xbf16>
    %24 = vector.shape_cast %23 : vector<1x16x16xbf16> to vector<16x16xbf16>
    %c2_31 = arith.constant 2 : index
    %c0_32 = arith.constant 0 : index
    %c0_33 = arith.constant 0 : index
    %25 = vector.load %arg6[%c2_31, %c0_32, %c0_33] : memref<3x16x16xbf16, #tpu.memory_space<vmem>>, vector<1x16x16xbf16>
    %26 = vector.shape_cast %25 : vector<1x16x16xbf16> to vector<16x16xbf16>
    %c0_34 = arith.constant 0 : index
    %c0_35 = arith.constant 0 : index
    %c0_36 = arith.constant 0 : index
    %27 = vector.load %arg7[%c0_34, %c0_35, %c0_36] : memref<3x1x16xf32, #tpu.memory_space<vmem>>, vector<1x1x16xf32>
    %28 = vector.shape_cast %27 : vector<1x1x16xf32> to vector<1x16xf32>
    %c1_37 = arith.constant 1 : index
    %c0_38 = arith.constant 0 : index
    %c0_39 = arith.constant 0 : index
    %29 = vector.load %arg7[%c1_37, %c0_38, %c0_39] : memref<3x1x16xf32, #tpu.memory_space<vmem>>, vector<1x1x16xf32>
    %30 = vector.shape_cast %29 : vector<1x1x16xf32> to vector<1x16xf32>
    %c2_40 = arith.constant 2 : index
    %c0_41 = arith.constant 0 : index
    %c0_42 = arith.constant 0 : index
    %31 = vector.load %arg7[%c2_40, %c0_41, %c0_42] : memref<3x1x16xf32, #tpu.memory_space<vmem>>, vector<1x1x16xf32>
    %32 = vector.shape_cast %31 : vector<1x1x16xf32> to vector<1x16xf32>
    %c0_43 = arith.constant 0 : index
    %c0_44 = arith.constant 0 : index
    %c0_45 = arith.constant 0 : index
    %33 = vector.load %arg8[%c0_43, %c0_44, %c0_45] : memref<3x1x16xf32, #tpu.memory_space<vmem>>, vector<1x1x16xf32>
    %34 = vector.shape_cast %33 : vector<1x1x16xf32> to vector<1x16xf32>
    %c1_46 = arith.constant 1 : index
    %c0_47 = arith.constant 0 : index
    %c0_48 = arith.constant 0 : index
    %35 = vector.load %arg8[%c1_46, %c0_47, %c0_48] : memref<3x1x16xf32, #tpu.memory_space<vmem>>, vector<1x1x16xf32>
    %36 = vector.shape_cast %35 : vector<1x1x16xf32> to vector<1x16xf32>
    %c2_49 = arith.constant 2 : index
    %c0_50 = arith.constant 0 : index
    %c0_51 = arith.constant 0 : index
    %37 = vector.load %arg8[%c2_49, %c0_50, %c0_51] : memref<3x1x16xf32, #tpu.memory_space<vmem>>, vector<1x1x16xf32>
    %38 = vector.shape_cast %37 : vector<1x1x16xf32> to vector<1x16xf32>
    %c0_52 = arith.constant 0 : index
    %c0_53 = arith.constant 0 : index
    %39 = vector.load %arg9[%c0_52, %c0_53] : memref<1x16xf32, #tpu.memory_space<vmem>>, vector<1x16xf32>
    %c0_54 = arith.constant 0 : index
    %c0_55 = arith.constant 0 : index
    %40 = vector.load %arg10[%c0_54, %c0_55] : memref<1x16xf32, #tpu.memory_space<vmem>>, vector<1x16xf32>
    %c0_56 = arith.constant 0 : index
    %c0_57 = arith.constant 0 : index
    %c0_58 = arith.constant 0 : index
    %41 = vector.load %arg13[%c0_56, %c0_57, %c0_58] : memref<2x2x16xf32, #tpu.memory_space<vmem>>, vector<1x2x16xf32>
    %42 = vector.shape_cast %41 : vector<1x2x16xf32> to vector<2x16xf32>
    %c1_59 = arith.constant 1 : index
    %c0_60 = arith.constant 0 : index
    %c0_61 = arith.constant 0 : index
    %43 = vector.load %arg13[%c1_59, %c0_60, %c0_61] : memref<2x2x16xf32, #tpu.memory_space<vmem>>, vector<1x2x16xf32>
    %44 = vector.shape_cast %43 : vector<1x2x16xf32> to vector<2x16xf32>
    %c0_62 = arith.constant 0 : index
    %c0_63 = arith.constant 0 : index
    %c0_64 = arith.constant 0 : index
    %45 = vector.load %arg1[%c0_62, %c0_63, %c0_64] : memref<4x2x32xbf16, #tpu.memory_space<vmem>>, vector<1x2x32xbf16>
    %46 = vector.shape_cast %45 : vector<1x2x32xbf16> to vector<2x32xbf16>
    %47 = arith.truncf %42 : vector<2x16xf32> to vector<2x16xbf16>
    %cst = arith.constant dense<0.000000e+00> : vector<2x16xf32>
    %48 = tpu.matmul %46, %4, %cst {dimension_numbers = #tpu.dot_dimension_numbers<[1], [0], [0], [1], [0, 0, 1, 1], [], []>} : vector<2x32xbf16>, vector<32x16xbf16>, vector<2x16xf32> -> vector<2x16xf32>
    %49 = vector.broadcast %28 : vector<1x16xf32> to vector<2x16xf32>
    %50 = arith.addf %48, %49 : vector<2x16xf32>
    %cst_65 = arith.constant dense<0.000000e+00> : vector<2x16xf32>
    %51 = tpu.matmul %46, %6, %cst_65 {dimension_numbers = #tpu.dot_dimension_numbers<[1], [0], [0], [1], [0, 0, 1, 1], [], []>} : vector<2x32xbf16>, vector<32x16xbf16>, vector<2x16xf32> -> vector<2x16xf32>
    %52 = vector.broadcast %30 : vector<1x16xf32> to vector<2x16xf32>
    %53 = arith.addf %51, %52 : vector<2x16xf32>
    %cst_66 = arith.constant dense<0.000000e+00> : vector<2x16xf32>
    %54 = tpu.matmul %46, %8, %cst_66 {dimension_numbers = #tpu.dot_dimension_numbers<[1], [0], [0], [1], [0, 0, 1, 1], [], []>} : vector<2x32xbf16>, vector<32x16xbf16>, vector<2x16xf32> -> vector<2x16xf32>
    %55 = vector.broadcast %32 : vector<1x16xf32> to vector<2x16xf32>
    %56 = arith.addf %54, %55 : vector<2x16xf32>
    %cst_67 = arith.constant dense<0.000000e+00> : vector<2x16xf32>
    %57 = tpu.matmul %47, %16, %cst_67 {dimension_numbers = #tpu.dot_dimension_numbers<[1], [0], [0], [1], [0, 0, 1, 1], [], []>} : vector<2x16xbf16>, vector<16x16xbf16>, vector<2x16xf32> -> vector<2x16xf32>
    %cst_68 = arith.constant dense<0.000000e+00> : vector<2x16xf32>
    %58 = tpu.matmul %47, %18, %cst_68 {dimension_numbers = #tpu.dot_dimension_numbers<[1], [0], [0], [1], [0, 0, 1, 1], [], []>} : vector<2x16xbf16>, vector<16x16xbf16>, vector<2x16xf32> -> vector<2x16xf32>
    %cst_69 = arith.constant dense<0.000000e+00> : vector<2x16xf32>
    %59 = tpu.matmul %47, %20, %cst_69 {dimension_numbers = #tpu.dot_dimension_numbers<[1], [0], [0], [1], [0, 0, 1, 1], [], []>} : vector<2x16xbf16>, vector<16x16xbf16>, vector<2x16xf32> -> vector<2x16xf32>
    %60 = arith.addf %50, %57 : vector<2x16xf32>
    %61 = arith.negf %60 : vector<2x16xf32>
    %62 = math.exp %61 : vector<2x16xf32>
    %cst_70 = arith.constant 1.000000e+00 : f32
    %63 = vector.broadcast %cst_70 : f32 to vector<2x16xf32>
    %64 = arith.addf %63, %62 : vector<2x16xf32>
    %65 = arith.divf %63, %64 : vector<2x16xf32>
    %66 = arith.addf %53, %58 : vector<2x16xf32>
    %67 = arith.negf %66 : vector<2x16xf32>
    %68 = math.exp %67 : vector<2x16xf32>
    %cst_71 = arith.constant 1.000000e+00 : f32
    %69 = vector.broadcast %cst_71 : f32 to vector<2x16xf32>
    %70 = arith.addf %69, %68 : vector<2x16xf32>
    %71 = arith.divf %69, %70 : vector<2x16xf32>
    %72 = vector.broadcast %39 : vector<1x16xf32> to vector<2x16xf32>
    %73 = arith.addf %59, %72 : vector<2x16xf32>
    %74 = arith.mulf %65, %73 : vector<2x16xf32>
    %75 = arith.addf %56, %74 : vector<2x16xf32>
    %76 = math.tanh %75 : vector<2x16xf32>
    %77 = arith.subf %42, %76 : vector<2x16xf32>
    %78 = arith.mulf %71, %77 : vector<2x16xf32>
    %79 = arith.addf %76, %78 : vector<2x16xf32>
    %c3 = arith.constant 3 : index
    %c0_72 = arith.constant 0 : index
    %c0_73 = arith.constant 0 : index
    %80 = vector.load %arg2[%c3, %c0_72, %c0_73] : memref<4x2x32xbf16, #tpu.memory_space<vmem>>, vector<1x2x32xbf16>
    %81 = vector.shape_cast %80 : vector<1x2x32xbf16> to vector<2x32xbf16>
    %82 = arith.truncf %44 : vector<2x16xf32> to vector<2x16xbf16>
    %cst_74 = arith.constant dense<0.000000e+00> : vector<2x16xf32>
    %83 = tpu.matmul %81, %10, %cst_74 {dimension_numbers = #tpu.dot_dimension_numbers<[1], [0], [0], [1], [0, 0, 1, 1], [], []>} : vector<2x32xbf16>, vector<32x16xbf16>, vector<2x16xf32> -> vector<2x16xf32>
    %84 = vector.broadcast %34 : vector<1x16xf32> to vector<2x16xf32>
    %85 = arith.addf %83, %84 : vector<2x16xf32>
    %cst_75 = arith.constant dense<0.000000e+00> : vector<2x16xf32>
    %86 = tpu.matmul %81, %12, %cst_75 {dimension_numbers = #tpu.dot_dimension_numbers<[1], [0], [0], [1], [0, 0, 1, 1], [], []>} : vector<2x32xbf16>, vector<32x16xbf16>, vector<2x16xf32> -> vector<2x16xf32>
    %87 = vector.broadcast %36 : vector<1x16xf32> to vector<2x16xf32>
    %88 = arith.addf %86, %87 : vector<2x16xf32>
    %cst_76 = arith.constant dense<0.000000e+00> : vector<2x16xf32>
    %89 = tpu.matmul %81, %14, %cst_76 {dimension_numbers = #tpu.dot_dimension_numbers<[1], [0], [0], [1], [0, 0, 1, 1], [], []>} : vector<2x32xbf16>, vector<32x16xbf16>, vector<2x16xf32> -> vector<2x16xf32>
    %90 = vector.broadcast %38 : vector<1x16xf32> to vector<2x16xf32>
    %91 = arith.addf %89, %90 : vector<2x16xf32>
    %cst_77 = arith.constant dense<0.000000e+00> : vector<2x16xf32>
    %92 = tpu.matmul %82, %22, %cst_77 {dimension_numbers = #tpu.dot_dimension_numbers<[1], [0], [0], [1], [0, 0, 1, 1], [], []>} : vector<2x16xbf16>, vector<16x16xbf16>, vector<2x16xf32> -> vector<2x16xf32>
    %cst_78 = arith.constant dense<0.000000e+00> : vector<2x16xf32>
    %93 = tpu.matmul %82, %24, %cst_78 {dimension_numbers = #tpu.dot_dimension_numbers<[1], [0], [0], [1], [0, 0, 1, 1], [], []>} : vector<2x16xbf16>, vector<16x16xbf16>, vector<2x16xf32> -> vector<2x16xf32>
    %cst_79 = arith.constant dense<0.000000e+00> : vector<2x16xf32>
    %94 = tpu.matmul %82, %26, %cst_79 {dimension_numbers = #tpu.dot_dimension_numbers<[1], [0], [0], [1], [0, 0, 1, 1], [], []>} : vector<2x16xbf16>, vector<16x16xbf16>, vector<2x16xf32> -> vector<2x16xf32>
    %95 = arith.addf %85, %92 : vector<2x16xf32>
    %96 = arith.negf %95 : vector<2x16xf32>
    %97 = math.exp %96 : vector<2x16xf32>
    %cst_80 = arith.constant 1.000000e+00 : f32
    %98 = vector.broadcast %cst_80 : f32 to vector<2x16xf32>
    %99 = arith.addf %98, %97 : vector<2x16xf32>
    %100 = arith.divf %98, %99 : vector<2x16xf32>
    %101 = arith.addf %88, %93 : vector<2x16xf32>
    %102 = arith.negf %101 : vector<2x16xf32>
    %103 = math.exp %102 : vector<2x16xf32>
    %cst_81 = arith.constant 1.000000e+00 : f32
    %104 = vector.broadcast %cst_81 : f32 to vector<2x16xf32>
    %105 = arith.addf %104, %103 : vector<2x16xf32>
    %106 = arith.divf %104, %105 : vector<2x16xf32>
    %107 = vector.broadcast %40 : vector<1x16xf32> to vector<2x16xf32>
    %108 = arith.addf %94, %107 : vector<2x16xf32>
    %109 = arith.mulf %100, %108 : vector<2x16xf32>
    %110 = arith.addf %91, %109 : vector<2x16xf32>
    %111 = math.tanh %110 : vector<2x16xf32>
    %112 = arith.subf %44, %111 : vector<2x16xf32>
    %113 = arith.mulf %106, %112 : vector<2x16xf32>
    %114 = arith.addf %111, %113 : vector<2x16xf32>
    %115 = arith.truncf %79 : vector<2x16xf32> to vector<2x16xbf16>
    %c0_82 = arith.constant 0 : index
    %c0_83 = arith.constant 0 : index
    %c0_84 = arith.constant 0 : index
    %116 = vector.load %arg11[%c0_82, %c0_83, %c0_84] : memref<4x2x16xbf16, #tpu.memory_space<vmem>>, vector<1x2x16xbf16>
    %117 = vector.shape_cast %116 : vector<1x2x16xbf16> to vector<2x16xbf16>
    %118 = vector.shape_cast %115 : vector<2x16xbf16> to vector<1x2x16xbf16>
    tpu.vector_store %arg11[%c0_82, %c0_83, %c0_84], %118 {strides = array<i32>} : memref<4x2x16xbf16, #tpu.memory_space<vmem>>, vector<1x2x16xbf16>,
    %119 = arith.truncf %114 : vector<2x16xf32> to vector<2x16xbf16>
    %c3_85 = arith.constant 3 : index
    %c0_86 = arith.constant 0 : index
    %c0_87 = arith.constant 0 : index
    %120 = vector.load %arg12[%c3_85, %c0_86, %c0_87] : memref<4x2x16xbf16, #tpu.memory_space<vmem>>, vector<1x2x16xbf16>
    %121 = vector.shape_cast %120 : vector<1x2x16xbf16> to vector<2x16xbf16>
    %122 = vector.shape_cast %119 : vector<2x16xbf16> to vector<1x2x16xbf16>
    tpu.vector_store %arg12[%c3_85, %c0_86, %c0_87], %122 {strides = array<i32>} : memref<4x2x16xbf16, #tpu.memory_space<vmem>>, vector<1x2x16xbf16>,
    %c1_88 = arith.constant 1 : index
    %c0_89 = arith.constant 0 : index
    %c0_90 = arith.constant 0 : index
    %123 = vector.load %arg1[%c1_88, %c0_89, %c0_90] : memref<4x2x32xbf16, #tpu.memory_space<vmem>>, vector<1x2x32xbf16>
    %124 = vector.shape_cast %123 : vector<1x2x32xbf16> to vector<2x32xbf16>
    %125 = arith.truncf %79 : vector<2x16xf32> to vector<2x16xbf16>
    %cst_91 = arith.constant dense<0.000000e+00> : vector<2x16xf32>
    %126 = tpu.matmul %124, %4, %cst_91 {dimension_numbers = #tpu.dot_dimension_numbers<[1], [0], [0], [1], [0, 0, 1, 1], [], []>} : vector<2x32xbf16>, vector<32x16xbf16>, vector<2x16xf32> -> vector<2x16xf32>
    %127 = vector.broadcast %28 : vector<1x16xf32> to vector<2x16xf32>
    %128 = arith.addf %126, %127 : vector<2x16xf32>
    %cst_92 = arith.constant dense<0.000000e+00> : vector<2x16xf32>
    %129 = tpu.matmul %124, %6, %cst_92 {dimension_numbers = #tpu.dot_dimension_numbers<[1], [0], [0], [1], [0, 0, 1, 1], [], []>} : vector<2x32xbf16>, vector<32x16xbf16>, vector<2x16xf32> -> vector<2x16xf32>
    %130 = vector.broadcast %30 : vector<1x16xf32> to vector<2x16xf32>
    %131 = arith.addf %129, %130 : vector<2x16xf32>
    %cst_93 = arith.constant dense<0.000000e+00> : vector<2x16xf32>
    %132 = tpu.matmul %124, %8, %cst_93 {dimension_numbers = #tpu.dot_dimension_numbers<[1], [0], [0], [1], [0, 0, 1, 1], [], []>} : vector<2x32xbf16>, vector<32x16xbf16>, vector<2x16xf32> -> vector<2x16xf32>
    %133 = vector.broadcast %32 : vector<1x16xf32> to vector<2x16xf32>
    %134 = arith.addf %132, %133 : vector<2x16xf32>
    %cst_94 = arith.constant dense<0.000000e+00> : vector<2x16xf32>
    %135 = tpu.matmul %125, %16, %cst_94 {dimension_numbers = #tpu.dot_dimension_numbers<[1], [0], [0], [1], [0, 0, 1, 1], [], []>} : vector<2x16xbf16>, vector<16x16xbf16>, vector<2x16xf32> -> vector<2x16xf32>
    %cst_95 = arith.constant dense<0.000000e+00> : vector<2x16xf32>
    %136 = tpu.matmul %125, %18, %cst_95 {dimension_numbers = #tpu.dot_dimension_numbers<[1], [0], [0], [1], [0, 0, 1, 1], [], []>} : vector<2x16xbf16>, vector<16x16xbf16>, vector<2x16xf32> -> vector<2x16xf32>
    %cst_96 = arith.constant dense<0.000000e+00> : vector<2x16xf32>
    %137 = tpu.matmul %125, %20, %cst_96 {dimension_numbers = #tpu.dot_dimension_numbers<[1], [0], [0], [1], [0, 0, 1, 1], [], []>} : vector<2x16xbf16>, vector<16x16xbf16>, vector<2x16xf32> -> vector<2x16xf32>
    %138 = arith.addf %128, %135 : vector<2x16xf32>
    %139 = arith.negf %138 : vector<2x16xf32>
    %140 = math.exp %139 : vector<2x16xf32>
    %cst_97 = arith.constant 1.000000e+00 : f32
    %141 = vector.broadcast %cst_97 : f32 to vector<2x16xf32>
    %142 = arith.addf %141, %140 : vector<2x16xf32>
    %143 = arith.divf %141, %142 : vector<2x16xf32>
    %144 = arith.addf %131, %136 : vector<2x16xf32>
    %145 = arith.negf %144 : vector<2x16xf32>
    %146 = math.exp %145 : vector<2x16xf32>
    %cst_98 = arith.constant 1.000000e+00 : f32
    %147 = vector.broadcast %cst_98 : f32 to vector<2x16xf32>
    %148 = arith.addf %147, %146 : vector<2x16xf32>
    %149 = arith.divf %147, %148 : vector<2x16xf32>
    %150 = vector.broadcast %39 : vector<1x16xf32> to vector<2x16xf32>
    %151 = arith.addf %137, %150 : vector<2x16xf32>
    %152 = arith.mulf %143, %151 : vector<2x16xf32>
    %153 = arith.addf %134, %152 : vector<2x16xf32>
    %154 = math.tanh %153 : vector<2x16xf32>
    %155 = arith.subf %79, %154 : vector<2x16xf32>
    %156 = arith.mulf %149, %155 : vector<2x16xf32>
    %157 = arith.addf %154, %156 : vector<2x16xf32>
    %c2_99 = arith.constant 2 : index
    %c0_100 = arith.constant 0 : index
    %c0_101 = arith.constant 0 : index
    %158 = vector.load %arg2[%c2_99, %c0_100, %c0_101] : memref<4x2x32xbf16, #tpu.memory_space<vmem>>, vector<1x2x32xbf16>
    %159 = vector.shape_cast %158 : vector<1x2x32xbf16> to vector<2x32xbf16>
    %160 = arith.truncf %114 : vector<2x16xf32> to vector<2x16xbf16>
    %cst_102 = arith.constant dense<0.000000e+00> : vector<2x16xf32>
    %161 = tpu.matmul %159, %10, %cst_102 {dimension_numbers = #tpu.dot_dimension_numbers<[1], [0], [0], [1], [0, 0, 1, 1], [], []>} : vector<2x32xbf16>, vector<32x16xbf16>, vector<2x16xf32> -> vector<2x16xf32>
    %162 = vector.broadcast %34 : vector<1x16xf32> to vector<2x16xf32>
    %163 = arith.addf %161, %162 : vector<2x16xf32>
    %cst_103 = arith.constant dense<0.000000e+00> : vector<2x16xf32>
    %164 = tpu.matmul %159, %12, %cst_103 {dimension_numbers = #tpu.dot_dimension_numbers<[1], [0], [0], [1], [0, 0, 1, 1], [], []>} : vector<2x32xbf16>, vector<32x16xbf16>, vector<2x16xf32> -> vector<2x16xf32>
    %165 = vector.broadcast %36 : vector<1x16xf32> to vector<2x16xf32>
    %166 = arith.addf %164, %165 : vector<2x16xf32>
    %cst_104 = arith.constant dense<0.000000e+00> : vector<2x16xf32>
    %167 = tpu.matmul %159, %14, %cst_104 {dimension_numbers = #tpu.dot_dimension_numbers<[1], [0], [0], [1], [0, 0, 1, 1], [], []>} : vector<2x32xbf16>, vector<32x16xbf16>, vector<2x16xf32> -> vector<2x16xf32>
    %168 = vector.broadcast %38 : vector<1x16xf32> to vector<2x16xf32>
    %169 = arith.addf %167, %168 : vector<2x16xf32>
    %cst_105 = arith.constant dense<0.000000e+00> : vector<2x16xf32>
    %170 = tpu.matmul %160, %22, %cst_105 {dimension_numbers = #tpu.dot_dimension_numbers<[1], [0], [0], [1], [0, 0, 1, 1], [], []>} : vector<2x16xbf16>, vector<16x16xbf16>, vector<2x16xf32> -> vector<2x16xf32>
    %cst_106 = arith.constant dense<0.000000e+00> : vector<2x16xf32>
    %171 = tpu.matmul %160, %24, %cst_106 {dimension_numbers = #tpu.dot_dimension_numbers<[1], [0], [0], [1], [0, 0, 1, 1], [], []>} : vector<2x16xbf16>, vector<16x16xbf16>, vector<2x16xf32> -> vector<2x16xf32>
    %cst_107 = arith.constant dense<0.000000e+00> : vector<2x16xf32>
    %172 = tpu.matmul %160, %26, %cst_107 {dimension_numbers = #tpu.dot_dimension_numbers<[1], [0], [0], [1], [0, 0, 1, 1], [], []>} : vector<2x16xbf16>, vector<16x16xbf16>, vector<2x16xf32> -> vector<2x16xf32>
    %173 = arith.addf %163, %170 : vector<2x16xf32>
    %174 = arith.negf %173 : vector<2x16xf32>
    %175 = math.exp %174 : vector<2x16xf32>
    %cst_108 = arith.constant 1.000000e+00 : f32
    %176 = vector.broadcast %cst_108 : f32 to vector<2x16xf32>
    %177 = arith.addf %176, %175 : vector<2x16xf32>
    %178 = arith.divf %176, %177 : vector<2x16xf32>
    %179 = arith.addf %166, %171 : vector<2x16xf32>
    %180 = arith.negf %179 : vector<2x16xf32>
    %181 = math.exp %180 : vector<2x16xf32>
    %cst_109 = arith.constant 1.000000e+00 : f32
    %182 = vector.broadcast %cst_109 : f32 to vector<2x16xf32>
    %183 = arith.addf %182, %181 : vector<2x16xf32>
    %184 = arith.divf %182, %183 : vector<2x16xf32>
    %185 = vector.broadcast %40 : vector<1x16xf32> to vector<2x16xf32>
    %186 = arith.addf %172, %185 : vector<2x16xf32>
    %187 = arith.mulf %178, %186 : vector<2x16xf32>
    %188 = arith.addf %169, %187 : vector<2x16xf32>
    %189 = math.tanh %188 : vector<2x16xf32>
    %190 = arith.subf %114, %189 : vector<2x16xf32>
    %191 = arith.mulf %184, %190 : vector<2x16xf32>
    %192 = arith.addf %189, %191 : vector<2x16xf32>
    %193 = arith.truncf %157 : vector<2x16xf32> to vector<2x16xbf16>
    %c1_110 = arith.constant 1 : index
    %c0_111 = arith.constant 0 : index
    %c0_112 = arith.constant 0 : index
    %194 = vector.load %arg11[%c1_110, %c0_111, %c0_112] : memref<4x2x16xbf16, #tpu.memory_space<vmem>>, vector<1x2x16xbf16>
    %195 = vector.shape_cast %194 : vector<1x2x16xbf16> to vector<2x16xbf16>
    %196 = vector.shape_cast %193 : vector<2x16xbf16> to vector<1x2x16xbf16>
    tpu.vector_store %arg11[%c1_110, %c0_111, %c0_112], %196 {strides = array<i32>} : memref<4x2x16xbf16, #tpu.memory_space<vmem>>, vector<1x2x16xbf16>,
    %197 = arith.truncf %192 : vector<2x16xf32> to vector<2x16xbf16>
    %c2_113 = arith.constant 2 : index
    %c0_114 = arith.constant 0 : index
    %c0_115 = arith.constant 0 : index
    %198 = vector.load %arg12[%c2_113, %c0_114, %c0_115] : memref<4x2x16xbf16, #tpu.memory_space<vmem>>, vector<1x2x16xbf16>
    %199 = vector.shape_cast %198 : vector<1x2x16xbf16> to vector<2x16xbf16>
    %200 = vector.shape_cast %197 : vector<2x16xbf16> to vector<1x2x16xbf16>
    tpu.vector_store %arg12[%c2_113, %c0_114, %c0_115], %200 {strides = array<i32>} : memref<4x2x16xbf16, #tpu.memory_space<vmem>>, vector<1x2x16xbf16>,
    %c2_116 = arith.constant 2 : index
    %c0_117 = arith.constant 0 : index
    %c0_118 = arith.constant 0 : index
    %201 = vector.load %arg1[%c2_116, %c0_117, %c0_118] : memref<4x2x32xbf16, #tpu.memory_space<vmem>>, vector<1x2x32xbf16>
    %202 = vector.shape_cast %201 : vector<1x2x32xbf16> to vector<2x32xbf16>
    %203 = arith.truncf %157 : vector<2x16xf32> to vector<2x16xbf16>
    %cst_119 = arith.constant dense<0.000000e+00> : vector<2x16xf32>
    %204 = tpu.matmul %202, %4, %cst_119 {dimension_numbers = #tpu.dot_dimension_numbers<[1], [0], [0], [1], [0, 0, 1, 1], [], []>} : vector<2x32xbf16>, vector<32x16xbf16>, vector<2x16xf32> -> vector<2x16xf32>
    %205 = vector.broadcast %28 : vector<1x16xf32> to vector<2x16xf32>
    %206 = arith.addf %204, %205 : vector<2x16xf32>
    %cst_120 = arith.constant dense<0.000000e+00> : vector<2x16xf32>
    %207 = tpu.matmul %202, %6, %cst_120 {dimension_numbers = #tpu.dot_dimension_numbers<[1], [0], [0], [1], [0, 0, 1, 1], [], []>} : vector<2x32xbf16>, vector<32x16xbf16>, vector<2x16xf32> -> vector<2x16xf32>
    %208 = vector.broadcast %30 : vector<1x16xf32> to vector<2x16xf32>
    %209 = arith.addf %207, %208 : vector<2x16xf32>
    %cst_121 = arith.constant dense<0.000000e+00> : vector<2x16xf32>
    %210 = tpu.matmul %202, %8, %cst_121 {dimension_numbers = #tpu.dot_dimension_numbers<[1], [0], [0], [1], [0, 0, 1, 1], [], []>} : vector<2x32xbf16>, vector<32x16xbf16>, vector<2x16xf32> -> vector<2x16xf32>
    %211 = vector.broadcast %32 : vector<1x16xf32> to vector<2x16xf32>
    %212 = arith.addf %210, %211 : vector<2x16xf32>
    %cst_122 = arith.constant dense<0.000000e+00> : vector<2x16xf32>
    %213 = tpu.matmul %203, %16, %cst_122 {dimension_numbers = #tpu.dot_dimension_numbers<[1], [0], [0], [1], [0, 0, 1, 1], [], []>} : vector<2x16xbf16>, vector<16x16xbf16>, vector<2x16xf32> -> vector<2x16xf32>
    %cst_123 = arith.constant dense<0.000000e+00> : vector<2x16xf32>
    %214 = tpu.matmul %203, %18, %cst_123 {dimension_numbers = #tpu.dot_dimension_numbers<[1], [0], [0], [1], [0, 0, 1, 1], [], []>} : vector<2x16xbf16>, vector<16x16xbf16>, vector<2x16xf32> -> vector<2x16xf32>
    %cst_124 = arith.constant dense<0.000000e+00> : vector<2x16xf32>
    %215 = tpu.matmul %203, %20, %cst_124 {dimension_numbers = #tpu.dot_dimension_numbers<[1], [0], [0], [1], [0, 0, 1, 1], [], []>} : vector<2x16xbf16>, vector<16x16xbf16>, vector<2x16xf32> -> vector<2x16xf32>
    %216 = arith.addf %206, %213 : vector<2x16xf32>
    %217 = arith.negf %216 : vector<2x16xf32>
    %218 = math.exp %217 : vector<2x16xf32>
    %cst_125 = arith.constant 1.000000e+00 : f32
    %219 = vector.broadcast %cst_125 : f32 to vector<2x16xf32>
    %220 = arith.addf %219, %218 : vector<2x16xf32>
    %221 = arith.divf %219, %220 : vector<2x16xf32>
    %222 = arith.addf %209, %214 : vector<2x16xf32>
    %223 = arith.negf %222 : vector<2x16xf32>
    %224 = math.exp %223 : vector<2x16xf32>
    %cst_126 = arith.constant 1.000000e+00 : f32
    %225 = vector.broadcast %cst_126 : f32 to vector<2x16xf32>
    %226 = arith.addf %225, %224 : vector<2x16xf32>
    %227 = arith.divf %225, %226 : vector<2x16xf32>
    %228 = vector.broadcast %39 : vector<1x16xf32> to vector<2x16xf32>
    %229 = arith.addf %215, %228 : vector<2x16xf32>
    %230 = arith.mulf %221, %229 : vector<2x16xf32>
    %231 = arith.addf %212, %230 : vector<2x16xf32>
    %232 = math.tanh %231 : vector<2x16xf32>
    %233 = arith.subf %157, %232 : vector<2x16xf32>
    %234 = arith.mulf %227, %233 : vector<2x16xf32>
    %235 = arith.addf %232, %234 : vector<2x16xf32>
    %c1_127 = arith.constant 1 : index
    %c0_128 = arith.constant 0 : index
    %c0_129 = arith.constant 0 : index
    %236 = vector.load %arg2[%c1_127, %c0_128, %c0_129] : memref<4x2x32xbf16, #tpu.memory_space<vmem>>, vector<1x2x32xbf16>
    %237 = vector.shape_cast %236 : vector<1x2x32xbf16> to vector<2x32xbf16>
    %238 = arith.truncf %192 : vector<2x16xf32> to vector<2x16xbf16>
    %cst_130 = arith.constant dense<0.000000e+00> : vector<2x16xf32>
    %239 = tpu.matmul %237, %10, %cst_130 {dimension_numbers = #tpu.dot_dimension_numbers<[1], [0], [0], [1], [0, 0, 1, 1], [], []>} : vector<2x32xbf16>, vector<32x16xbf16>, vector<2x16xf32> -> vector<2x16xf32>
    %240 = vector.broadcast %34 : vector<1x16xf32> to vector<2x16xf32>
    %241 = arith.addf %239, %240 : vector<2x16xf32>
    %cst_131 = arith.constant dense<0.000000e+00> : vector<2x16xf32>
    %242 = tpu.matmul %237, %12, %cst_131 {dimension_numbers = #tpu.dot_dimension_numbers<[1], [0], [0], [1], [0, 0, 1, 1], [], []>} : vector<2x32xbf16>, vector<32x16xbf16>, vector<2x16xf32> -> vector<2x16xf32>
    %243 = vector.broadcast %36 : vector<1x16xf32> to vector<2x16xf32>
    %244 = arith.addf %242, %243 : vector<2x16xf32>
    %cst_132 = arith.constant dense<0.000000e+00> : vector<2x16xf32>
    %245 = tpu.matmul %237, %14, %cst_132 {dimension_numbers = #tpu.dot_dimension_numbers<[1], [0], [0], [1], [0, 0, 1, 1], [], []>} : vector<2x32xbf16>, vector<32x16xbf16>, vector<2x16xf32> -> vector<2x16xf32>
    %246 = vector.broadcast %38 : vector<1x16xf32> to vector<2x16xf32>
    %247 = arith.addf %245, %246 : vector<2x16xf32>
    %cst_133 = arith.constant dense<0.000000e+00> : vector<2x16xf32>
    %248 = tpu.matmul %238, %22, %cst_133 {dimension_numbers = #tpu.dot_dimension_numbers<[1], [0], [0], [1], [0, 0, 1, 1], [], []>} : vector<2x16xbf16>, vector<16x16xbf16>, vector<2x16xf32> -> vector<2x16xf32>
    %cst_134 = arith.constant dense<0.000000e+00> : vector<2x16xf32>
    %249 = tpu.matmul %238, %24, %cst_134 {dimension_numbers = #tpu.dot_dimension_numbers<[1], [0], [0], [1], [0, 0, 1, 1], [], []>} : vector<2x16xbf16>, vector<16x16xbf16>, vector<2x16xf32> -> vector<2x16xf32>
    %cst_135 = arith.constant dense<0.000000e+00> : vector<2x16xf32>
    %250 = tpu.matmul %238, %26, %cst_135 {dimension_numbers = #tpu.dot_dimension_numbers<[1], [0], [0], [1], [0, 0, 1, 1], [], []>} : vector<2x16xbf16>, vector<16x16xbf16>, vector<2x16xf32> -> vector<2x16xf32>
    %251 = arith.addf %241, %248 : vector<2x16xf32>
    %252 = arith.negf %251 : vector<2x16xf32>
    %253 = math.exp %252 : vector<2x16xf32>
    %cst_136 = arith.constant 1.000000e+00 : f32
    %254 = vector.broadcast %cst_136 : f32 to vector<2x16xf32>
    %255 = arith.addf %254, %253 : vector<2x16xf32>
    %256 = arith.divf %254, %255 : vector<2x16xf32>
    %257 = arith.addf %244, %249 : vector<2x16xf32>
    %258 = arith.negf %257 : vector<2x16xf32>
    %259 = math.exp %258 : vector<2x16xf32>
    %cst_137 = arith.constant 1.000000e+00 : f32
    %260 = vector.broadcast %cst_137 : f32 to vector<2x16xf32>
    %261 = arith.addf %260, %259 : vector<2x16xf32>
    %262 = arith.divf %260, %261 : vector<2x16xf32>
    %263 = vector.broadcast %40 : vector<1x16xf32> to vector<2x16xf32>
    %264 = arith.addf %250, %263 : vector<2x16xf32>
    %265 = arith.mulf %256, %264 : vector<2x16xf32>
    %266 = arith.addf %247, %265 : vector<2x16xf32>
    %267 = math.tanh %266 : vector<2x16xf32>
    %268 = arith.subf %192, %267 : vector<2x16xf32>
    %269 = arith.mulf %262, %268 : vector<2x16xf32>
    %270 = arith.addf %267, %269 : vector<2x16xf32>
    %271 = arith.truncf %235 : vector<2x16xf32> to vector<2x16xbf16>
    %c2_138 = arith.constant 2 : index
    %c0_139 = arith.constant 0 : index
    %c0_140 = arith.constant 0 : index
    %272 = vector.load %arg11[%c2_138, %c0_139, %c0_140] : memref<4x2x16xbf16, #tpu.memory_space<vmem>>, vector<1x2x16xbf16>
    %273 = vector.shape_cast %272 : vector<1x2x16xbf16> to vector<2x16xbf16>
    %274 = vector.shape_cast %271 : vector<2x16xbf16> to vector<1x2x16xbf16>
    tpu.vector_store %arg11[%c2_138, %c0_139, %c0_140], %274 {strides = array<i32>} : memref<4x2x16xbf16, #tpu.memory_space<vmem>>, vector<1x2x16xbf16>,
    %275 = arith.truncf %270 : vector<2x16xf32> to vector<2x16xbf16>
    %c1_141 = arith.constant 1 : index
    %c0_142 = arith.constant 0 : index
    %c0_143 = arith.constant 0 : index
    %276 = vector.load %arg12[%c1_141, %c0_142, %c0_143] : memref<4x2x16xbf16, #tpu.memory_space<vmem>>, vector<1x2x16xbf16>
    %277 = vector.shape_cast %276 : vector<1x2x16xbf16> to vector<2x16xbf16>
    %278 = vector.shape_cast %275 : vector<2x16xbf16> to vector<1x2x16xbf16>
    tpu.vector_store %arg12[%c1_141, %c0_142, %c0_143], %278 {strides = array<i32>} : memref<4x2x16xbf16, #tpu.memory_space<vmem>>, vector<1x2x16xbf16>,
    %c3_144 = arith.constant 3 : index
    %c0_145 = arith.constant 0 : index
    %c0_146 = arith.constant 0 : index
    %279 = vector.load %arg1[%c3_144, %c0_145, %c0_146] : memref<4x2x32xbf16, #tpu.memory_space<vmem>>, vector<1x2x32xbf16>
    %280 = vector.shape_cast %279 : vector<1x2x32xbf16> to vector<2x32xbf16>
    %281 = arith.truncf %235 : vector<2x16xf32> to vector<2x16xbf16>
    %cst_147 = arith.constant dense<0.000000e+00> : vector<2x16xf32>
    %282 = tpu.matmul %280, %4, %cst_147 {dimension_numbers = #tpu.dot_dimension_numbers<[1], [0], [0], [1], [0, 0, 1, 1], [], []>} : vector<2x32xbf16>, vector<32x16xbf16>, vector<2x16xf32> -> vector<2x16xf32>
    %283 = vector.broadcast %28 : vector<1x16xf32> to vector<2x16xf32>
    %284 = arith.addf %282, %283 : vector<2x16xf32>
    %cst_148 = arith.constant dense<0.000000e+00> : vector<2x16xf32>
    %285 = tpu.matmul %280, %6, %cst_148 {dimension_numbers = #tpu.dot_dimension_numbers<[1], [0], [0], [1], [0, 0, 1, 1], [], []>} : vector<2x32xbf16>, vector<32x16xbf16>, vector<2x16xf32> -> vector<2x16xf32>
    %286 = vector.broadcast %30 : vector<1x16xf32> to vector<2x16xf32>
    %287 = arith.addf %285, %286 : vector<2x16xf32>
    %cst_149 = arith.constant dense<0.000000e+00> : vector<2x16xf32>
    %288 = tpu.matmul %280, %8, %cst_149 {dimension_numbers = #tpu.dot_dimension_numbers<[1], [0], [0], [1], [0, 0, 1, 1], [], []>} : vector<2x32xbf16>, vector<32x16xbf16>, vector<2x16xf32> -> vector<2x16xf32>
    %289 = vector.broadcast %32 : vector<1x16xf32> to vector<2x16xf32>
    %290 = arith.addf %288, %289 : vector<2x16xf32>
    %cst_150 = arith.constant dense<0.000000e+00> : vector<2x16xf32>
    %291 = tpu.matmul %281, %16, %cst_150 {dimension_numbers = #tpu.dot_dimension_numbers<[1], [0], [0], [1], [0, 0, 1, 1], [], []>} : vector<2x16xbf16>, vector<16x16xbf16>, vector<2x16xf32> -> vector<2x16xf32>
    %cst_151 = arith.constant dense<0.000000e+00> : vector<2x16xf32>
    %292 = tpu.matmul %281, %18, %cst_151 {dimension_numbers = #tpu.dot_dimension_numbers<[1], [0], [0], [1], [0, 0, 1, 1], [], []>} : vector<2x16xbf16>, vector<16x16xbf16>, vector<2x16xf32> -> vector<2x16xf32>
    %cst_152 = arith.constant dense<0.000000e+00> : vector<2x16xf32>
    %293 = tpu.matmul %281, %20, %cst_152 {dimension_numbers = #tpu.dot_dimension_numbers<[1], [0], [0], [1], [0, 0, 1, 1], [], []>} : vector<2x16xbf16>, vector<16x16xbf16>, vector<2x16xf32> -> vector<2x16xf32>
    %294 = arith.addf %284, %291 : vector<2x16xf32>
    %295 = arith.negf %294 : vector<2x16xf32>
    %296 = math.exp %295 : vector<2x16xf32>
    %cst_153 = arith.constant 1.000000e+00 : f32
    %297 = vector.broadcast %cst_153 : f32 to vector<2x16xf32>
    %298 = arith.addf %297, %296 : vector<2x16xf32>
    %299 = arith.divf %297, %298 : vector<2x16xf32>
    %300 = arith.addf %287, %292 : vector<2x16xf32>
    %301 = arith.negf %300 : vector<2x16xf32>
    %302 = math.exp %301 : vector<2x16xf32>
    %cst_154 = arith.constant 1.000000e+00 : f32
    %303 = vector.broadcast %cst_154 : f32 to vector<2x16xf32>
    %304 = arith.addf %303, %302 : vector<2x16xf32>
    %305 = arith.divf %303, %304 : vector<2x16xf32>
    %306 = vector.broadcast %39 : vector<1x16xf32> to vector<2x16xf32>
    %307 = arith.addf %293, %306 : vector<2x16xf32>
    %308 = arith.mulf %299, %307 : vector<2x16xf32>
    %309 = arith.addf %290, %308 : vector<2x16xf32>
    %310 = math.tanh %309 : vector<2x16xf32>
    %311 = arith.subf %235, %310 : vector<2x16xf32>
    %312 = arith.mulf %305, %311 : vector<2x16xf32>
    %313 = arith.addf %310, %312 : vector<2x16xf32>
    %c0_155 = arith.constant 0 : index
    %c0_156 = arith.constant 0 : index
    %c0_157 = arith.constant 0 : index
    %314 = vector.load %arg2[%c0_155, %c0_156, %c0_157] : memref<4x2x32xbf16, #tpu.memory_space<vmem>>, vector<1x2x32xbf16>
    %315 = vector.shape_cast %314 : vector<1x2x32xbf16> to vector<2x32xbf16>
    %316 = arith.truncf %270 : vector<2x16xf32> to vector<2x16xbf16>
    %cst_158 = arith.constant dense<0.000000e+00> : vector<2x16xf32>
    %317 = tpu.matmul %315, %10, %cst_158 {dimension_numbers = #tpu.dot_dimension_numbers<[1], [0], [0], [1], [0, 0, 1, 1], [], []>} : vector<2x32xbf16>, vector<32x16xbf16>, vector<2x16xf32> -> vector<2x16xf32>
    %318 = vector.broadcast %34 : vector<1x16xf32> to vector<2x16xf32>
    %319 = arith.addf %317, %318 : vector<2x16xf32>
    %cst_159 = arith.constant dense<0.000000e+00> : vector<2x16xf32>
    %320 = tpu.matmul %315, %12, %cst_159 {dimension_numbers = #tpu.dot_dimension_numbers<[1], [0], [0], [1], [0, 0, 1, 1], [], []>} : vector<2x32xbf16>, vector<32x16xbf16>, vector<2x16xf32> -> vector<2x16xf32>
    %321 = vector.broadcast %36 : vector<1x16xf32> to vector<2x16xf32>
    %322 = arith.addf %320, %321 : vector<2x16xf32>
    %cst_160 = arith.constant dense<0.000000e+00> : vector<2x16xf32>
    %323 = tpu.matmul %315, %14, %cst_160 {dimension_numbers = #tpu.dot_dimension_numbers<[1], [0], [0], [1], [0, 0, 1, 1], [], []>} : vector<2x32xbf16>, vector<32x16xbf16>, vector<2x16xf32> -> vector<2x16xf32>
    %324 = vector.broadcast %38 : vector<1x16xf32> to vector<2x16xf32>
    %325 = arith.addf %323, %324 : vector<2x16xf32>
    %cst_161 = arith.constant dense<0.000000e+00> : vector<2x16xf32>
    %326 = tpu.matmul %316, %22, %cst_161 {dimension_numbers = #tpu.dot_dimension_numbers<[1], [0], [0], [1], [0, 0, 1, 1], [], []>} : vector<2x16xbf16>, vector<16x16xbf16>, vector<2x16xf32> -> vector<2x16xf32>
    %cst_162 = arith.constant dense<0.000000e+00> : vector<2x16xf32>
    %327 = tpu.matmul %316, %24, %cst_162 {dimension_numbers = #tpu.dot_dimension_numbers<[1], [0], [0], [1], [0, 0, 1, 1], [], []>} : vector<2x16xbf16>, vector<16x16xbf16>, vector<2x16xf32> -> vector<2x16xf32>
    %cst_163 = arith.constant dense<0.000000e+00> : vector<2x16xf32>
    %328 = tpu.matmul %316, %26, %cst_163 {dimension_numbers = #tpu.dot_dimension_numbers<[1], [0], [0], [1], [0, 0, 1, 1], [], []>} : vector<2x16xbf16>, vector<16x16xbf16>, vector<2x16xf32> -> vector<2x16xf32>
    %329 = arith.addf %319, %326 : vector<2x16xf32>
    %330 = arith.negf %329 : vector<2x16xf32>
    %331 = math.exp %330 : vector<2x16xf32>
    %cst_164 = arith.constant 1.000000e+00 : f32
    %332 = vector.broadcast %cst_164 : f32 to vector<2x16xf32>
    %333 = arith.addf %332, %331 : vector<2x16xf32>
    %334 = arith.divf %332, %333 : vector<2x16xf32>
    %335 = arith.addf %322, %327 : vector<2x16xf32>
    %336 = arith.negf %335 : vector<2x16xf32>
    %337 = math.exp %336 : vector<2x16xf32>
    %cst_165 = arith.constant 1.000000e+00 : f32
    %338 = vector.broadcast %cst_165 : f32 to vector<2x16xf32>
    %339 = arith.addf %338, %337 : vector<2x16xf32>
    %340 = arith.divf %338, %339 : vector<2x16xf32>
    %341 = vector.broadcast %40 : vector<1x16xf32> to vector<2x16xf32>
    %342 = arith.addf %328, %341 : vector<2x16xf32>
    %343 = arith.mulf %334, %342 : vector<2x16xf32>
    %344 = arith.addf %325, %343 : vector<2x16xf32>
    %345 = math.tanh %344 : vector<2x16xf32>
    %346 = arith.subf %270, %345 : vector<2x16xf32>
    %347 = arith.mulf %340, %346 : vector<2x16xf32>
    %348 = arith.addf %345, %347 : vector<2x16xf32>
    %349 = arith.truncf %313 : vector<2x16xf32> to vector<2x16xbf16>
    %c3_166 = arith.constant 3 : index
    %c0_167 = arith.constant 0 : index
    %c0_168 = arith.constant 0 : index
    %350 = vector.load %arg11[%c3_166, %c0_167, %c0_168] : memref<4x2x16xbf16, #tpu.memory_space<vmem>>, vector<1x2x16xbf16>
    %351 = vector.shape_cast %350 : vector<1x2x16xbf16> to vector<2x16xbf16>
    %352 = vector.shape_cast %349 : vector<2x16xbf16> to vector<1x2x16xbf16>
    tpu.vector_store %arg11[%c3_166, %c0_167, %c0_168], %352 {strides = array<i32>} : memref<4x2x16xbf16, #tpu.memory_space<vmem>>, vector<1x2x16xbf16>,
    %353 = arith.truncf %348 : vector<2x16xf32> to vector<2x16xbf16>
    %c0_169 = arith.constant 0 : index
    %c0_170 = arith.constant 0 : index
    %c0_171 = arith.constant 0 : index
    %354 = vector.load %arg12[%c0_169, %c0_170, %c0_171] : memref<4x2x16xbf16, #tpu.memory_space<vmem>>, vector<1x2x16xbf16>
    %355 = vector.shape_cast %354 : vector<1x2x16xbf16> to vector<2x16xbf16>
    %356 = vector.shape_cast %353 : vector<2x16xbf16> to vector<1x2x16xbf16>
    tpu.vector_store %arg12[%c0_169, %c0_170, %c0_171], %356 {strides = array<i32>} : memref<4x2x16xbf16, #tpu.memory_space<vmem>>, vector<1x2x16xbf16>,
    %c0_172 = arith.constant 0 : index
    %c0_173 = arith.constant 0 : index
    %c0_174 = arith.constant 0 : index
    %357 = vector.load %arg13[%c0_172, %c0_173, %c0_174] : memref<2x2x16xf32, #tpu.memory_space<vmem>>, vector<1x2x16xf32>
    %358 = vector.shape_cast %357 : vector<1x2x16xf32> to vector<2x16xf32>
    %359 = vector.shape_cast %313 : vector<2x16xf32> to vector<1x2x16xf32>
    tpu.vector_store %arg13[%c0_172, %c0_173, %c0_174], %359 {strides = array<i32>} : memref<2x2x16xf32, #tpu.memory_space<vmem>>, vector<1x2x16xf32>,
    %c1_175 = arith.constant 1 : index
    %c0_176 = arith.constant 0 : index
    %c0_177 = arith.constant 0 : index
    %360 = vector.load %arg13[%c1_175, %c0_176, %c0_177] : memref<2x2x16xf32, #tpu.memory_space<vmem>>, vector<1x2x16xf32>
    %361 = vector.shape_cast %360 : vector<1x2x16xf32> to vector<2x16xf32>
    %362 = vector.shape_cast %348 : vector<2x16xf32> to vector<1x2x16xf32>
    tpu.vector_store %arg13[%c1_175, %c0_176, %c0_177], %362 {strides = array<i32>} : memref<2x2x16xf32, #tpu.memory_space<vmem>>, vector<1x2x16xf32>,
    return
  }
  func.func @transform_0(%arg0: i32) -> (i32, i32, i32) {
    %c0_i32 = arith.constant 0 : i32
    %c0_i32_0 = arith.constant 0 : i32
    %c0_i32_1 = arith.constant 0 : i32
    return %arg0, %c0_i32, %c0_i32_0 : i32, i32, i32
  }
  func.func @transform_1(%arg0: i32) -> (i32, i32, i32) {
    %c1_i32 = arith.constant 1 : i32
    %0 = arith.subi %c1_i32, %arg0 : i32
    %c0_i32 = arith.constant 0 : i32
    %c0_i32_0 = arith.constant 0 : i32
    %c0_i32_1 = arith.constant 0 : i32
    return %0, %c0_i32, %c0_i32_0 : i32, i32, i32
  }
  func.func @transform_2(%arg0: i32) -> (i32, i32, i32) {
    %c0_i32 = arith.constant 0 : i32
    %c0_i32_0 = arith.constant 0 : i32
    %c0_i32_1 = arith.constant 0 : i32
    %c0_i32_2 = arith.constant 0 : i32
    return %c0_i32, %c0_i32_0, %c0_i32_1 : i32, i32, i32
  }
  func.func @transform_3(%arg0: i32) -> (i32, i32, i32) {
    %c0_i32 = arith.constant 0 : i32
    %c0_i32_0 = arith.constant 0 : i32
    %c0_i32_1 = arith.constant 0 : i32
    %c0_i32_2 = arith.constant 0 : i32
    return %c0_i32, %c0_i32_0, %c0_i32_1 : i32, i32, i32
  }
  func.func @transform_4(%arg0: i32) -> (i32, i32, i32) {
    %c0_i32 = arith.constant 0 : i32
    %c0_i32_0 = arith.constant 0 : i32
    %c0_i32_1 = arith.constant 0 : i32
    %c0_i32_2 = arith.constant 0 : i32
    return %c0_i32, %c0_i32_0, %c0_i32_1 : i32, i32, i32
  }
  func.func @transform_5(%arg0: i32) -> (i32, i32, i32) {
    %c0_i32 = arith.constant 0 : i32
    %c0_i32_0 = arith.constant 0 : i32
    %c0_i32_1 = arith.constant 0 : i32
    %c0_i32_2 = arith.constant 0 : i32
    return %c0_i32, %c0_i32_0, %c0_i32_1 : i32, i32, i32
  }
  func.func @transform_6(%arg0: i32) -> (i32, i32, i32) {
    %c0_i32 = arith.constant 0 : i32
    %c0_i32_0 = arith.constant 0 : i32
    %c0_i32_1 = arith.constant 0 : i32
    %c0_i32_2 = arith.constant 0 : i32
    return %c0_i32, %c0_i32_0, %c0_i32_1 : i32, i32, i32
  }
  func.func @transform_7(%arg0: i32) -> (i32, i32, i32) {
    %c0_i32 = arith.constant 0 : i32
    %c0_i32_0 = arith.constant 0 : i32
    %c0_i32_1 = arith.constant 0 : i32
    %c0_i32_2 = arith.constant 0 : i32
    return %c0_i32, %c0_i32_0, %c0_i32_1 : i32, i32, i32
  }
  func.func @transform_8(%arg0: i32) -> (i32, i32) {
    %c0_i32 = arith.constant 0 : i32
    %c0_i32_0 = arith.constant 0 : i32
    %c0_i32_1 = arith.constant 0 : i32
    return %c0_i32, %c0_i32_0 : i32, i32
  }
  func.func @transform_9(%arg0: i32) -> (i32, i32) {
    %c0_i32 = arith.constant 0 : i32
    %c0_i32_0 = arith.constant 0 : i32
    %c0_i32_1 = arith.constant 0 : i32
    return %c0_i32, %c0_i32_0 : i32, i32
  }
  func.func @transform_10(%arg0: i32) -> (i32, i32, i32) {
    %c0_i32 = arith.constant 0 : i32
    %c0_i32_0 = arith.constant 0 : i32
    %c0_i32_1 = arith.constant 0 : i32
    return %arg0, %c0_i32, %c0_i32_0 : i32, i32, i32
  }
  func.func @transform_11(%arg0: i32) -> (i32, i32, i32) {
    %c1_i32 = arith.constant 1 : i32
    %0 = arith.subi %c1_i32, %arg0 : i32
    %c0_i32 = arith.constant 0 : i32
    %c0_i32_0 = arith.constant 0 : i32
    %c0_i32_1 = arith.constant 0 : i32
    return %0, %c0_i32, %c0_i32_0 : i32, i32, i32
  }
  func.func @transform_12(%arg0: i32) -> (i32, i32, i32) {
    %c0_i32 = arith.constant 0 : i32
    %c0_i32_0 = arith.constant 0 : i32
    %c0_i32_1 = arith.constant 0 : i32
    %c0_i32_2 = arith.constant 0 : i32
    return %c0_i32, %c0_i32_0, %c0_i32_1 : i32, i32, i32
  }
}

</mosaic_0001>

<llo_original>
// kernel: encoder_forward.1
$region0: #{encoder_forward.1}
  #allocation0 [shape = 'u32[]', space=smem, size = 0x4, offset = 0x4, fixed_abs, tag = 'smem constant byte address 0x4 - core index']
  #allocation1 [shape = 'u32[144,128]{1,0:T(1,128)}', space=vmem, size = 0x12000, scoped, tag = 'internal scratch']
  %s0 = inlined_call_operand.vmem [shape: bf16[8,2,32], index: 0, kind: input, shape index: {}, may-alias: {0,1}]
  %s1 = inlined_call_operand.vmem [shape: bf16[8,2,32], index: 1, kind: input, shape index: {}, may-alias: {0,1}]
  %s2 = inlined_call_operand.vmem [shape: bf16[3,32,16], index: 2, kind: input, shape index: {}]
  %s3 = inlined_call_operand.vmem [shape: bf16[3,32,16], index: 3, kind: input, shape index: {}]
  %s4 = inlined_call_operand.vmem [shape: bf16[3,16,16], index: 4, kind: input, shape index: {}]
  %s5 = inlined_call_operand.vmem [shape: bf16[3,16,16], index: 5, kind: input, shape index: {}]
  %s6 = inlined_call_operand.vmem [shape: f32[3,1,16], index: 6, kind: input, shape index: {}]
  %s7 = inlined_call_operand.vmem [shape: f32[3,1,16], index: 7, kind: input, shape index: {}]
  %s8 = inlined_call_operand.vmem [shape: f32[1,16], index: 8, kind: input, shape index: {}]
  %s9 = inlined_call_operand.vmem [shape: f32[1,16], index: 9, kind: input, shape index: {}]
  %s10 = inlined_call_operand.vmem [shape: bf16[8,2,16], index: 10, kind: output, shape index: {0}]
  %s11 = inlined_call_operand.vmem [shape: bf16[8,2,16], index: 11, kind: output, shape index: {1}]
  %s12 = inlined_call_operand.hbm [shape: f32[2,2,16], index: 12, kind: output, shape index: {2}]
  %13 = xla_tuple %s10, %s11, %s12
  %s14 = sld [smem:[#allocation0]]
  $region93: #{encoder_forward.1} parent=0
    _
  %s16 = ssub.s32 1, %s14
  %s17 = scalar_select 0, %s16, %s14
  $region1: #{encoder_forward.1} parent=0
    #allocation2 [shape = 'u8[2048]{0}', space=vmem, size = 0x800, scoped, tag = 'output window, operand 2, single buffered']
    #allocation3 [shape = 's32[2]{0}', space=sflag, size = 0x8, scoped, tag = 'scoped memory for encoder_forward.1']
    %18 = vsyncpa [#allocation3], 0
    loop: start=0, step=1, limit=4
    $region2: #{encoder_forward.1} parent=1 // loop_pre_header
      _
    $region3: #{encoder_forward.1} parent=1 // loop_header
      %s20 = sphi 0, %s24
      %p21 = scmp.ge.s32.totalorder %s20, 4
      %s30 = sphi 0, %s32
      %s33 = sphi 0, %s30
      %s34 = sphi 0, %s33
      %s50 = sphi 0, %s34
      %s58 = sphi 0, %s60
      %s61 = sphi 0, %s58
      %s62 = sphi 0, %s61
      %s78 = sphi 0, %s62
      %s82 = sphi 0, %s82
      %s84 = sphi 0, %s82
      %s85 = sphi 0, %s84
      %s99 = sphi 0, %s85
      %s103 = sphi 0, %s103
      %s105 = sphi 0, %s103
      %s106 = sphi 0, %s105
      %s120 = sphi 0, %s106
      %s124 = sphi 0, %s124
      %s126 = sphi 0, %s124
      %s127 = sphi 0, %s126
      %s141 = sphi 0, %s127
      %s145 = sphi 0, %s145
      %s147 = sphi 0, %s145
      %s148 = sphi 0, %s147
      %s162 = sphi 0, %s148
      %s166 = sphi 0, %s166
      %s168 = sphi 0, %s166
      %s169 = sphi 0, %s168
      %s183 = sphi 0, %s169
      %s187 = sphi 0, %s187
      %s189 = sphi 0, %s187
      %s190 = sphi 0, %s189
      %s204 = sphi 0, %s190
      %s208 = sphi 0, %s208
      %s210 = sphi 0, %s208
      %s211 = sphi 0, %s210
      %s225 = sphi 0, %s211
      %s229 = sphi 0, %s229
      %s231 = sphi 0, %s229
      %s232 = sphi 0, %s231
      %s246 = sphi 0, %s232
      %s252 = sphi 0, %s254
      %s255 = sphi 0, %s252
      %s256 = sphi 0, %s255
      %s272 = sphi 0, %s256
      %s280 = sphi 0, %s282
      %s283 = sphi 0, %s280
      %s284 = sphi 0, %s283
      %s300 = sphi 0, %s284
      %s304 = sphi 0, %s304
      %s306 = sphi 0, %s304
      %s307 = sphi 0, %s306
      %s321 = sphi 0, %s307
    $region4: #{encoder_forward.1} parent=1 // loop_header_branch
      %23 = sbr.rel (%p21) target = $region8
    $region5: #{encoder_forward.1} parent=1 // loop_body
      %s25 = ssub.s32 %s20, 1
      %s26 = ssub.s32 %s20, 2
      %s27 = sadd.s32 %s20, 1
      %s28 = ssub.s32 %s20, %s27
      %p29 = scmp.eq.s32.totalorder %s28, 0
      %s31 = sadd.s32 %s30, 1
      %s32 = scalar_select %p29, %s30, %s31
      %p35 = pneg %p29
      %p36 = scmp.eq.s32.totalorder %s20, 1
      %p37 = por %p35, %p36
      %p38 = scmp.ne.s32.totalorder %s30, %s33
      %p39 = scmp.eq.s32.totalorder %s20, 0
      %p40 = por %p38, %p39
      %p41 = scmp.ne.s32.totalorder %s30, %s33
      %p42 = scmp.eq.s32.totalorder %s25, 1
      %p43 = por %p41, %p42
      %p44 = scmp.ne.s32.totalorder %s33, %s34
      %p45 = scmp.eq.s32.totalorder %s25, 0
      %p46 = por %p44, %p45
      %p47 = scmp.ne.s32.totalorder %s33, %s34
      %p48 = scmp.eq.s32.totalorder %s26, 1
      %p49 = por %p47, %p48
      %p51 = scmp.ne.s32.totalorder %s34, %s50
      %p52 = scmp.eq.s32.totalorder %s26, 0
      %p53 = por %p51, %p52
      %s54 = ssub.s32 1, %s20
      %s55 = ssub.s32 1, %s27
      %s56 = ssub.s32 %s54, %s55
      %p57 = scmp.eq.s32.totalorder %s56, 0
      %s59 = sadd.s32 %s58, 1
      %s60 = scalar_select %p57, %s58, %s59
      %p63 = pneg %p57
      %p64 = scmp.eq.s32.totalorder %s20, 1
      %p65 = por %p63, %p64
      %p66 = scmp.ne.s32.totalorder %s58, %s61
      %p67 = scmp.eq.s32.totalorder %s20, 0
      %p68 = por %p66, %p67
      %p69 = scmp.ne.s32.totalorder %s58, %s61
      %p70 = scmp.eq.s32.totalorder %s25, 1
      %p71 = por %p69, %p70
      %p72 = scmp.ne.s32.totalorder %s61, %s62
      %p73 = scmp.eq.s32.totalorder %s25, 0
      %p74 = por %p72, %p73
      %p75 = scmp.ne.s32.totalorder %s61, %s62
      %p76 = scmp.eq.s32.totalorder %s26, 1
      %p77 = por %p75, %p76
      %p79 = scmp.ne.s32.totalorder %s62, %s78
      %p80 = scmp.eq.s32.totalorder %s26, 0
      %p81 = por %p79, %p80
      %s83 = sadd.s32 %s82, 1
      %p86 = scmp.eq.s32.totalorder %s20, 1
      %p87 = scmp.ne.s32.totalorder %s82, %s84
      %p88 = scmp.eq.s32.totalorder %s20, 0
      %p89 = por %p87, %p88
      %p90 = scmp.ne.s32.totalorder %s82, %s84
      %p91 = scmp.eq.s32.totalorder %s25, 1
      %p92 = por %p90, %p91
      %p93 = scmp.ne.s32.totalorder %s84, %s85
      %p94 = scmp.eq.s32.totalorder %s25, 0
      %p95 = por %p93, %p94
      %p96 = scmp.ne.s32.totalorder %s84, %s85
      %p97 = scmp.eq.s32.totalorder %s26, 1
      %p98 = por %p96, %p97
      %p100 = scmp.ne.s32.totalorder %s85, %s99
      %p101 = scmp.eq.s32.totalorder %s26, 0
      %p102 = por %p100, %p101
      %s104 = sadd.s32 %s103, 1
      %p107 = scmp.eq.s32.totalorder %s20, 1
      %p108 = scmp.ne.s32.totalorder %s103, %s105
      %p109 = scmp.eq.s32.totalorder %s20, 0
      %p110 = por %p108, %p109
      %p111 = scmp.ne.s32.totalorder %s103, %s105
      %p112 = scmp.eq.s32.totalorder %s25, 1
      %p113 = por %p111, %p112
      %p114 = scmp.ne.s32.totalorder %s105, %s106
      %p115 = scmp.eq.s32.totalorder %s25, 0
      %p116 = por %p114, %p115
      %p117 = scmp.ne.s32.totalorder %s105, %s106
      %p118 = scmp.eq.s32.totalorder %s26, 1
      %p119 = por %p117, %p118
      %p121 = scmp.ne.s32.totalorder %s106, %s120
      %p122 = scmp.eq.s32.totalorder %s26, 0
      %p123 = por %p121, %p122
      %s125 = sadd.s32 %s124, 1
      %p128 = scmp.eq.s32.totalorder %s20, 1
      %p129 = scmp.ne.s32.totalorder %s124, %s126
      %p130 = scmp.eq.s32.totalorder %s20, 0
      %p131 = por %p129, %p130
      %p132 = scmp.ne.s32.totalorder %s124, %s126
      %p133 = scmp.eq.s32.totalorder %s25, 1
      %p134 = por %p132, %p133
      %p135 = scmp.ne.s32.totalorder %s126, %s127
      %p136 = scmp.eq.s32.totalorder %s25, 0
      %p137 = por %p135, %p136
      %p138 = scmp.ne.s32.totalorder %s126, %s127
      %p139 = scmp.eq.s32.totalorder %s26, 1
      %p140 = por %p138, %p139
      %p142 = scmp.ne.s32.totalorder %s127, %s141
      %p143 = scmp.eq.s32.totalorder %s26, 0
      %p144 = por %p142, %p143
      %s146 = sadd.s32 %s145, 1
      %p149 = scmp.eq.s32.totalorder %s20, 1
      %p150 = scmp.ne.s32.totalorder %s145, %s147
      %p151 = scmp.eq.s32.totalorder %s20, 0
      %p152 = por %p150, %p151
      %p153 = scmp.ne.s32.totalorder %s145, %s147
      %p154 = scmp.eq.s32.totalorder %s25, 1
      %p155 = por %p153, %p154
      %p156 = scmp.ne.s32.totalorder %s147, %s148
      %p157 = scmp.eq.s32.totalorder %s25, 0
      %p158 = por %p156, %p157
      %p159 = scmp.ne.s32.totalorder %s147, %s148
      %p160 = scmp.eq.s32.totalorder %s26, 1
      %p161 = por %p159, %p160
      %p163 = scmp.ne.s32.totalorder %s148, %s162
      %p164 = scmp.eq.s32.totalorder %s26, 0
      %p165 = por %p163, %p164
      %s167 = sadd.s32 %s166, 1
      %p170 = scmp.eq.s32.totalorder %s20, 1
      %p171 = scmp.ne.s32.totalorder %s166, %s168
      %p172 = scmp.eq.s32.totalorder %s20, 0
      %p173 = por %p171, %p172
      %p174 = scmp.ne.s32.totalorder %s166, %s168
      %p175 = scmp.eq.s32.totalorder %s25, 1
      %p176 = por %p174, %p175
      %p177 = scmp.ne.s32.totalorder %s168, %s169
      %p178 = scmp.eq.s32.totalorder %s25, 0
      %p179 = por %p177, %p178
      %p180 = scmp.ne.s32.totalorder %s168, %s169
      %p181 = scmp.eq.s32.totalorder %s26, 1
      %p182 = por %p180, %p181
      %p184 = scmp.ne.s32.totalorder %s169, %s183
      %p185 = scmp.eq.s32.totalorder %s26, 0
      %p186 = por %p184, %p185
      %s188 = sadd.s32 %s187, 1
      %p191 = scmp.eq.s32.totalorder %s20, 1
      %p192 = scmp.ne.s32.totalorder %s187, %s189
      %p193 = scmp.eq.s32.totalorder %s20, 0
      %p194 = por %p192, %p193
      %p195 = scmp.ne.s32.totalorder %s187, %s189
      %p196 = scmp.eq.s32.totalorder %s25, 1
      %p197 = por %p195, %p196
      %p198 = scmp.ne.s32.totalorder %s189, %s190
      %p199 = scmp.eq.s32.totalorder %s25, 0
      %p200 = por %p198, %p199
      %p201 = scmp.ne.s32.totalorder %s189, %s190
      %p202 = scmp.eq.s32.totalorder %s26, 1
      %p203 = por %p201, %p202
      %p205 = scmp.ne.s32.totalorder %s190, %s204
      %p206 = scmp.eq.s32.totalorder %s26, 0
      %p207 = por %p205, %p206
      %s209 = sadd.s32 %s208, 1
      %p212 = scmp.eq.s32.totalorder %s20, 1
      %p213 = scmp.ne.s32.totalorder %s208, %s210
      %p214 = scmp.eq.s32.totalorder %s20, 0
      %p215 = por %p213, %p214
      %p216 = scmp.ne.s32.totalorder %s208, %s210
      %p217 = scmp.eq.s32.totalorder %s25, 1
      %p218 = por %p216, %p217
      %p219 = scmp.ne.s32.totalorder %s210, %s211
      %p220 = scmp.eq.s32.totalorder %s25, 0
      %p221 = por %p219, %p220
      %p222 = scmp.ne.s32.totalorder %s210, %s211
      %p223 = scmp.eq.s32.totalorder %s26, 1
      %p224 = por %p222, %p223
      %p226 = scmp.ne.s32.totalorder %s211, %s225
      %p227 = scmp.eq.s32.totalorder %s26, 0
      %p228 = por %p226, %p227
      %s230 = sadd.s32 %s229, 1
      %p233 = scmp.eq.s32.totalorder %s20, 1
      %p234 = scmp.ne.s32.totalorder %s229, %s231
      %p235 = scmp.eq.s32.totalorder %s20, 0
      %p236 = por %p234, %p235
      %p237 = scmp.ne.s32.totalorder %s229, %s231
      %p238 = scmp.eq.s32.totalorder %s25, 1
      %p239 = por %p237, %p238
      %p240 = scmp.ne.s32.totalorder %s231, %s232
      %p241 = scmp.eq.s32.totalorder %s25, 0
      %p242 = por %p240, %p241
      %p243 = scmp.ne.s32.totalorder %s231, %s232
      %p244 = scmp.eq.s32.totalorder %s26, 1
      %p245 = por %p243, %p244
      %p247 = scmp.ne.s32.totalorder %s232, %s246
      %p248 = scmp.eq.s32.totalorder %s26, 0
      %p249 = por %p247, %p248
      %s250 = ssub.s32 %s20, %s27
      %p251 = scmp.eq.s32.totalorder %s250, 0
      %s253 = sadd.s32 %s252, 1
      %s254 = scalar_select %p251, %s252, %s253
      %p257 = pneg %p251
      %p258 = scmp.eq.s32.totalorder %s20, 1
      %p259 = por %p257, %p258
      %p260 = scmp.ne.s32.totalorder %s252, %s255
      %p261 = scmp.eq.s32.totalorder %s20, 0
      %p262 = por %p260, %p261
      %p263 = scmp.ne.s32.totalorder %s252, %s255
      %p264 = scmp.eq.s32.totalorder %s25, 1
      %p265 = por %p263, %p264
      %p266 = scmp.ne.s32.totalorder %s255, %s256
      %p267 = scmp.eq.s32.totalorder %s25, 0
      %p268 = por %p266, %p267
      %p269 = scmp.ne.s32.totalorder %s255, %s256
      %p270 = scmp.eq.s32.totalorder %s26, 1
      %p271 = por %p269, %p270
      %p273 = scmp.ne.s32.totalorder %s256, %s272
      %p274 = scmp.eq.s32.totalorder %s26, 0
      %p275 = por %p273, %p274
      %s276 = ssub.s32 1, %s20
      %s277 = ssub.s32 1, %s27
      %s278 = ssub.s32 %s276, %s277
      %p279 = scmp.eq.s32.totalorder %s278, 0
      %s281 = sadd.s32 %s280, 1
      %s282 = scalar_select %p279, %s280, %s281
      %p285 = pneg %p279
      %p286 = scmp.eq.s32.totalorder %s20, 1
      %p287 = por %p285, %p286
      %p288 = scmp.ne.s32.totalorder %s280, %s283
      %p289 = scmp.eq.s32.totalorder %s20, 0
      %p290 = por %p288, %p289
      %p291 = scmp.ne.s32.totalorder %s280, %s283
      %p292 = scmp.eq.s32.totalorder %s25, 1
      %p293 = por %p291, %p292
      %p294 = scmp.ne.s32.totalorder %s283, %s284
      %p295 = scmp.eq.s32.totalorder %s25, 0
      %p296 = por %p294, %p295
      %p297 = scmp.ne.s32.totalorder %s283, %s284
      %p298 = scmp.eq.s32.totalorder %s26, 1
      %p299 = por %p297, %p298
      %p301 = scmp.ne.s32.totalorder %s284, %s300
      %p302 = scmp.eq.s32.totalorder %s26, 0
      %p303 = por %p301, %p302
      %s305 = sadd.s32 %s304, 1
      %p308 = scmp.eq.s32.totalorder %s20, 1
      %p309 = scmp.ne.s32.totalorder %s304, %s306
      %p310 = scmp.eq.s32.totalorder %s20, 0
      %p311 = por %p309, %p310
      %p312 = scmp.ne.s32.totalorder %s304, %s306
      %p313 = scmp.eq.s32.totalorder %s25, 1
      %p314 = por %p312, %p313
      %p315 = scmp.ne.s32.totalorder %s306, %s307
      %p316 = scmp.eq.s32.totalorder %s25, 0
      %p317 = por %p315, %p316
      %p318 = scmp.ne.s32.totalorder %s306, %s307
      %p319 = scmp.eq.s32.totalorder %s26, 1
      %p320 = por %p318, %p319
      %p322 = scmp.ne.s32.totalorder %s307, %s321
      %p323 = scmp.eq.s32.totalorder %s26, 0
      %p324 = por %p322, %p323
      %p325 = scmp.le.s32.totalorder 1, %s20
      %p326 = scmp.lt.s32.totalorder %s20, 3
      %p327 = pnand %p325, %p326
      %p328 = pneg %p327
      // Predicated region
      $region9: #{encoder_forward.1} parent=5 // pred_check
        _
      $region10: #{encoder_forward.1} parent=5 // pred_check_branch
        %330 = sbr.rel (%p327) target = $region12
      $region11: #{encoder_forward.1} parent=5 // pred_region
        %s331 = ssub.s32 %s20, 1
        // Predicated region
        $region13: #{encoder_forward.1} parent=11 // pred_check
          %p332 = pneg %p95
        $region14: #{encoder_forward.1} parent=11 // pred_check_branch
          %334 = sbr.rel (%p332) target = $region16
        $region15: #{encoder_forward.1} parent=11 // pred_region
          _
        $region16: #{encoder_forward.1} parent=11 // pred_fallthru
          _
        // Predicated region
        $region17: #{encoder_forward.1} parent=11 // pred_check
          %p335 = pneg %p116
        $region18: #{encoder_forward.1} parent=11 // pred_check_branch
          %337 = sbr.rel (%p335) target = $region20
        $region19: #{encoder_forward.1} parent=11 // pred_region
          _
        $region20: #{encoder_forward.1} parent=11 // pred_fallthru
          _
        // Predicated region
        $region21: #{encoder_forward.1} parent=11 // pred_check
          %p338 = pneg %p137
        $region22: #{encoder_forward.1} parent=11 // pred_check_branch
          %340 = sbr.rel (%p338) target = $region24
        $region23: #{encoder_forward.1} parent=11 // pred_region
          _
        $region24: #{encoder_forward.1} parent=11 // pred_fallthru
          _
        // Predicated region
        $region25: #{encoder_forward.1} parent=11 // pred_check
          %p341 = pneg %p158
        $region26: #{encoder_forward.1} parent=11 // pred_check_branch
          %343 = sbr.rel (%p341) target = $region28
        $region27: #{encoder_forward.1} parent=11 // pred_region
          _
        $region28: #{encoder_forward.1} parent=11 // pred_fallthru
          _
        // Predicated region
        $region29: #{encoder_forward.1} parent=11 // pred_check
          %p344 = pneg %p179
        $region30: #{encoder_forward.1} parent=11 // pred_check_branch
          %346 = sbr.rel (%p344) target = $region32
        $region31: #{encoder_forward.1} parent=11 // pred_region
          _
        $region32: #{encoder_forward.1} parent=11 // pred_fallthru
          _
        // Predicated region
        $region33: #{encoder_forward.1} parent=11 // pred_check
          %p347 = pneg %p200
        $region34: #{encoder_forward.1} parent=11 // pred_check_branch
          %349 = sbr.rel (%p347) target = $region36
        $region35: #{encoder_forward.1} parent=11 // pred_region
          _
        $region36: #{encoder_forward.1} parent=11 // pred_fallthru
          _
        // Predicated region
        $region37: #{encoder_forward.1} parent=11 // pred_check
          %p350 = pneg %p221
        $region38: #{encoder_forward.1} parent=11 // pred_check_branch
          %352 = sbr.rel (%p350) target = $region40
        $region39: #{encoder_forward.1} parent=11 // pred_region
          _
        $region40: #{encoder_forward.1} parent=11 // pred_fallthru
          _
        // Predicated region
        $region41: #{encoder_forward.1} parent=11 // pred_check
          %p353 = pneg %p242
        $region42: #{encoder_forward.1} parent=11 // pred_check_branch
          %355 = sbr.rel (%p353) target = $region44
        $region43: #{encoder_forward.1} parent=11 // pred_region
          _
        $region44: #{encoder_forward.1} parent=11 // pred_fallthru
          _
      $region12: #{encoder_forward.1} parent=5 // pred_fallthru
        _
      %p356 = scmp.lt.s32.totalorder %s20, 2
      // Predicated region
      $region45: #{encoder_forward.1} parent=5 // pred_check
        %p357 = pneg %p356
      $region46: #{encoder_forward.1} parent=5 // pred_check_branch
        %359 = sbr.rel (%p357) target = $region48
      $region47: #{encoder_forward.1} parent=5 // pred_region
        // Predicated region
        $region49: #{encoder_forward.1} parent=47 // pred_check
          %p360 = pneg %p40
        $region50: #{encoder_forward.1} parent=47 // pred_check_branch
          %362 = sbr.rel (%p360) target = $region52
        $region51: #{encoder_forward.1} parent=47 // pred_region
          %s363 = smul.u32 4, %s20
          %p364 = scmp.lt.s32.totalorder %s363, 7
          %s365 = scalar_select %p364, %s363, 7
          %s366 = scalar_lea.vmem %s0, %s365
          %s367 = smul.u32 4, %s20
        $region52: #{encoder_forward.1} parent=47 // pred_fallthru
          _
        // Predicated region
        $region53: #{encoder_forward.1} parent=47 // pred_check
          %p368 = pneg %p68
        $region54: #{encoder_forward.1} parent=47 // pred_check_branch
          %370 = sbr.rel (%p368) target = $region56
        $region55: #{encoder_forward.1} parent=47 // pred_region
          %s371 = ssub.s32 1, %s20
          %s372 = smul.u32 4, %s371
          %p373 = scmp.lt.s32.totalorder %s372, 7
          %s374 = scalar_select %p373, %s372, 7
          %s375 = scalar_lea.vmem %s1, %s374
          %s376 = ssub.s32 1, %s20
          %s377 = smul.u32 4, %s376
        $region56: #{encoder_forward.1} parent=47 // pred_fallthru
          _
      $region48: #{encoder_forward.1} parent=5 // pred_fallthru
        _
      %p378 = scmp.le.s32.totalorder 1, %s20
      %p379 = scmp.lt.s32.totalorder %s20, 3
      %p380 = pnand %p378, %p379
      %p381 = pneg %p380
      // Predicated region
      $region57: #{encoder_forward.1} parent=5 // pred_check
        _
      $region58: #{encoder_forward.1} parent=5 // pred_check_branch
        %383 = sbr.rel (%p380) target = $region60
      $region59: #{encoder_forward.1} parent=5 // pred_region
        %s384 = ssub.s32 %s20, 1
        %s385 = smul.u32 4, %s25
        %p386 = scmp.lt.s32.totalorder %s385, 7
        %s387 = scalar_select %p386, %s385, 7
        %s388 = scalar_lea.vmem %s0, %s387
        %p389 = pneg %p46
        %p390 = pneg %p43
        %s391 = ssub.s32 1, %s25
        %s392 = smul.u32 4, %s391
        %p393 = scmp.lt.s32.totalorder %s392, 7
        %s394 = scalar_select %p393, %s392, 7
        %s395 = scalar_lea.vmem %s1, %s394
        %p396 = pneg %p74
        %p397 = pneg %p71
        %p398 = pneg %p95
        %p399 = pneg %p92
        %p400 = pneg %p116
        %p401 = pneg %p113
        %p402 = pneg %p137
        %p403 = pneg %p134
        %p404 = pneg %p158
        %p405 = pneg %p155
        %p406 = pneg %p179
        %p407 = pneg %p176
        %p408 = pneg %p200
        %p409 = pneg %p197
        %p410 = pneg %p221
        %p411 = pneg %p218
        %p412 = pneg %p242
        %p413 = pneg %p239
        %p414 = pneg %p268
        %p415 = pneg %p265
        %s416 = smul.u32 4, %s25
        %p417 = scmp.lt.s32.totalorder %s416, 7
        %s418 = scalar_select %p417, %s416, 7
        %s419 = scalar_lea.vmem %s10, %s418
        %p420 = pneg %p296
        %p421 = pneg %p293
        %s422 = ssub.s32 1, %s25
        %s423 = smul.u32 4, %s422
        %p424 = scmp.lt.s32.totalorder %s423, 7
        %s425 = scalar_select %p424, %s423, 7
        %s426 = scalar_lea.vmem %s11, %s425
        %p427 = pneg %p317
        %p428 = pneg %p314
        %s429 = smul.u32 4, %s25
        %p430 = scmp.lt.s32.totalorder %s429, 7
        %s431 = scalar_select %p430, %s429, 7
        %s432 = scalar_lea.vmem %s0, %s431
        %s433 = smul.u32 4, %s25
        %s434 = ssub.s32 1, %s25
        %s435 = smul.u32 4, %s434
        %p436 = scmp.lt.s32.totalorder %s435, 7
        %s437 = scalar_select %p436, %s435, 7
        %s438 = scalar_lea.vmem %s1, %s437
        %s439 = ssub.s32 1, %s25
        %s440 = smul.u32 4, %s439
        %s441 = smul.u32 4, %s25
        %p442 = scmp.lt.s32.totalorder %s441, 7
        %s443 = scalar_select %p442, %s441, 7
        %s444 = scalar_lea.vmem %s10, %s443
        %s445 = smul.u32 4, %s25
        %s446 = ssub.s32 1, %s25
        %s447 = smul.u32 4, %s446
        %p448 = scmp.lt.s32.totalorder %s447, 7
        %s449 = scalar_select %p448, %s447, 7
        %s450 = scalar_lea.vmem %s11, %s449
        %s451 = ssub.s32 1, %s25
        %s452 = smul.u32 4, %s451
        %p454 = scmp.eq.s32.totalorder %s25, 0
        // Predicated region
        $region61: #{encoder_forward.1} parent=59 // pred_check
          %p455 = pneg %p454
        $region62: #{encoder_forward.1} parent=59 // pred_check_branch
          %457 = sbr.rel (%p455) target = $region64
        $region63: #{encoder_forward.1} parent=59 // pred_region
          %vm458 = vcmask 123904
          %459 = vst.msk [vmem:[#allocation2] sm:$0x3] %vm458, 0.0
          %460 = vst.msk [vmem:[#allocation2 + $0x2] sm:$0x3] %vm458, 0.0
        $region64: #{encoder_forward.1} parent=59 // pred_fallthru
          _
        %v461 = vld [vmem:[%s2] sm:$0xf]
        %v462 = vld [vmem:[%s2 + $0x4] sm:$0xf]
        %v463 = vld [vmem:[%s2 + $0x8] sm:$0xf]
        %v464 = vld [vmem:[%s2 + $0xc] sm:$0xf]
        %s465 = scalar_lea.vmem %s2, 16
        %v466 = vld [vmem:[%s465] sm:$0xf]
        %v467 = vld [vmem:[%s465 + $0x4] sm:$0xf]
        %v468 = vld [vmem:[%s465 + $0x8] sm:$0xf]
        %v469 = vld [vmem:[%s465 + $0xc] sm:$0xf]
        %s470 = scalar_lea.vmem %s2, 32
        %v471 = vld [vmem:[%s470] sm:$0xf]
        %v472 = vld [vmem:[%s470 + $0x4] sm:$0xf]
        %v473 = vld [vmem:[%s470 + $0x8] sm:$0xf]
        %v474 = vld [vmem:[%s470 + $0xc] sm:$0xf]
        %v475 = vld [vmem:[%s3] sm:$0xf]
        %v476 = vld [vmem:[%s3 + $0x4] sm:$0xf]
        %v477 = vld [vmem:[%s3 + $0x8] sm:$0xf]
        %v478 = vld [vmem:[%s3 + $0xc] sm:$0xf]
        %s479 = scalar_lea.vmem %s3, 16
        %v480 = vld [vmem:[%s479] sm:$0xf]
        %v481 = vld [vmem:[%s479 + $0x4] sm:$0xf]
        %v482 = vld [vmem:[%s479 + $0x8] sm:$0xf]
        %v483 = vld [vmem:[%s479 + $0xc] sm:$0xf]
        %s484 = scalar_lea.vmem %s3, 32
        %v485 = vld [vmem:[%s484] sm:$0xf]
        %v486 = vld [vmem:[%s484 + $0x4] sm:$0xf]
        %v487 = vld [vmem:[%s484 + $0x8] sm:$0xf]
        %v488 = vld [vmem:[%s484 + $0xc] sm:$0xf]
        %v489 = vld [vmem:[%s4] sm:$0xf]
        %v490 = vld [vmem:[%s4 + $0x4] sm:$0xf]
        %s491 = scalar_lea.vmem %s4, 8
        %v492 = vld [vmem:[%s491] sm:$0xf]
        %v493 = vld [vmem:[%s491 + $0x4] sm:$0xf]
        %s494 = scalar_lea.vmem %s4, 16
        %v495 = vld [vmem:[%s494] sm:$0xf]
        %v496 = vld [vmem:[%s494 + $0x4] sm:$0xf]
        %v497 = vld [vmem:[%s5] sm:$0xf]
        %v498 = vld [vmem:[%s5 + $0x4] sm:$0xf]
        %s499 = scalar_lea.vmem %s5, 8
        %v500 = vld [vmem:[%s499] sm:$0xf]
        %v501 = vld [vmem:[%s499 + $0x4] sm:$0xf]
        %s502 = scalar_lea.vmem %s5, 16
        %v503 = vld [vmem:[%s502] sm:$0xf]
        %v504 = vld [vmem:[%s502 + $0x4] sm:$0xf]
        %v505 = vld [vmem:[%s6] sm:$0x1]
        %s506 = scalar_lea.vmem %s6, 1
        %v507 = vld [vmem:[%s506] sm:$0x1]
        %s508 = scalar_lea.vmem %s6, 2
        %v509 = vld [vmem:[%s508] sm:$0x1]
        %v510 = vld [vmem:[%s7] sm:$0x1]
        %s511 = scalar_lea.vmem %s7, 1
        %v512 = vld [vmem:[%s511] sm:$0x1]
        %s513 = scalar_lea.vmem %s7, 2
        %v514 = vld [vmem:[%s513] sm:$0x1]
        %v515 = vld [vmem:[%s8] sm:$0x1]
        %v516 = vld [vmem:[%s9] sm:$0x1]
        %v517 = vld [vmem:[#allocation2] sm:$0x3]
        %s518 = scalar_lea.vmem [#allocation2], 2
        %v519 = vld [vmem:[%s518] sm:$0x3]
        %v520 = vld [vmem:[%s432] sm:$0x1]
        %v521 = vpack.c.bf16 %v517, %v517
        %v523 = vlaneseq
        %v524 = vshrl.u32 %v523, 7
        %v525 = vsub.s32 0, %v524
        %v526 = vrot.slane %v505, %v525
        %v532 = vunpack.c.l.b16 %v461
        %v533 = vunpack.c.l.b16 %v462
        %v534 = vunpack.c.l.b16 %v463
        %v535 = vunpack.c.l.b16 %v464
        %v536 = vpack.c.b16 %v533, %v532
        %v537 = vpack.c.b16 %v535, %v534
        %vm540 = vcmask 261120
        %v542 = vsel %vm540, %v520, 0
        %544 = vmatprep.subr.bf16.mxu0 0
        %545 = vmatpush1.bf16.msra.mxu0 %v536
        %546 = vmatprep.subr.bf16.mxu0 0
        %547 = vmatpush1.bf16.msra.mxu0 %v537
        %548 = vmatprep.subr.bf16.mxu0 0
        %549 = vmatpush1.bf16.msra.mxu0 0
        %550 = vmatprep.subr.bf16.mxu0 0
        %551 = vmatpush1.bf16.msra.mxu0 0
        %552 = vmatprep.subr.bf16.mxu0 0
        %553 = vmatpush1.bf16.msra.mxu0 0
        %554 = vmatprep.subr.bf16.mxu0 0
        %555 = vmatpush1.bf16.msra.mxu0 0
        %556 = vmatprep.subr.bf16.mxu0 0
        %557 = vmatpush1.bf16.msra.mxu0 0
        %558 = vmatprep.subr.bf16.mxu0 0
        %559 = vmatpush1.bf16.msra.mxu0 0
        %560 = vmatprep.subr.bf16.mxu0 0
        %561 = vmatpush1.bf16.msra.mxu0 0
        %562 = vmatprep.subr.bf16.mxu0 0
        %563 = vmatpush1.bf16.msra.mxu0 0
        %564 = vmatprep.subr.bf16.mxu0 0
        %565 = vmatpush1.bf16.msra.mxu0 0
        %566 = vmatprep.subr.bf16.mxu0 0
        %567 = vmatpush1.bf16.msra.mxu0 0
        %568 = vmatprep.subr.bf16.mxu0 0
        %569 = vmatpush1.bf16.msra.mxu0 0
        %570 = vmatprep.subr.bf16.mxu0 0
        %571 = vmatpush1.bf16.msra.mxu0 0
        %572 = vmatprep.subr.bf16.mxu0 0
        %573 = vmatpush1.bf16.msra.mxu0 0
        %574 = vmatprep.subr.bf16.mxu0 0
        %575 = vmatpush1.bf16.msra.mxu0 0
        %576 = vmatprep.mubr.bf16.mxu0 0
        %577 = vmatmul.mubr.bf16.gmra.mrb[0].mxu0 %v542
        %v578 = vpop.f32.mrb[0].mxu0
        %v579 = vadd.f32 %v526, %v578
        %v580 = vpop.f32.mrb[0].mxu0
        %v581 = vpop.f32.mrb[0].mxu0
        %v582 = vpop.f32.mrb[0].mxu0
        %583 = vdwg.mxu0
        %v585 = vlaneseq
        %v586 = vshrl.u32 %v585, 7
        %v587 = vsub.s32 0, %v586
        %v588 = vrot.slane %v507, %v587
        %v594 = vunpack.c.l.b16 %v466
        %v595 = vunpack.c.l.b16 %v467
        %v596 = vunpack.c.l.b16 %v468
        %v597 = vunpack.c.l.b16 %v469
        %v598 = vpack.c.b16 %v595, %v594
        %v599 = vpack.c.b16 %v597, %v596
        %602 = vmatprep.subr.bf16.mxu0 0
        %603 = vmatpush1.bf16.msra.mxu0 %v598
        %604 = vmatprep.subr.bf16.mxu0 0
        %605 = vmatpush1.bf16.msra.mxu0 %v599
        %606 = vmatprep.subr.bf16.mxu0 0
        %607 = vmatpush1.bf16.msra.mxu0 0
        %608 = vmatprep.subr.bf16.mxu0 0
        %609 = vmatpush1.bf16.msra.mxu0 0
        %610 = vmatprep.subr.bf16.mxu0 0
        %611 = vmatpush1.bf16.msra.mxu0 0
        %612 = vmatprep.subr.bf16.mxu0 0
        %613 = vmatpush1.bf16.msra.mxu0 0
        %614 = vmatprep.subr.bf16.mxu0 0
        %615 = vmatpush1.bf16.msra.mxu0 0
        %616 = vmatprep.subr.bf16.mxu0 0
        %617 = vmatpush1.bf16.msra.mxu0 0
        %618 = vmatprep.subr.bf16.mxu0 0
        %619 = vmatpush1.bf16.msra.mxu0 0
        %620 = vmatprep.subr.bf16.mxu0 0
        %621 = vmatpush1.bf16.msra.mxu0 0
        %622 = vmatprep.subr.bf16.mxu0 0
        %623 = vmatpush1.bf16.msra.mxu0 0
        %624 = vmatprep.subr.bf16.mxu0 0
        %625 = vmatpush1.bf16.msra.mxu0 0
        %626 = vmatprep.subr.bf16.mxu0 0
        %627 = vmatpush1.bf16.msra.mxu0 0
        %628 = vmatprep.subr.bf16.mxu0 0
        %629 = vmatpush1.bf16.msra.mxu0 0
        %630 = vmatprep.subr.bf16.mxu0 0
        %631 = vmatpush1.bf16.msra.mxu0 0
        %632 = vmatprep.subr.bf16.mxu0 0
        %633 = vmatpush1.bf16.msra.mxu0 0
        %634 = vmatprep.mubr.bf16.mxu0 0
        %635 = vmatmul.mubr.bf16.gmra.mrb[0].mxu0 %v542
        %v636 = vpop.f32.mrb[0].mxu0
        %v637 = vadd.f32 %v588, %v636
        %v638 = vpop.f32.mrb[0].mxu0
        %v639 = vpop.f32.mrb[0].mxu0
        %v640 = vpop.f32.mrb[0].mxu0
        %641 = vdwg.mxu0
        %v643 = vlaneseq
        %v644 = vshrl.u32 %v643, 7
        %v645 = vsub.s32 0, %v644
        %v646 = vrot.slane %v509, %v645
        %v652 = vunpack.c.l.b16 %v471
        %v653 = vunpack.c.l.b16 %v472
        %v654 = vunpack.c.l.b16 %v473
        %v655 = vunpack.c.l.b16 %v474
        %v656 = vpack.c.b16 %v653, %v652
        %v657 = vpack.c.b16 %v655, %v654
        %660 = vmatprep.subr.bf16.mxu0 0
        %661 = vmatpush1.bf16.msra.mxu0 %v656
        %662 = vmatprep.subr.bf16.mxu0 0
        %663 = vmatpush1.bf16.msra.mxu0 %v657
        %664 = vmatprep.subr.bf16.mxu0 0
        %665 = vmatpush1.bf16.msra.mxu0 0
        %666 = vmatprep.subr.bf16.mxu0 0
        %667 = vmatpush1.bf16.msra.mxu0 0
        %668 = vmatprep.subr.bf16.mxu0 0
        %669 = vmatpush1.bf16.msra.mxu0 0
        %670 = vmatprep.subr.bf16.mxu0 0
        %671 = vmatpush1.bf16.msra.mxu0 0
        %672 = vmatprep.subr.bf16.mxu0 0
        %673 = vmatpush1.bf16.msra.mxu0 0
        %674 = vmatprep.subr.bf16.mxu0 0
        %675 = vmatpush1.bf16.msra.mxu0 0
        %676 = vmatprep.subr.bf16.mxu0 0
        %677 = vmatpush1.bf16.msra.mxu0 0
        %678 = vmatprep.subr.bf16.mxu0 0
        %679 = vmatpush1.bf16.msra.mxu0 0
        %680 = vmatprep.subr.bf16.mxu0 0
        %681 = vmatpush1.bf16.msra.mxu0 0
        %682 = vmatprep.subr.bf16.mxu0 0
        %683 = vmatpush1.bf16.msra.mxu0 0
        %684 = vmatprep.subr.bf16.mxu0 0
        %685 = vmatpush1.bf16.msra.mxu0 0
        %686 = vmatprep.subr.bf16.mxu0 0
        %687 = vmatpush1.bf16.msra.mxu0 0
        %688 = vmatprep.subr.bf16.mxu0 0
        %689 = vmatpush1.bf16.msra.mxu0 0
        %690 = vmatprep.subr.bf16.mxu0 0
        %691 = vmatpush1.bf16.msra.mxu0 0
        %692 = vmatprep.mubr.bf16.mxu0 0
        %693 = vmatmul.mubr.bf16.gmra.mrb[0].mxu0 %v542
        %v694 = vpop.f32.mrb[0].mxu0
        %v695 = vadd.f32 %v646, %v694
        %v696 = vpop.f32.mrb[0].mxu0
        %v697 = vpop.f32.mrb[0].mxu0
        %v698 = vpop.f32.mrb[0].mxu0
        %699 = vdwg.mxu0
        %v702 = vunpack.c.l.b16 %v489
        %v703 = vunpack.c.l.b16 %v490
        %v704 = vpack.c.b16 %v703, %v702
        %vm706 = vcmask 130048
        %v708 = vsel %vm706, %v521, 0
        %710 = vmatprep.subr.bf16.mxu0 0
        %711 = vmatpush1.bf16.msra.mxu0 %v704
        %712 = vmatprep.subr.bf16.mxu0 0
        %713 = vmatpush1.bf16.msra.mxu0 0
        %714 = vmatprep.subr.bf16.mxu0 0
        %715 = vmatpush1.bf16.msra.mxu0 0
        %716 = vmatprep.subr.bf16.mxu0 0
        %717 = vmatpush1.bf16.msra.mxu0 0
        %718 = vmatprep.subr.bf16.mxu0 0
        %719 = vmatpush1.bf16.msra.mxu0 0
        %720 = vmatprep.subr.bf16.mxu0 0
        %721 = vmatpush1.bf16.msra.mxu0 0
        %722 = vmatprep.subr.bf16.mxu0 0
        %723 = vmatpush1.bf16.msra.mxu0 0
        %724 = vmatprep.subr.bf16.mxu0 0
        %725 = vmatpush1.bf16.msra.mxu0 0
        %726 = vmatprep.subr.bf16.mxu0 0
        %727 = vmatpush1.bf16.msra.mxu0 0
        %728 = vmatprep.subr.bf16.mxu0 0
        %729 = vmatpush1.bf16.msra.mxu0 0
        %730 = vmatprep.subr.bf16.mxu0 0
        %731 = vmatpush1.bf16.msra.mxu0 0
        %732 = vmatprep.subr.bf16.mxu0 0
        %733 = vmatpush1.bf16.msra.mxu0 0
        %734 = vmatprep.subr.bf16.mxu0 0
        %735 = vmatpush1.bf16.msra.mxu0 0
        %736 = vmatprep.subr.bf16.mxu0 0
        %737 = vmatpush1.bf16.msra.mxu0 0
        %738 = vmatprep.subr.bf16.mxu0 0
        %739 = vmatpush1.bf16.msra.mxu0 0
        %740 = vmatprep.subr.bf16.mxu0 0
        %741 = vmatpush1.bf16.msra.mxu0 0
        %742 = vmatprep.mubr.bf16.mxu0 0
        %743 = vmatmul.mubr.bf16.gmra.mrb[0].mxu0 %v708
        %v744 = vpop.f32.mrb[0].mxu0
        %v745 = vadd.f32 0.0, %v744
        %v746 = vpop.f32.mrb[0].mxu0
        %v747 = vpop.f32.mrb[0].mxu0
        %v748 = vpop.f32.mrb[0].mxu0
        %749 = vdwg.mxu0
        %v752 = vunpack.c.l.b16 %v492
        %v753 = vunpack.c.l.b16 %v493
        %v754 = vpack.c.b16 %v753, %v752
        %756 = vmatprep.subr.bf16.mxu0 0
        %757 = vmatpush1.bf16.msra.mxu0 %v754
        %758 = vmatprep.subr.bf16.mxu0 0
        %759 = vmatpush1.bf16.msra.mxu0 0
        %760 = vmatprep.subr.bf16.mxu0 0
        %761 = vmatpush1.bf16.msra.mxu0 0
        %762 = vmatprep.subr.bf16.mxu0 0
        %763 = vmatpush1.bf16.msra.mxu0 0
        %764 = vmatprep.subr.bf16.mxu0 0
        %765 = vmatpush1.bf16.msra.mxu0 0
        %766 = vmatprep.subr.bf16.mxu0 0
        %767 = vmatpush1.bf16.msra.mxu0 0
        %768 = vmatprep.subr.bf16.mxu0 0
        %769 = vmatpush1.bf16.msra.mxu0 0
        %770 = vmatprep.subr.bf16.mxu0 0
        %771 = vmatpush1.bf16.msra.mxu0 0
        %772 = vmatprep.subr.bf16.mxu0 0
        %773 = vmatpush1.bf16.msra.mxu0 0
        %774 = vmatprep.subr.bf16.mxu0 0
        %775 = vmatpush1.bf16.msra.mxu0 0
        %776 = vmatprep.subr.bf16.mxu0 0
        %777 = vmatpush1.bf16.msra.mxu0 0
        %778 = vmatprep.subr.bf16.mxu0 0
        %779 = vmatpush1.bf16.msra.mxu0 0
        %780 = vmatprep.subr.bf16.mxu0 0
        %781 = vmatpush1.bf16.msra.mxu0 0
        %782 = vmatprep.subr.bf16.mxu0 0
        %783 = vmatpush1.bf16.msra.mxu0 0
        %784 = vmatprep.subr.bf16.mxu0 0
        %785 = vmatpush1.bf16.msra.mxu0 0
        %786 = vmatprep.subr.bf16.mxu0 0
        %787 = vmatpush1.bf16.msra.mxu0 0
        %788 = vmatprep.mubr.bf16.mxu0 0
        %789 = vmatmul.mubr.bf16.gmra.mrb[0].mxu0 %v708
        %v790 = vpop.f32.mrb[0].mxu0
        %v791 = vadd.f32 0.0, %v790
        %v792 = vpop.f32.mrb[0].mxu0
        %v793 = vpop.f32.mrb[0].mxu0
        %v794 = vpop.f32.mrb[0].mxu0
        %795 = vdwg.mxu0
        %v796 = vadd.f32 %v579, %v745
        %v797 = vxor.u32 %v796, 2147483648
        %v798 = vmul.f32 %v797, 1.442695
        %v799 = vpow.pop %v798
        %v800 = vadd.f32 %v799, 1.0
        %v801 = vrcp.pop %v800
        %v802 = vmul.f32 1.0, %v801
        %v803 = vadd.f32 %v637, %v791
        %v804 = vxor.u32 %v803, 2147483648
        %v805 = vmul.f32 %v804, 1.442695
        %v806 = vpow.pop %v805
        %v807 = vadd.f32 %v806, 1.0
        %v808 = vrcp.pop %v807
        %v809 = vmul.f32 1.0, %v808
        %v811 = vlaneseq
        %v812 = vshrl.u32 %v811, 7
        %v813 = vsub.s32 0, %v812
        %v814 = vrot.slane %v515, %v813
        %v818 = vunpack.c.l.b16 %v495
        %v819 = vunpack.c.l.b16 %v496
        %v820 = vpack.c.b16 %v819, %v818
        %822 = vmatprep.subr.bf16.mxu0 0
        %823 = vmatpush1.bf16.msra.mxu0 %v820
        %824 = vmatprep.subr.bf16.mxu0 0
        %825 = vmatpush1.bf16.msra.mxu0 0
        %826 = vmatprep.subr.bf16.mxu0 0
        %827 = vmatpush1.bf16.msra.mxu0 0
        %828 = vmatprep.subr.bf16.mxu0 0
        %829 = vmatpush1.bf16.msra.mxu0 0
        %830 = vmatprep.subr.bf16.mxu0 0
        %831 = vmatpush1.bf16.msra.mxu0 0
        %832 = vmatprep.subr.bf16.mxu0 0
        %833 = vmatpush1.bf16.msra.mxu0 0
        %834 = vmatprep.subr.bf16.mxu0 0
        %835 = vmatpush1.bf16.msra.mxu0 0
        %836 = vmatprep.subr.bf16.mxu0 0
        %837 = vmatpush1.bf16.msra.mxu0 0
        %838 = vmatprep.subr.bf16.mxu0 0
        %839 = vmatpush1.bf16.msra.mxu0 0
        %840 = vmatprep.subr.bf16.mxu0 0
        %841 = vmatpush1.bf16.msra.mxu0 0
        %842 = vmatprep.subr.bf16.mxu0 0
        %843 = vmatpush1.bf16.msra.mxu0 0
        %844 = vmatprep.subr.bf16.mxu0 0
        %845 = vmatpush1.bf16.msra.mxu0 0
        %846 = vmatprep.subr.bf16.mxu0 0
        %847 = vmatpush1.bf16.msra.mxu0 0
        %848 = vmatprep.subr.bf16.mxu0 0
        %849 = vmatpush1.bf16.msra.mxu0 0
        %850 = vmatprep.subr.bf16.mxu0 0
        %851 = vmatpush1.bf16.msra.mxu0 0
        %852 = vmatprep.subr.bf16.mxu0 0
        %853 = vmatpush1.bf16.msra.mxu0 0
        %854 = vmatprep.mubr.bf16.mxu0 0
        %855 = vmatmul.mubr.bf16.gmra.mrb[0].mxu0 %v708
        %v856 = vpop.f32.mrb[0].mxu0
        %v857 = vadd.f32 %v814, %v856
        %v858 = vpop.f32.mrb[0].mxu0
        %v859 = vpop.f32.mrb[0].mxu0
        %v860 = vpop.f32.mrb[0].mxu0
        %861 = vdwg.mxu0
        %v862 = vmul.f32 %v802, %v857
        %v863 = vadd.f32 %v695, %v862
        %v864 = vtanh.pop %v863
        %v865 = vsub.f32 %v517, %v864
        %v866 = vmul.f32 %v809, %v865
        %v867 = vadd.f32 %v864, %v866
        %s868 = scalar_lea.vmem %s438, 3
        %v869 = vld [vmem:[%s868] sm:$0x1]
        %v870 = vpack.c.bf16 %v519, %v519
        %v872 = vlaneseq
        %v873 = vshrl.u32 %v872, 7
        %v874 = vsub.s32 0, %v873
        %v875 = vrot.slane %v510, %v874
        %v881 = vunpack.c.l.b16 %v475
        %v882 = vunpack.c.l.b16 %v476
        %v883 = vunpack.c.l.b16 %v477
        %v884 = vunpack.c.l.b16 %v478
        %v885 = vpack.c.b16 %v882, %v881
        %v886 = vpack.c.b16 %v884, %v883
        %v890 = vsel %vm540, %v869, 0
        %892 = vmatprep.subr.bf16.mxu0 0
        %893 = vmatpush1.bf16.msra.mxu0 %v885
        %894 = vmatprep.subr.bf16.mxu0 0
        %895 = vmatpush1.bf16.msra.mxu0 %v886
        %896 = vmatprep.subr.bf16.mxu0 0
        %897 = vmatpush1.bf16.msra.mxu0 0
        %898 = vmatprep.subr.bf16.mxu0 0
        %899 = vmatpush1.bf16.msra.mxu0 0
        %900 = vmatprep.subr.bf16.mxu0 0
        %901 = vmatpush1.bf16.msra.mxu0 0
        %902 = vmatprep.subr.bf16.mxu0 0
        %903 = vmatpush1.bf16.msra.mxu0 0
        %904 = vmatprep.subr.bf16.mxu0 0
        %905 = vmatpush1.bf16.msra.mxu0 0
        %906 = vmatprep.subr.bf16.mxu0 0
        %907 = vmatpush1.bf16.msra.mxu0 0
        %908 = vmatprep.subr.bf16.mxu0 0
        %909 = vmatpush1.bf16.msra.mxu0 0
        %910 = vmatprep.subr.bf16.mxu0 0
        %911 = vmatpush1.bf16.msra.mxu0 0
        %912 = vmatprep.subr.bf16.mxu0 0
        %913 = vmatpush1.bf16.msra.mxu0 0
        %914 = vmatprep.subr.bf16.mxu0 0
        %915 = vmatpush1.bf16.msra.mxu0 0
        %916 = vmatprep.subr.bf16.mxu0 0
        %917 = vmatpush1.bf16.msra.mxu0 0
        %918 = vmatprep.subr.bf16.mxu0 0
        %919 = vmatpush1.bf16.msra.mxu0 0
        %920 = vmatprep.subr.bf16.mxu0 0
        %921 = vmatpush1.bf16.msra.mxu0 0
        %922 = vmatprep.subr.bf16.mxu0 0
        %923 = vmatpush1.bf16.msra.mxu0 0
        %924 = vmatprep.mubr.bf16.mxu0 0
        %925 = vmatmul.mubr.bf16.gmra.mrb[0].mxu0 %v890
        %v926 = vpop.f32.mrb[0].mxu0
        %v927 = vadd.f32 %v875, %v926
        %v928 = vpop.f32.mrb[0].mxu0
        %v929 = vpop.f32.mrb[0].mxu0
        %v930 = vpop.f32.mrb[0].mxu0
        %931 = vdwg.mxu0
        %v933 = vlaneseq
        %v934 = vshrl.u32 %v933, 7
        %v935 = vsub.s32 0, %v934
        %v936 = vrot.slane %v512, %v935
        %v942 = vunpack.c.l.b16 %v480
        %v943 = vunpack.c.l.b16 %v481
        %v944 = vunpack.c.l.b16 %v482
        %v945 = vunpack.c.l.b16 %v483
        %v946 = vpack.c.b16 %v943, %v942
        %v947 = vpack.c.b16 %v945, %v944
        %950 = vmatprep.subr.bf16.mxu0 0
        %951 = vmatpush1.bf16.msra.mxu0 %v946
        %952 = vmatprep.subr.bf16.mxu0 0
        %953 = vmatpush1.bf16.msra.mxu0 %v947
        %954 = vmatprep.subr.bf16.mxu0 0
        %955 = vmatpush1.bf16.msra.mxu0 0
        %956 = vmatprep.subr.bf16.mxu0 0
        %957 = vmatpush1.bf16.msra.mxu0 0
        %958 = vmatprep.subr.bf16.mxu0 0
        %959 = vmatpush1.bf16.msra.mxu0 0
        %960 = vmatprep.subr.bf16.mxu0 0
        %961 = vmatpush1.bf16.msra.mxu0 0
        %962 = vmatprep.subr.bf16.mxu0 0
        %963 = vmatpush1.bf16.msra.mxu0 0
        %964 = vmatprep.subr.bf16.mxu0 0
        %965 = vmatpush1.bf16.msra.mxu0 0
        %966 = vmatprep.subr.bf16.mxu0 0
        %967 = vmatpush1.bf16.msra.mxu0 0
        %968 = vmatprep.subr.bf16.mxu0 0
        %969 = vmatpush1.bf16.msra.mxu0 0
        %970 = vmatprep.subr.bf16.mxu0 0
        %971 = vmatpush1.bf16.msra.mxu0 0
        %972 = vmatprep.subr.bf16.mxu0 0
        %973 = vmatpush1.bf16.msra.mxu0 0
        %974 = vmatprep.subr.bf16.mxu0 0
        %975 = vmatpush1.bf16.msra.mxu0 0
        %976 = vmatprep.subr.bf16.mxu0 0
        %977 = vmatpush1.bf16.msra.mxu0 0
        %978 = vmatprep.subr.bf16.mxu0 0
        %979 = vmatpush1.bf16.msra.mxu0 0
        %980 = vmatprep.subr.bf16.mxu0 0
        %981 = vmatpush1.bf16.msra.mxu0 0
        %982 = vmatprep.mubr.bf16.mxu0 0
        %983 = vmatmul.mubr.bf16.gmra.mrb[0].mxu0 %v890
        %v984 = vpop.f32.mrb[0].mxu0
        %v985 = vadd.f32 %v936, %v984
        %v986 = vpop.f32.mrb[0].mxu0
        %v987 = vpop.f32.mrb[0].mxu0
        %v988 = vpop.f32.mrb[0].mxu0
        %989 = vdwg.mxu0
        %v991 = vlaneseq
        %v992 = vshrl.u32 %v991, 7
        %v993 = vsub.s32 0, %v992
        %v994 = vrot.slane %v514, %v993
        %v1000 = vunpack.c.l.b16 %v485
        %v1001 = vunpack.c.l.b16 %v486
        %v1002 = vunpack.c.l.b16 %v487
        %v1003 = vunpack.c.l.b16 %v488
        %v1004 = vpack.c.b16 %v1001, %v1000
        %v1005 = vpack.c.b16 %v1003, %v1002
        %1008 = vmatprep.subr.bf16.mxu0 0
        %1009 = vmatpush1.bf16.msra.mxu0 %v1004
        %1010 = vmatprep.subr.bf16.mxu0 0
        %1011 = vmatpush1.bf16.msra.mxu0 %v1005
        %1012 = vmatprep.subr.bf16.mxu0 0
        %1013 = vmatpush1.bf16.msra.mxu0 0
        %1014 = vmatprep.subr.bf16.mxu0 0
        %1015 = vmatpush1.bf16.msra.mxu0 0
        %1016 = vmatprep.subr.bf16.mxu0 0
        %1017 = vmatpush1.bf16.msra.mxu0 0
        %1018 = vmatprep.subr.bf16.mxu0 0
        %1019 = vmatpush1.bf16.msra.mxu0 0
        %1020 = vmatprep.subr.bf16.mxu0 0
        %1021 = vmatpush1.bf16.msra.mxu0 0
        %1022 = vmatprep.subr.bf16.mxu0 0
        %1023 = vmatpush1.bf16.msra.mxu0 0
        %1024 = vmatprep.subr.bf16.mxu0 0
        %1025 = vmatpush1.bf16.msra.mxu0 0
        %1026 = vmatprep.subr.bf16.mxu0 0
        %1027 = vmatpush1.bf16.msra.mxu0 0
        %1028 = vmatprep.subr.bf16.mxu0 0
        %1029 = vmatpush1.bf16.msra.mxu0 0
        %1030 = vmatprep.subr.bf16.mxu0 0
        %1031 = vmatpush1.bf16.msra.mxu0 0
        %1032 = vmatprep.subr.bf16.mxu0 0
        %1033 = vmatpush1.bf16.msra.mxu0 0
        %1034 = vmatprep.subr.bf16.mxu0 0
        %1035 = vmatpush1.bf16.msra.mxu0 0
        %1036 = vmatprep.subr.bf16.mxu0 0
        %1037 = vmatpush1.bf16.msra.mxu0 0
        %1038 = vmatprep.subr.bf16.mxu0 0
        %1039 = vmatpush1.bf16.msra.mxu0 0
        %1040 = vmatprep.mubr.bf16.mxu0 0
        %1041 = vmatmul.mubr.bf16.gmra.mrb[0].mxu0 %v890
        %v1042 = vpop.f32.mrb[0].mxu0
        %v1043 = vadd.f32 %v994, %v1042
        %v1044 = vpop.f32.mrb[0].mxu0
        %v1045 = vpop.f32.mrb[0].mxu0
        %v1046 = vpop.f32.mrb[0].mxu0
        %1047 = vdwg.mxu0
        %v1050 = vunpack.c.l.b16 %v497
        %v1051 = vunpack.c.l.b16 %v498
        %v1052 = vpack.c.b16 %v1051, %v1050
        %v1055 = vsel %vm706, %v870, 0
        %1057 = vmatprep.subr.bf16.mxu0 0
        %1058 = vmatpush1.bf16.msra.mxu0 %v1052
        %1059 = vmatprep.subr.bf16.mxu0 0
        %1060 = vmatpush1.bf16.msra.mxu0 0
        %1061 = vmatprep.subr.bf16.mxu0 0
        %1062 = vmatpush1.bf16.msra.mxu0 0
        %1063 = vmatprep.subr.bf16.mxu0 0
        %1064 = vmatpush1.bf16.msra.mxu0 0
        %1065 = vmatprep.subr.bf16.mxu0 0
        %1066 = vmatpush1.bf16.msra.mxu0 0
        %1067 = vmatprep.subr.bf16.mxu0 0
        %1068 = vmatpush1.bf16.msra.mxu0 0
        %1069 = vmatprep.subr.bf16.mxu0 0
        %1070 = vmatpush1.bf16.msra.mxu0 0
        %1071 = vmatprep.subr.bf16.mxu0 0
        %1072 = vmatpush1.bf16.msra.mxu0 0
        %1073 = vmatprep.subr.bf16.mxu0 0
        %1074 = vmatpush1.bf16.msra.mxu0 0
        %1075 = vmatprep.subr.bf16.mxu0 0
        %1076 = vmatpush1.bf16.msra.mxu0 0
        %1077 = vmatprep.subr.bf16.mxu0 0
        %1078 = vmatpush1.bf16.msra.mxu0 0
        %1079 = vmatprep.subr.bf16.mxu0 0
        %1080 = vmatpush1.bf16.msra.mxu0 0
        %1081 = vmatprep.subr.bf16.mxu0 0
        %1082 = vmatpush1.bf16.msra.mxu0 0
        %1083 = vmatprep.subr.bf16.mxu0 0
        %1084 = vmatpush1.bf16.msra.mxu0 0
        %1085 = vmatprep.subr.bf16.mxu0 0
        %1086 = vmatpush1.bf16.msra.mxu0 0
        %1087 = vmatprep.subr.bf16.mxu0 0
        %1088 = vmatpush1.bf16.msra.mxu0 0
        %1089 = vmatprep.mubr.bf16.mxu0 0
        %1090 = vmatmul.mubr.bf16.gmra.mrb[0].mxu0 %v1055
        %v1091 = vpop.f32.mrb[0].mxu0
        %v1092 = vadd.f32 0.0, %v1091
        %v1093 = vpop.f32.mrb[0].mxu0
        %v1094 = vpop.f32.mrb[0].mxu0
        %v1095 = vpop.f32.mrb[0].mxu0
        %1096 = vdwg.mxu0
        %v1099 = vunpack.c.l.b16 %v500
        %v1100 = vunpack.c.l.b16 %v501
        %v1101 = vpack.c.b16 %v1100, %v1099
        %1103 = vmatprep.subr.bf16.mxu0 0
        %1104 = vmatpush1.bf16.msra.mxu0 %v1101
        %1105 = vmatprep.subr.bf16.mxu0 0
        %1106 = vmatpush1.bf16.msra.mxu0 0
        %1107 = vmatprep.subr.bf16.mxu0 0
        %1108 = vmatpush1.bf16.msra.mxu0 0
        %1109 = vmatprep.subr.bf16.mxu0 0
        %1110 = vmatpush1.bf16.msra.mxu0 0
        %1111 = vmatprep.subr.bf16.mxu0 0
        %1112 = vmatpush1.bf16.msra.mxu0 0
        %1113 = vmatprep.subr.bf16.mxu0 0
        %1114 = vmatpush1.bf16.msra.mxu0 0
        %1115 = vmatprep.subr.bf16.mxu0 0
        %1116 = vmatpush1.bf16.msra.mxu0 0
        %1117 = vmatprep.subr.bf16.mxu0 0
        %1118 = vmatpush1.bf16.msra.mxu0 0
        %1119 = vmatprep.subr.bf16.mxu0 0
        %1120 = vmatpush1.bf16.msra.mxu0 0
        %1121 = vmatprep.subr.bf16.mxu0 0
        %1122 = vmatpush1.bf16.msra.mxu0 0
        %1123 = vmatprep.subr.bf16.mxu0 0
        %1124 = vmatpush1.bf16.msra.mxu0 0
        %1125 = vmatprep.subr.bf16.mxu0 0
        %1126 = vmatpush1.bf16.msra.mxu0 0
        %1127 = vmatprep.subr.bf16.mxu0 0
        %1128 = vmatpush1.bf16.msra.mxu0 0
        %1129 = vmatprep.subr.bf16.mxu0 0
        %1130 = vmatpush1.bf16.msra.mxu0 0
        %1131 = vmatprep.subr.bf16.mxu0 0
        %1132 = vmatpush1.bf16.msra.mxu0 0
        %1133 = vmatprep.subr.bf16.mxu0 0
        %1134 = vmatpush1.bf16.msra.mxu0 0
        %1135 = vmatprep.mubr.bf16.mxu0 0
        %1136 = vmatmul.mubr.bf16.gmra.mrb[0].mxu0 %v1055
        %v1137 = vpop.f32.mrb[0].mxu0
        %v1138 = vadd.f32 0.0, %v1137
        %v1139 = vpop.f32.mrb[0].mxu0
        %v1140 = vpop.f32.mrb[0].mxu0
        %v1141 = vpop.f32.mrb[0].mxu0
        %1142 = vdwg.mxu0
        %v1143 = vadd.f32 %v927, %v1092
        %v1144 = vxor.u32 %v1143, 2147483648
        %v1145 = vmul.f32 %v1144, 1.442695
        %v1146 = vpow.pop %v1145
        %v1147 = vadd.f32 %v1146, 1.0
        %v1148 = vrcp.pop %v1147
        %v1149 = vmul.f32 1.0, %v1148
        %v1150 = vadd.f32 %v985, %v1138
        %v1151 = vxor.u32 %v1150, 2147483648
        %v1152 = vmul.f32 %v1151, 1.442695
        %v1153 = vpow.pop %v1152
        %v1154 = vadd.f32 %v1153, 1.0
        %v1155 = vrcp.pop %v1154
        %v1156 = vmul.f32 1.0, %v1155
        %v1158 = vlaneseq
        %v1159 = vshrl.u32 %v1158, 7
        %v1160 = vsub.s32 0, %v1159
        %v1161 = vrot.slane %v516, %v1160
        %v1165 = vunpack.c.l.b16 %v503
        %v1166 = vunpack.c.l.b16 %v504
        %v1167 = vpack.c.b16 %v1166, %v1165
        %1169 = vmatprep.subr.bf16.mxu0 0
        %1170 = vmatpush1.bf16.msra.mxu0 %v1167
        %1171 = vmatprep.subr.bf16.mxu0 0
        %1172 = vmatpush1.bf16.msra.mxu0 0
        %1173 = vmatprep.subr.bf16.mxu0 0
        %1174 = vmatpush1.bf16.msra.mxu0 0
        %1175 = vmatprep.subr.bf16.mxu0 0
        %1176 = vmatpush1.bf16.msra.mxu0 0
        %1177 = vmatprep.subr.bf16.mxu0 0
        %1178 = vmatpush1.bf16.msra.mxu0 0
        %1179 = vmatprep.subr.bf16.mxu0 0
        %1180 = vmatpush1.bf16.msra.mxu0 0
        %1181 = vmatprep.subr.bf16.mxu0 0
        %1182 = vmatpush1.bf16.msra.mxu0 0
        %1183 = vmatprep.subr.bf16.mxu0 0
        %1184 = vmatpush1.bf16.msra.mxu0 0
        %1185 = vmatprep.subr.bf16.mxu0 0
        %1186 = vmatpush1.bf16.msra.mxu0 0
        %1187 = vmatprep.subr.bf16.mxu0 0
        %1188 = vmatpush1.bf16.msra.mxu0 0
        %1189 = vmatprep.subr.bf16.mxu0 0
        %1190 = vmatpush1.bf16.msra.mxu0 0
        %1191 = vmatprep.subr.bf16.mxu0 0
        %1192 = vmatpush1.bf16.msra.mxu0 0
        %1193 = vmatprep.subr.bf16.mxu0 0
        %1194 = vmatpush1.bf16.msra.mxu0 0
        %1195 = vmatprep.subr.bf16.mxu0 0
        %1196 = vmatpush1.bf16.msra.mxu0 0
        %1197 = vmatprep.subr.bf16.mxu0 0
        %1198 = vmatpush1.bf16.msra.mxu0 0
        %1199 = vmatprep.subr.bf16.mxu0 0
        %1200 = vmatpush1.bf16.msra.mxu0 0
        %1201 = vmatprep.mubr.bf16.mxu0 0
        %1202 = vmatmul.mubr.bf16.gmra.mrb[0].mxu0 %v1055
        %v1203 = vpop.f32.mrb[0].mxu0
        %v1204 = vadd.f32 %v1161, %v1203
        %v1205 = vpop.f32.mrb[0].mxu0
        %v1206 = vpop.f32.mrb[0].mxu0
        %v1207 = vpop.f32.mrb[0].mxu0
        %1208 = vdwg.mxu0
        %v1209 = vmul.f32 %v1149, %v1204
        %v1210 = vadd.f32 %v1043, %v1209
        %v1211 = vtanh.pop %v1210
        %v1212 = vsub.f32 %v519, %v1211
        %v1213 = vmul.f32 %v1156, %v1212
        %v1214 = vadd.f32 %v1211, %v1213
        %v1215 = vpack.c.bf16 %v867, %v867
        %vm1216 = vcmask 122880
        %1217 = vst.msk [vmem:[%s444] sm:$0x1] %vm1216, %v1215
        %v1218 = vpack.c.bf16 %v1214, %v1214
        %s1219 = scalar_lea.vmem %s450, 3
        %1220 = vst.msk [vmem:[%s1219] sm:$0x1] %vm1216, %v1218
        %s1221 = scalar_lea.vmem %s432, 1
        %v1222 = vld [vmem:[%s1221] sm:$0x1]
        %v1224 = vsel %vm540, %v1222, 0
        %1226 = vmatprep.subr.bf16.mxu0 0
        %1227 = vmatpush1.bf16.msra.mxu0 %v536
        %1228 = vmatprep.subr.bf16.mxu0 0
        %1229 = vmatpush1.bf16.msra.mxu0 %v537
        %1230 = vmatprep.subr.bf16.mxu0 0
        %1231 = vmatpush1.bf16.msra.mxu0 0
        %1232 = vmatprep.subr.bf16.mxu0 0
        %1233 = vmatpush1.bf16.msra.mxu0 0
        %1234 = vmatprep.subr.bf16.mxu0 0
        %1235 = vmatpush1.bf16.msra.mxu0 0
        %1236 = vmatprep.subr.bf16.mxu0 0
        %1237 = vmatpush1.bf16.msra.mxu0 0
        %1238 = vmatprep.subr.bf16.mxu0 0
        %1239 = vmatpush1.bf16.msra.mxu0 0
        %1240 = vmatprep.subr.bf16.mxu0 0
        %1241 = vmatpush1.bf16.msra.mxu0 0
        %1242 = vmatprep.subr.bf16.mxu0 0
        %1243 = vmatpush1.bf16.msra.mxu0 0
        %1244 = vmatprep.subr.bf16.mxu0 0
        %1245 = vmatpush1.bf16.msra.mxu0 0
        %1246 = vmatprep.subr.bf16.mxu0 0
        %1247 = vmatpush1.bf16.msra.mxu0 0
        %1248 = vmatprep.subr.bf16.mxu0 0
        %1249 = vmatpush1.bf16.msra.mxu0 0
        %1250 = vmatprep.subr.bf16.mxu0 0
        %1251 = vmatpush1.bf16.msra.mxu0 0
        %1252 = vmatprep.subr.bf16.mxu0 0
        %1253 = vmatpush1.bf16.msra.mxu0 0
        %1254 = vmatprep.subr.bf16.mxu0 0
        %1255 = vmatpush1.bf16.msra.mxu0 0
        %1256 = vmatprep.subr.bf16.mxu0 0
        %1257 = vmatpush1.bf16.msra.mxu0 0
        %1258 = vmatprep.mubr.bf16.mxu0 0
        %1259 = vmatmul.mubr.bf16.gmra.mrb[0].mxu0 %v1224
        %v1260 = vpop.f32.mrb[0].mxu0
        %v1261 = vadd.f32 %v526, %v1260
        %v1262 = vpop.f32.mrb[0].mxu0
        %v1263 = vpop.f32.mrb[0].mxu0
        %v1264 = vpop.f32.mrb[0].mxu0
        %1265 = vdwg.mxu0
        %1266 = vmatprep.subr.bf16.mxu0 0
        %1267 = vmatpush1.bf16.msra.mxu0 %v598
        %1268 = vmatprep.subr.bf16.mxu0 0
        %1269 = vmatpush1.bf16.msra.mxu0 %v599
        %1270 = vmatprep.subr.bf16.mxu0 0
        %1271 = vmatpush1.bf16.msra.mxu0 0
        %1272 = vmatprep.subr.bf16.mxu0 0
        %1273 = vmatpush1.bf16.msra.mxu0 0
        %1274 = vmatprep.subr.bf16.mxu0 0
        %1275 = vmatpush1.bf16.msra.mxu0 0
        %1276 = vmatprep.subr.bf16.mxu0 0
        %1277 = vmatpush1.bf16.msra.mxu0 0
        %1278 = vmatprep.subr.bf16.mxu0 0
        %1279 = vmatpush1.bf16.msra.mxu0 0
        %1280 = vmatprep.subr.bf16.mxu0 0
        %1281 = vmatpush1.bf16.msra.mxu0 0
        %1282 = vmatprep.subr.bf16.mxu0 0
        %1283 = vmatpush1.bf16.msra.mxu0 0
        %1284 = vmatprep.subr.bf16.mxu0 0
        %1285 = vmatpush1.bf16.msra.mxu0 0
        %1286 = vmatprep.subr.bf16.mxu0 0
        %1287 = vmatpush1.bf16.msra.mxu0 0
        %1288 = vmatprep.subr.bf16.mxu0 0
        %1289 = vmatpush1.bf16.msra.mxu0 0
        %1290 = vmatprep.subr.bf16.mxu0 0
        %1291 = vmatpush1.bf16.msra.mxu0 0
        %1292 = vmatprep.subr.bf16.mxu0 0
        %1293 = vmatpush1.bf16.msra.mxu0 0
        %1294 = vmatprep.subr.bf16.mxu0 0
        %1295 = vmatpush1.bf16.msra.mxu0 0
        %1296 = vmatprep.subr.bf16.mxu0 0
        %1297 = vmatpush1.bf16.msra.mxu0 0
        %1298 = vmatprep.mubr.bf16.mxu0 0
        %1299 = vmatmul.mubr.bf16.gmra.mrb[0].mxu0 %v1224
        %v1300 = vpop.f32.mrb[0].mxu0
        %v1301 = vadd.f32 %v588, %v1300
        %v1302 = vpop.f32.mrb[0].mxu0
        %v1303 = vpop.f32.mrb[0].mxu0
        %v1304 = vpop.f32.mrb[0].mxu0
        %1305 = vdwg.mxu0
        %1306 = vmatprep.subr.bf16.mxu0 0
        %1307 = vmatpush1.bf16.msra.mxu0 %v656
        %1308 = vmatprep.subr.bf16.mxu0 0
        %1309 = vmatpush1.bf16.msra.mxu0 %v657
        %1310 = vmatprep.subr.bf16.mxu0 0
        %1311 = vmatpush1.bf16.msra.mxu0 0
        %1312 = vmatprep.subr.bf16.mxu0 0
        %1313 = vmatpush1.bf16.msra.mxu0 0
        %1314 = vmatprep.subr.bf16.mxu0 0
        %1315 = vmatpush1.bf16.msra.mxu0 0
        %1316 = vmatprep.subr.bf16.mxu0 0
        %1317 = vmatpush1.bf16.msra.mxu0 0
        %1318 = vmatprep.subr.bf16.mxu0 0
        %1319 = vmatpush1.bf16.msra.mxu0 0
        %1320 = vmatprep.subr.bf16.mxu0 0
        %1321 = vmatpush1.bf16.msra.mxu0 0
        %1322 = vmatprep.subr.bf16.mxu0 0
        %1323 = vmatpush1.bf16.msra.mxu0 0
        %1324 = vmatprep.subr.bf16.mxu0 0
        %1325 = vmatpush1.bf16.msra.mxu0 0
        %1326 = vmatprep.subr.bf16.mxu0 0
        %1327 = vmatpush1.bf16.msra.mxu0 0
        %1328 = vmatprep.subr.bf16.mxu0 0
        %1329 = vmatpush1.bf16.msra.mxu0 0
        %1330 = vmatprep.subr.bf16.mxu0 0
        %1331 = vmatpush1.bf16.msra.mxu0 0
        %1332 = vmatprep.subr.bf16.mxu0 0
        %1333 = vmatpush1.bf16.msra.mxu0 0
        %1334 = vmatprep.subr.bf16.mxu0 0
        %1335 = vmatpush1.bf16.msra.mxu0 0
        %1336 = vmatprep.subr.bf16.mxu0 0
        %1337 = vmatpush1.bf16.msra.mxu0 0
        %1338 = vmatprep.mubr.bf16.mxu0 0
        %1339 = vmatmul.mubr.bf16.gmra.mrb[0].mxu0 %v1224
        %v1340 = vpop.f32.mrb[0].mxu0
        %v1341 = vadd.f32 %v646, %v1340
        %v1342 = vpop.f32.mrb[0].mxu0
        %v1343 = vpop.f32.mrb[0].mxu0
        %v1344 = vpop.f32.mrb[0].mxu0
        %1345 = vdwg.mxu0
        %v1347 = vsel %vm706, %v1215, 0
        %1349 = vmatprep.subr.bf16.mxu0 0
        %1350 = vmatpush1.bf16.msra.mxu0 %v704
        %1351 = vmatprep.subr.bf16.mxu0 0
        %1352 = vmatpush1.bf16.msra.mxu0 0
        %1353 = vmatprep.subr.bf16.mxu0 0
        %1354 = vmatpush1.bf16.msra.mxu0 0
        %1355 = vmatprep.subr.bf16.mxu0 0
        %1356 = vmatpush1.bf16.msra.mxu0 0
        %1357 = vmatprep.subr.bf16.mxu0 0
        %1358 = vmatpush1.bf16.msra.mxu0 0
        %1359 = vmatprep.subr.bf16.mxu0 0
        %1360 = vmatpush1.bf16.msra.mxu0 0
        %1361 = vmatprep.subr.bf16.mxu0 0
        %1362 = vmatpush1.bf16.msra.mxu0 0
        %1363 = vmatprep.subr.bf16.mxu0 0
        %1364 = vmatpush1.bf16.msra.mxu0 0
        %1365 = vmatprep.subr.bf16.mxu0 0
        %1366 = vmatpush1.bf16.msra.mxu0 0
        %1367 = vmatprep.subr.bf16.mxu0 0
        %1368 = vmatpush1.bf16.msra.mxu0 0
        %1369 = vmatprep.subr.bf16.mxu0 0
        %1370 = vmatpush1.bf16.msra.mxu0 0
        %1371 = vmatprep.subr.bf16.mxu0 0
        %1372 = vmatpush1.bf16.msra.mxu0 0
        %1373 = vmatprep.subr.bf16.mxu0 0
        %1374 = vmatpush1.bf16.msra.mxu0 0
        %1375 = vmatprep.subr.bf16.mxu0 0
        %1376 = vmatpush1.bf16.msra.mxu0 0
        %1377 = vmatprep.subr.bf16.mxu0 0
        %1378 = vmatpush1.bf16.msra.mxu0 0
        %1379 = vmatprep.subr.bf16.mxu0 0
        %1380 = vmatpush1.bf16.msra.mxu0 0
        %1381 = vmatprep.mubr.bf16.mxu0 0
        %1382 = vmatmul.mubr.bf16.gmra.mrb[0].mxu0 %v1347
        %v1383 = vpop.f32.mrb[0].mxu0
        %v1384 = vadd.f32 0.0, %v1383
        %v1385 = vpop.f32.mrb[0].mxu0
        %v1386 = vpop.f32.mrb[0].mxu0
        %v1387 = vpop.f32.mrb[0].mxu0
        %1388 = vdwg.mxu0
        %1389 = vmatprep.subr.bf16.mxu0 0
        %1390 = vmatpush1.bf16.msra.mxu0 %v754
        %1391 = vmatprep.subr.bf16.mxu0 0
        %1392 = vmatpush1.bf16.msra.mxu0 0
        %1393 = vmatprep.subr.bf16.mxu0 0
        %1394 = vmatpush1.bf16.msra.mxu0 0
        %1395 = vmatprep.subr.bf16.mxu0 0
        %1396 = vmatpush1.bf16.msra.mxu0 0
        %1397 = vmatprep.subr.bf16.mxu0 0
        %1398 = vmatpush1.bf16.msra.mxu0 0
        %1399 = vmatprep.subr.bf16.mxu0 0
        %1400 = vmatpush1.bf16.msra.mxu0 0
        %1401 = vmatprep.subr.bf16.mxu0 0
        %1402 = vmatpush1.bf16.msra.mxu0 0
        %1403 = vmatprep.subr.bf16.mxu0 0
        %1404 = vmatpush1.bf16.msra.mxu0 0
        %1405 = vmatprep.subr.bf16.mxu0 0
        %1406 = vmatpush1.bf16.msra.mxu0 0
        %1407 = vmatprep.subr.bf16.mxu0 0
        %1408 = vmatpush1.bf16.msra.mxu0 0
        %1409 = vmatprep.subr.bf16.mxu0 0
        %1410 = vmatpush1.bf16.msra.mxu0 0
        %1411 = vmatprep.subr.bf16.mxu0 0
        %1412 = vmatpush1.bf16.msra.mxu0 0
        %1413 = vmatprep.subr.bf16.mxu0 0
        %1414 = vmatpush1.bf16.msra.mxu0 0
        %1415 = vmatprep.subr.bf16.mxu0 0
        %1416 = vmatpush1.bf16.msra.mxu0 0
        %1417 = vmatprep.subr.bf16.mxu0 0
        %1418 = vmatpush1.bf16.msra.mxu0 0
        %1419 = vmatprep.subr.bf16.mxu0 0
        %1420 = vmatpush1.bf16.msra.mxu0 0
        %1421 = vmatprep.mubr.bf16.mxu0 0
        %1422 = vmatmul.mubr.bf16.gmra.mrb[0].mxu0 %v1347
        %v1423 = vpop.f32.mrb[0].mxu0
        %v1424 = vadd.f32 0.0, %v1423
        %v1425 = vpop.f32.mrb[0].mxu0
        %v1426 = vpop.f32.mrb[0].mxu0
        %v1427 = vpop.f32.mrb[0].mxu0
        %1428 = vdwg.mxu0
        %v1429 = vadd.f32 %v1261, %v1384
        %v1430 = vxor.u32 %v1429, 2147483648
        %v1431 = vmul.f32 %v1430, 1.442695
        %v1432 = vpow.pop %v1431
        %v1433 = vadd.f32 %v1432, 1.0
        %v1434 = vrcp.pop %v1433
        %v1435 = vmul.f32 1.0, %v1434
        %v1436 = vadd.f32 %v1301, %v1424
        %v1437 = vxor.u32 %v1436, 2147483648
        %v1438 = vmul.f32 %v1437, 1.442695
        %v1439 = vpow.pop %v1438
        %v1440 = vadd.f32 %v1439, 1.0
        %v1441 = vrcp.pop %v1440
        %v1442 = vmul.f32 1.0, %v1441
        %1443 = vmatprep.subr.bf16.mxu0 0
        %1444 = vmatpush1.bf16.msra.mxu0 %v820
        %1445 = vmatprep.subr.bf16.mxu0 0
        %1446 = vmatpush1.bf16.msra.mxu0 0
        %1447 = vmatprep.subr.bf16.mxu0 0
        %1448 = vmatpush1.bf16.msra.mxu0 0
        %1449 = vmatprep.subr.bf16.mxu0 0
        %1450 = vmatpush1.bf16.msra.mxu0 0
        %1451 = vmatprep.subr.bf16.mxu0 0
        %1452 = vmatpush1.bf16.msra.mxu0 0
        %1453 = vmatprep.subr.bf16.mxu0 0
        %1454 = vmatpush1.bf16.msra.mxu0 0
        %1455 = vmatprep.subr.bf16.mxu0 0
        %1456 = vmatpush1.bf16.msra.mxu0 0
        %1457 = vmatprep.subr.bf16.mxu0 0
        %1458 = vmatpush1.bf16.msra.mxu0 0
        %1459 = vmatprep.subr.bf16.mxu0 0
        %1460 = vmatpush1.bf16.msra.mxu0 0
        %1461 = vmatprep.subr.bf16.mxu0 0
        %1462 = vmatpush1.bf16.msra.mxu0 0
        %1463 = vmatprep.subr.bf16.mxu0 0
        %1464 = vmatpush1.bf16.msra.mxu0 0
        %1465 = vmatprep.subr.bf16.mxu0 0
        %1466 = vmatpush1.bf16.msra.mxu0 0
        %1467 = vmatprep.subr.bf16.mxu0 0
        %1468 = vmatpush1.bf16.msra.mxu0 0
        %1469 = vmatprep.subr.bf16.mxu0 0
        %1470 = vmatpush1.bf16.msra.mxu0 0
        %1471 = vmatprep.subr.bf16.mxu0 0
        %1472 = vmatpush1.bf16.msra.mxu0 0
        %1473 = vmatprep.subr.bf16.mxu0 0
        %1474 = vmatpush1.bf16.msra.mxu0 0
        %1475 = vmatprep.mubr.bf16.mxu0 0
        %1476 = vmatmul.mubr.bf16.gmra.mrb[0].mxu0 %v1347
        %v1477 = vpop.f32.mrb[0].mxu0
        %v1478 = vadd.f32 %v814, %v1477
        %v1479 = vpop.f32.mrb[0].mxu0
        %v1480 = vpop.f32.mrb[0].mxu0
        %v1481 = vpop.f32.mrb[0].mxu0
        %1482 = vdwg.mxu0
        %v1483 = vmul.f32 %v1435, %v1478
        %v1484 = vadd.f32 %v1341, %v1483
        %v1485 = vtanh.pop %v1484
        %v1486 = vsub.f32 %v867, %v1485
        %v1487 = vmul.f32 %v1442, %v1486
        %v1488 = vadd.f32 %v1485, %v1487
        %s1489 = scalar_lea.vmem %s438, 2
        %v1490 = vld [vmem:[%s1489] sm:$0x1]
        %v1492 = vsel %vm540, %v1490, 0
        %1494 = vmatprep.subr.bf16.mxu0 0
        %1495 = vmatpush1.bf16.msra.mxu0 %v885
        %1496 = vmatprep.subr.bf16.mxu0 0
        %1497 = vmatpush1.bf16.msra.mxu0 %v886
        %1498 = vmatprep.subr.bf16.mxu0 0
        %1499 = vmatpush1.bf16.msra.mxu0 0
        %1500 = vmatprep.subr.bf16.mxu0 0
        %1501 = vmatpush1.bf16.msra.mxu0 0
        %1502 = vmatprep.subr.bf16.mxu0 0
        %1503 = vmatpush1.bf16.msra.mxu0 0
        %1504 = vmatprep.subr.bf16.mxu0 0
        %1505 = vmatpush1.bf16.msra.mxu0 0
        %1506 = vmatprep.subr.bf16.mxu0 0
        %1507 = vmatpush1.bf16.msra.mxu0 0
        %1508 = vmatprep.subr.bf16.mxu0 0
        %1509 = vmatpush1.bf16.msra.mxu0 0
        %1510 = vmatprep.subr.bf16.mxu0 0
        %1511 = vmatpush1.bf16.msra.mxu0 0
        %1512 = vmatprep.subr.bf16.mxu0 0
        %1513 = vmatpush1.bf16.msra.mxu0 0
        %1514 = vmatprep.subr.bf16.mxu0 0
        %1515 = vmatpush1.bf16.msra.mxu0 0
        %1516 = vmatprep.subr.bf16.mxu0 0
        %1517 = vmatpush1.bf16.msra.mxu0 0
        %1518 = vmatprep.subr.bf16.mxu0 0
        %1519 = vmatpush1.bf16.msra.mxu0 0
        %1520 = vmatprep.subr.bf16.mxu0 0
        %1521 = vmatpush1.bf16.msra.mxu0 0
        %1522 = vmatprep.subr.bf16.mxu0 0
        %1523 = vmatpush1.bf16.msra.mxu0 0
        %1524 = vmatprep.subr.bf16.mxu0 0
        %1525 = vmatpush1.bf16.msra.mxu0 0
        %1526 = vmatprep.mubr.bf16.mxu0 0
        %1527 = vmatmul.mubr.bf16.gmra.mrb[0].mxu0 %v1492
        %v1528 = vpop.f32.mrb[0].mxu0
        %v1529 = vadd.f32 %v875, %v1528
        %v1530 = vpop.f32.mrb[0].mxu0
        %v1531 = vpop.f32.mrb[0].mxu0
        %v1532 = vpop.f32.mrb[0].mxu0
        %1533 = vdwg.mxu0
        %1534 = vmatprep.subr.bf16.mxu0 0
        %1535 = vmatpush1.bf16.msra.mxu0 %v946
        %1536 = vmatprep.subr.bf16.mxu0 0
        %1537 = vmatpush1.bf16.msra.mxu0 %v947
        %1538 = vmatprep.subr.bf16.mxu0 0
        %1539 = vmatpush1.bf16.msra.mxu0 0
        %1540 = vmatprep.subr.bf16.mxu0 0
        %1541 = vmatpush1.bf16.msra.mxu0 0
        %1542 = vmatprep.subr.bf16.mxu0 0
        %1543 = vmatpush1.bf16.msra.mxu0 0
        %1544 = vmatprep.subr.bf16.mxu0 0
        %1545 = vmatpush1.bf16.msra.mxu0 0
        %1546 = vmatprep.subr.bf16.mxu0 0
        %1547 = vmatpush1.bf16.msra.mxu0 0
        %1548 = vmatprep.subr.bf16.mxu0 0
        %1549 = vmatpush1.bf16.msra.mxu0 0
        %1550 = vmatprep.subr.bf16.mxu0 0
        %1551 = vmatpush1.bf16.msra.mxu0 0
        %1552 = vmatprep.subr.bf16.mxu0 0
        %1553 = vmatpush1.bf16.msra.mxu0 0
        %1554 = vmatprep.subr.bf16.mxu0 0
        %1555 = vmatpush1.bf16.msra.mxu0 0
        %1556 = vmatprep.subr.bf16.mxu0 0
        %1557 = vmatpush1.bf16.msra.mxu0 0
        %1558 = vmatprep.subr.bf16.mxu0 0
        %1559 = vmatpush1.bf16.msra.mxu0 0
        %1560 = vmatprep.subr.bf16.mxu0 0
        %1561 = vmatpush1.bf16.msra.mxu0 0
        %1562 = vmatprep.subr.bf16.mxu0 0
        %1563 = vmatpush1.bf16.msra.mxu0 0
        %1564 = vmatprep.subr.bf16.mxu0 0
        %1565 = vmatpush1.bf16.msra.mxu0 0
        %1566 = vmatprep.mubr.bf16.mxu0 0
        %1567 = vmatmul.mubr.bf16.gmra.mrb[0].mxu0 %v1492
        %v1568 = vpop.f32.mrb[0].mxu0
        %v1569 = vadd.f32 %v936, %v1568
        %v1570 = vpop.f32.mrb[0].mxu0
        %v1571 = vpop.f32.mrb[0].mxu0
        %v1572 = vpop.f32.mrb[0].mxu0
        %1573 = vdwg.mxu0
        %1574 = vmatprep.subr.bf16.mxu0 0
        %1575 = vmatpush1.bf16.msra.mxu0 %v1004
        %1576 = vmatprep.subr.bf16.mxu0 0
        %1577 = vmatpush1.bf16.msra.mxu0 %v1005
        %1578 = vmatprep.subr.bf16.mxu0 0
        %1579 = vmatpush1.bf16.msra.mxu0 0
        %1580 = vmatprep.subr.bf16.mxu0 0
        %1581 = vmatpush1.bf16.msra.mxu0 0
        %1582 = vmatprep.subr.bf16.mxu0 0
        %1583 = vmatpush1.bf16.msra.mxu0 0
        %1584 = vmatprep.subr.bf16.mxu0 0
        %1585 = vmatpush1.bf16.msra.mxu0 0
        %1586 = vmatprep.subr.bf16.mxu0 0
        %1587 = vmatpush1.bf16.msra.mxu0 0
        %1588 = vmatprep.subr.bf16.mxu0 0
        %1589 = vmatpush1.bf16.msra.mxu0 0
        %1590 = vmatprep.subr.bf16.mxu0 0
        %1591 = vmatpush1.bf16.msra.mxu0 0
        %1592 = vmatprep.subr.bf16.mxu0 0
        %1593 = vmatpush1.bf16.msra.mxu0 0
        %1594 = vmatprep.subr.bf16.mxu0 0
        %1595 = vmatpush1.bf16.msra.mxu0 0
        %1596 = vmatprep.subr.bf16.mxu0 0
        %1597 = vmatpush1.bf16.msra.mxu0 0
        %1598 = vmatprep.subr.bf16.mxu0 0
        %1599 = vmatpush1.bf16.msra.mxu0 0
        %1600 = vmatprep.subr.bf16.mxu0 0
        %1601 = vmatpush1.bf16.msra.mxu0 0
        %1602 = vmatprep.subr.bf16.mxu0 0
        %1603 = vmatpush1.bf16.msra.mxu0 0
        %1604 = vmatprep.subr.bf16.mxu0 0
        %1605 = vmatpush1.bf16.msra.mxu0 0
        %1606 = vmatprep.mubr.bf16.mxu0 0
        %1607 = vmatmul.mubr.bf16.gmra.mrb[0].mxu0 %v1492
        %v1608 = vpop.f32.mrb[0].mxu0
        %v1609 = vadd.f32 %v994, %v1608
        %v1610 = vpop.f32.mrb[0].mxu0
        %v1611 = vpop.f32.mrb[0].mxu0
        %v1612 = vpop.f32.mrb[0].mxu0
        %1613 = vdwg.mxu0
        %v1615 = vsel %vm706, %v1218, 0
        %1617 = vmatprep.subr.bf16.mxu0 0
        %1618 = vmatpush1.bf16.msra.mxu0 %v1052
        %1619 = vmatprep.subr.bf16.mxu0 0
        %1620 = vmatpush1.bf16.msra.mxu0 0
        %1621 = vmatprep.subr.bf16.mxu0 0
        %1622 = vmatpush1.bf16.msra.mxu0 0
        %1623 = vmatprep.subr.bf16.mxu0 0
        %1624 = vmatpush1.bf16.msra.mxu0 0
        %1625 = vmatprep.subr.bf16.mxu0 0
        %1626 = vmatpush1.bf16.msra.mxu0 0
        %1627 = vmatprep.subr.bf16.mxu0 0
        %1628 = vmatpush1.bf16.msra.mxu0 0
        %1629 = vmatprep.subr.bf16.mxu0 0
        %1630 = vmatpush1.bf16.msra.mxu0 0
        %1631 = vmatprep.subr.bf16.mxu0 0
        %1632 = vmatpush1.bf16.msra.mxu0 0
        %1633 = vmatprep.subr.bf16.mxu0 0
        %1634 = vmatpush1.bf16.msra.mxu0 0
        %1635 = vmatprep.subr.bf16.mxu0 0
        %1636 = vmatpush1.bf16.msra.mxu0 0
        %1637 = vmatprep.subr.bf16.mxu0 0
        %1638 = vmatpush1.bf16.msra.mxu0 0
        %1639 = vmatprep.subr.bf16.mxu0 0
        %1640 = vmatpush1.bf16.msra.mxu0 0
        %1641 = vmatprep.subr.bf16.mxu0 0
        %1642 = vmatpush1.bf16.msra.mxu0 0
        %1643 = vmatprep.subr.bf16.mxu0 0
        %1644 = vmatpush1.bf16.msra.mxu0 0
        %1645 = vmatprep.subr.bf16.mxu0 0
        %1646 = vmatpush1.bf16.msra.mxu0 0
        %1647 = vmatprep.subr.bf16.mxu0 0
        %1648 = vmatpush1.bf16.msra.mxu0 0
        %1649 = vmatprep.mubr.bf16.mxu0 0
        %1650 = vmatmul.mubr.bf16.gmra.mrb[0].mxu0 %v1615
        %v1651 = vpop.f32.mrb[0].mxu0
        %v1652 = vadd.f32 0.0, %v1651
        %v1653 = vpop.f32.mrb[0].mxu0
        %v1654 = vpop.f32.mrb[0].mxu0
        %v1655 = vpop.f32.mrb[0].mxu0
        %1656 = vdwg.mxu0
        %1657 = vmatprep.subr.bf16.mxu0 0
        %1658 = vmatpush1.bf16.msra.mxu0 %v1101
        %1659 = vmatprep.subr.bf16.mxu0 0
        %1660 = vmatpush1.bf16.msra.mxu0 0
        %1661 = vmatprep.subr.bf16.mxu0 0
        %1662 = vmatpush1.bf16.msra.mxu0 0
        %1663 = vmatprep.subr.bf16.mxu0 0
        %1664 = vmatpush1.bf16.msra.mxu0 0
        %1665 = vmatprep.subr.bf16.mxu0 0
        %1666 = vmatpush1.bf16.msra.mxu0 0
        %1667 = vmatprep.subr.bf16.mxu0 0
        %1668 = vmatpush1.bf16.msra.mxu0 0
        %1669 = vmatprep.subr.bf16.mxu0 0
        %1670 = vmatpush1.bf16.msra.mxu0 0
        %1671 = vmatprep.subr.bf16.mxu0 0
        %1672 = vmatpush1.bf16.msra.mxu0 0
        %1673 = vmatprep.subr.bf16.mxu0 0
        %1674 = vmatpush1.bf16.msra.mxu0 0
        %1675 = vmatprep.subr.bf16.mxu0 0
        %1676 = vmatpush1.bf16.msra.mxu0 0
        %1677 = vmatprep.subr.bf16.mxu0 0
        %1678 = vmatpush1.bf16.msra.mxu0 0
        %1679 = vmatprep.subr.bf16.mxu0 0
        %1680 = vmatpush1.bf16.msra.mxu0 0
        %1681 = vmatprep.subr.bf16.mxu0 0
        %1682 = vmatpush1.bf16.msra.mxu0 0
        %1683 = vmatprep.subr.bf16.mxu0 0
        %1684 = vmatpush1.bf16.msra.mxu0 0
        %1685 = vmatprep.subr.bf16.mxu0 0
        %1686 = vmatpush1.bf16.msra.mxu0 0
        %1687 = vmatprep.subr.bf16.mxu0 0
        %1688 = vmatpush1.bf16.msra.mxu0 0
        %1689 = vmatprep.mubr.bf16.mxu0 0
        %1690 = vmatmul.mubr.bf16.gmra.mrb[0].mxu0 %v1615
        %v1691 = vpop.f32.mrb[0].mxu0
        %v1692 = vadd.f32 0.0, %v1691
        %v1693 = vpop.f32.mrb[0].mxu0
        %v1694 = vpop.f32.mrb[0].mxu0
        %v1695 = vpop.f32.mrb[0].mxu0
        %1696 = vdwg.mxu0
        %v1697 = vadd.f32 %v1529, %v1652
        %v1698 = vxor.u32 %v1697, 2147483648
        %v1699 = vmul.f32 %v1698, 1.442695
        %v1700 = vpow.pop %v1699
        %v1701 = vadd.f32 %v1700, 1.0
        %v1702 = vrcp.pop %v1701
        %v1703 = vmul.f32 1.0, %v1702
        %v1704 = vadd.f32 %v1569, %v1692
        %v1705 = vxor.u32 %v1704, 2147483648
        %v1706 = vmul.f32 %v1705, 1.442695
        %v1707 = vpow.pop %v1706
        %v1708 = vadd.f32 %v1707, 1.0
        %v1709 = vrcp.pop %v1708
        %v1710 = vmul.f32 1.0, %v1709
        %1711 = vmatprep.subr.bf16.mxu0 0
        %1712 = vmatpush1.bf16.msra.mxu0 %v1167
        %1713 = vmatprep.subr.bf16.mxu0 0
        %1714 = vmatpush1.bf16.msra.mxu0 0
        %1715 = vmatprep.subr.bf16.mxu0 0
        %1716 = vmatpush1.bf16.msra.mxu0 0
        %1717 = vmatprep.subr.bf16.mxu0 0
        %1718 = vmatpush1.bf16.msra.mxu0 0
        %1719 = vmatprep.subr.bf16.mxu0 0
        %1720 = vmatpush1.bf16.msra.mxu0 0
        %1721 = vmatprep.subr.bf16.mxu0 0
        %1722 = vmatpush1.bf16.msra.mxu0 0
        %1723 = vmatprep.subr.bf16.mxu0 0
        %1724 = vmatpush1.bf16.msra.mxu0 0
        %1725 = vmatprep.subr.bf16.mxu0 0
        %1726 = vmatpush1.bf16.msra.mxu0 0
        %1727 = vmatprep.subr.bf16.mxu0 0
        %1728 = vmatpush1.bf16.msra.mxu0 0
        %1729 = vmatprep.subr.bf16.mxu0 0
        %1730 = vmatpush1.bf16.msra.mxu0 0
        %1731 = vmatprep.subr.bf16.mxu0 0
        %1732 = vmatpush1.bf16.msra.mxu0 0
        %1733 = vmatprep.subr.bf16.mxu0 0
        %1734 = vmatpush1.bf16.msra.mxu0 0
        %1735 = vmatprep.subr.bf16.mxu0 0
        %1736 = vmatpush1.bf16.msra.mxu0 0
        %1737 = vmatprep.subr.bf16.mxu0 0
        %1738 = vmatpush1.bf16.msra.mxu0 0
        %1739 = vmatprep.subr.bf16.mxu0 0
        %1740 = vmatpush1.bf16.msra.mxu0 0
        %1741 = vmatprep.subr.bf16.mxu0 0
        %1742 = vmatpush1.bf16.msra.mxu0 0
        %1743 = vmatprep.mubr.bf16.mxu0 0
        %1744 = vmatmul.mubr.bf16.gmra.mrb[0].mxu0 %v1615
        %v1745 = vpop.f32.mrb[0].mxu0
        %v1746 = vadd.f32 %v1161, %v1745
        %v1747 = vpop.f32.mrb[0].mxu0
        %v1748 = vpop.f32.mrb[0].mxu0
        %v1749 = vpop.f32.mrb[0].mxu0
        %1750 = vdwg.mxu0
        %v1751 = vmul.f32 %v1703, %v1746
        %v1752 = vadd.f32 %v1609, %v1751
        %v1753 = vtanh.pop %v1752
        %v1754 = vsub.f32 %v1214, %v1753
        %v1755 = vmul.f32 %v1710, %v1754
        %v1756 = vadd.f32 %v1753, %v1755
        %v1757 = vpack.c.bf16 %v1488, %v1488
        %s1758 = scalar_lea.vmem %s444, 1
        %1759 = vst.msk [vmem:[%s1758] sm:$0x1] %vm1216, %v1757
        %v1760 = vpack.c.bf16 %v1756, %v1756
        %s1761 = scalar_lea.vmem %s450, 2
        %1762 = vst.msk [vmem:[%s1761] sm:$0x1] %vm1216, %v1760
        %s1763 = scalar_lea.vmem %s432, 2
        %v1764 = vld [vmem:[%s1763] sm:$0x1]
        %v1766 = vsel %vm540, %v1764, 0
        %1768 = vmatprep.subr.bf16.mxu0 0
        %1769 = vmatpush1.bf16.msra.mxu0 %v536
        %1770 = vmatprep.subr.bf16.mxu0 0
        %1771 = vmatpush1.bf16.msra.mxu0 %v537
        %1772 = vmatprep.subr.bf16.mxu0 0
        %1773 = vmatpush1.bf16.msra.mxu0 0
        %1774 = vmatprep.subr.bf16.mxu0 0
        %1775 = vmatpush1.bf16.msra.mxu0 0
        %1776 = vmatprep.subr.bf16.mxu0 0
        %1777 = vmatpush1.bf16.msra.mxu0 0
        %1778 = vmatprep.subr.bf16.mxu0 0
        %1779 = vmatpush1.bf16.msra.mxu0 0
        %1780 = vmatprep.subr.bf16.mxu0 0
        %1781 = vmatpush1.bf16.msra.mxu0 0
        %1782 = vmatprep.subr.bf16.mxu0 0
        %1783 = vmatpush1.bf16.msra.mxu0 0
        %1784 = vmatprep.subr.bf16.mxu0 0
        %1785 = vmatpush1.bf16.msra.mxu0 0
        %1786 = vmatprep.subr.bf16.mxu0 0
        %1787 = vmatpush1.bf16.msra.mxu0 0
        %1788 = vmatprep.subr.bf16.mxu0 0
        %1789 = vmatpush1.bf16.msra.mxu0 0
        %1790 = vmatprep.subr.bf16.mxu0 0
        %1791 = vmatpush1.bf16.msra.mxu0 0
        %1792 = vmatprep.subr.bf16.mxu0 0
        %1793 = vmatpush1.bf16.msra.mxu0 0
        %1794 = vmatprep.subr.bf16.mxu0 0
        %1795 = vmatpush1.bf16.msra.mxu0 0
        %1796 = vmatprep.subr.bf16.mxu0 0
        %1797 = vmatpush1.bf16.msra.mxu0 0
        %1798 = vmatprep.subr.bf16.mxu0 0
        %1799 = vmatpush1.bf16.msra.mxu0 0
        %1800 = vmatprep.mubr.bf16.mxu0 0
        %1801 = vmatmul.mubr.bf16.gmra.mrb[0].mxu0 %v1766
        %v1802 = vpop.f32.mrb[0].mxu0
        %v1803 = vadd.f32 %v526, %v1802
        %v1804 = vpop.f32.mrb[0].mxu0
        %v1805 = vpop.f32.mrb[0].mxu0
        %v1806 = vpop.f32.mrb[0].mxu0
        %1807 = vdwg.mxu0
        %1808 = vmatprep.subr.bf16.mxu0 0
        %1809 = vmatpush1.bf16.msra.mxu0 %v598
        %1810 = vmatprep.subr.bf16.mxu0 0
        %1811 = vmatpush1.bf16.msra.mxu0 %v599
        %1812 = vmatprep.subr.bf16.mxu0 0
        %1813 = vmatpush1.bf16.msra.mxu0 0
        %1814 = vmatprep.subr.bf16.mxu0 0
        %1815 = vmatpush1.bf16.msra.mxu0 0
        %1816 = vmatprep.subr.bf16.mxu0 0
        %1817 = vmatpush1.bf16.msra.mxu0 0
        %1818 = vmatprep.subr.bf16.mxu0 0
        %1819 = vmatpush1.bf16.msra.mxu0 0
        %1820 = vmatprep.subr.bf16.mxu0 0
        %1821 = vmatpush1.bf16.msra.mxu0 0
        %1822 = vmatprep.subr.bf16.mxu0 0
        %1823 = vmatpush1.bf16.msra.mxu0 0
        %1824 = vmatprep.subr.bf16.mxu0 0
        %1825 = vmatpush1.bf16.msra.mxu0 0
        %1826 = vmatprep.subr.bf16.mxu0 0
        %1827 = vmatpush1.bf16.msra.mxu0 0
        %1828 = vmatprep.subr.bf16.mxu0 0
        %1829 = vmatpush1.bf16.msra.mxu0 0
        %1830 = vmatprep.subr.bf16.mxu0 0
        %1831 = vmatpush1.bf16.msra.mxu0 0
        %1832 = vmatprep.subr.bf16.mxu0 0
        %1833 = vmatpush1.bf16.msra.mxu0 0
        %1834 = vmatprep.subr.bf16.mxu0 0
        %1835 = vmatpush1.bf16.msra.mxu0 0
        %1836 = vmatprep.subr.bf16.mxu0 0
        %1837 = vmatpush1.bf16.msra.mxu0 0
        %1838 = vmatprep.subr.bf16.mxu0 0
        %1839 = vmatpush1.bf16.msra.mxu0 0
        %1840 = vmatprep.mubr.bf16.mxu0 0
        %1841 = vmatmul.mubr.bf16.gmra.mrb[0].mxu0 %v1766
        %v1842 = vpop.f32.mrb[0].mxu0
        %v1843 = vadd.f32 %v588, %v1842
        %v1844 = vpop.f32.mrb[0].mxu0
        %v1845 = vpop.f32.mrb[0].mxu0
        %v1846 = vpop.f32.mrb[0].mxu0
        %1847 = vdwg.mxu0
        %1848 = vmatprep.subr.bf16.mxu0 0
        %1849 = vmatpush1.bf16.msra.mxu0 %v656
        %1850 = vmatprep.subr.bf16.mxu0 0
        %1851 = vmatpush1.bf16.msra.mxu0 %v657
        %1852 = vmatprep.subr.bf16.mxu0 0
        %1853 = vmatpush1.bf16.msra.mxu0 0
        %1854 = vmatprep.subr.bf16.mxu0 0
        %1855 = vmatpush1.bf16.msra.mxu0 0
        %1856 = vmatprep.subr.bf16.mxu0 0
        %1857 = vmatpush1.bf16.msra.mxu0 0
        %1858 = vmatprep.subr.bf16.mxu0 0
        %1859 = vmatpush1.bf16.msra.mxu0 0
        %1860 = vmatprep.subr.bf16.mxu0 0
        %1861 = vmatpush1.bf16.msra.mxu0 0
        %1862 = vmatprep.subr.bf16.mxu0 0
        %1863 = vmatpush1.bf16.msra.mxu0 0
        %1864 = vmatprep.subr.bf16.mxu0 0
        %1865 = vmatpush1.bf16.msra.mxu0 0
        %1866 = vmatprep.subr.bf16.mxu0 0
        %1867 = vmatpush1.bf16.msra.mxu0 0
        %1868 = vmatprep.subr.bf16.mxu0 0
        %1869 = vmatpush1.bf16.msra.mxu0 0
        %1870 = vmatprep.subr.bf16.mxu0 0
        %1871 = vmatpush1.bf16.msra.mxu0 0
        %1872 = vmatprep.subr.bf16.mxu0 0
        %1873 = vmatpush1.bf16.msra.mxu0 0
        %1874 = vmatprep.subr.bf16.mxu0 0
        %1875 = vmatpush1.bf16.msra.mxu0 0
        %1876 = vmatprep.subr.bf16.mxu0 0
        %1877 = vmatpush1.bf16.msra.mxu0 0
        %1878 = vmatprep.subr.bf16.mxu0 0
        %1879 = vmatpush1.bf16.msra.mxu0 0
        %1880 = vmatprep.mubr.bf16.mxu0 0
        %1881 = vmatmul.mubr.bf16.gmra.mrb[0].mxu0 %v1766
        %v1882 = vpop.f32.mrb[0].mxu0
        %v1883 = vadd.f32 %v646, %v1882
        %v1884 = vpop.f32.mrb[0].mxu0
        %v1885 = vpop.f32.mrb[0].mxu0
        %v1886 = vpop.f32.mrb[0].mxu0
        %1887 = vdwg.mxu0
        %v1889 = vsel %vm706, %v1757, 0
        %1891 = vmatprep.subr.bf16.mxu0 0
        %1892 = vmatpush1.bf16.msra.mxu0 %v704
        %1893 = vmatprep.subr.bf16.mxu0 0
        %1894 = vmatpush1.bf16.msra.mxu0 0
        %1895 = vmatprep.subr.bf16.mxu0 0
        %1896 = vmatpush1.bf16.msra.mxu0 0
        %1897 = vmatprep.subr.bf16.mxu0 0
        %1898 = vmatpush1.bf16.msra.mxu0 0
        %1899 = vmatprep.subr.bf16.mxu0 0
        %1900 = vmatpush1.bf16.msra.mxu0 0
        %1901 = vmatprep.subr.bf16.mxu0 0
        %1902 = vmatpush1.bf16.msra.mxu0 0
        %1903 = vmatprep.subr.bf16.mxu0 0
        %1904 = vmatpush1.bf16.msra.mxu0 0
        %1905 = vmatprep.subr.bf16.mxu0 0
        %1906 = vmatpush1.bf16.msra.mxu0 0
        %1907 = vmatprep.subr.bf16.mxu0 0
        %1908 = vmatpush1.bf16.msra.mxu0 0
        %1909 = vmatprep.subr.bf16.mxu0 0
        %1910 = vmatpush1.bf16.msra.mxu0 0
        %1911 = vmatprep.subr.bf16.mxu0 0
        %1912 = vmatpush1.bf16.msra.mxu0 0
        %1913 = vmatprep.subr.bf16.mxu0 0
        %1914 = vmatpush1.bf16.msra.mxu0 0
        %1915 = vmatprep.subr.bf16.mxu0 0
        %1916 = vmatpush1.bf16.msra.mxu0 0
        %1917 = vmatprep.subr.bf16.mxu0 0
        %1918 = vmatpush1.bf16.msra.mxu0 0
        %1919 = vmatprep.subr.bf16.mxu0 0
        %1920 = vmatpush1.bf16.msra.mxu0 0
        %1921 = vmatprep.subr.bf16.mxu0 0
        %1922 = vmatpush1.bf16.msra.mxu0 0
        %1923 = vmatprep.mubr.bf16.mxu0 0
        %1924 = vmatmul.mubr.bf16.gmra.mrb[0].mxu0 %v1889
        %v1925 = vpop.f32.mrb[0].mxu0
        %v1926 = vadd.f32 0.0, %v1925
        %v1927 = vpop.f32.mrb[0].mxu0
        %v1928 = vpop.f32.mrb[0].mxu0
        %v1929 = vpop.f32.mrb[0].mxu0
        %1930 = vdwg.mxu0
        %1931 = vmatprep.subr.bf16.mxu0 0
        %1932 = vmatpush1.bf16.msra.mxu0 %v754
        %1933 = vmatprep.subr.bf16.mxu0 0
        %1934 = vmatpush1.bf16.msra.mxu0 0
        %1935 = vmatprep.subr.bf16.mxu0 0
        %1936 = vmatpush1.bf16.msra.mxu0 0
        %1937 = vmatprep.subr.bf16.mxu0 0
        %1938 = vmatpush1.bf16.msra.mxu0 0
        %1939 = vmatprep.subr.bf16.mxu0 0
        %1940 = vmatpush1.bf16.msra.mxu0 0
        %1941 = vmatprep.subr.bf16.mxu0 0
        %1942 = vmatpush1.bf16.msra.mxu0 0
        %1943 = vmatprep.subr.bf16.mxu0 0
        %1944 = vmatpush1.bf16.msra.mxu0 0
        %1945 = vmatprep.subr.bf16.mxu0 0
        %1946 = vmatpush1.bf16.msra.mxu0 0
        %1947 = vmatprep.subr.bf16.mxu0 0
        %1948 = vmatpush1.bf16.msra.mxu0 0
        %1949 = vmatprep.subr.bf16.mxu0 0
        %1950 = vmatpush1.bf16.msra.mxu0 0
        %1951 = vmatprep.subr.bf16.mxu0 0
        %1952 = vmatpush1.bf16.msra.mxu0 0
        %1953 = vmatprep.subr.bf16.mxu0 0
        %1954 = vmatpush1.bf16.msra.mxu0 0
        %1955 = vmatprep.subr.bf16.mxu0 0
        %1956 = vmatpush1.bf16.msra.mxu0 0
        %1957 = vmatprep.subr.bf16.mxu0 0
        %1958 = vmatpush1.bf16.msra.mxu0 0
        %1959 = vmatprep.subr.bf16.mxu0 0
        %1960 = vmatpush1.bf16.msra.mxu0 0
        %1961 = vmatprep.subr.bf16.mxu0 0
        %1962 = vmatpush1.bf16.msra.mxu0 0
        %1963 = vmatprep.mubr.bf16.mxu0 0
        %1964 = vmatmul.mubr.bf16.gmra.mrb[0].mxu0 %v1889
        %v1965 = vpop.f32.mrb[0].mxu0
        %v1966 = vadd.f32 0.0, %v1965
        %v1967 = vpop.f32.mrb[0].mxu0
        %v1968 = vpop.f32.mrb[0].mxu0
        %v1969 = vpop.f32.mrb[0].mxu0
        %1970 = vdwg.mxu0
        %v1971 = vadd.f32 %v1803, %v1926
        %v1972 = vxor.u32 %v1971, 2147483648
        %v1973 = vmul.f32 %v1972, 1.442695
        %v1974 = vpow.pop %v1973
        %v1975 = vadd.f32 %v1974, 1.0
        %v1976 = vrcp.pop %v1975
        %v1977 = vmul.f32 1.0, %v1976
        %v1978 = vadd.f32 %v1843, %v1966
        %v1979 = vxor.u32 %v1978, 2147483648
        %v1980 = vmul.f32 %v1979, 1.442695
        %v1981 = vpow.pop %v1980
        %v1982 = vadd.f32 %v1981, 1.0
        %v1983 = vrcp.pop %v1982
        %v1984 = vmul.f32 1.0, %v1983
        %1985 = vmatprep.subr.bf16.mxu0 0
        %1986 = vmatpush1.bf16.msra.mxu0 %v820
        %1987 = vmatprep.subr.bf16.mxu0 0
        %1988 = vmatpush1.bf16.msra.mxu0 0
        %1989 = vmatprep.subr.bf16.mxu0 0
        %1990 = vmatpush1.bf16.msra.mxu0 0
        %1991 = vmatprep.subr.bf16.mxu0 0
        %1992 = vmatpush1.bf16.msra.mxu0 0
        %1993 = vmatprep.subr.bf16.mxu0 0
        %1994 = vmatpush1.bf16.msra.mxu0 0
        %1995 = vmatprep.subr.bf16.mxu0 0
        %1996 = vmatpush1.bf16.msra.mxu0 0
        %1997 = vmatprep.subr.bf16.mxu0 0
        %1998 = vmatpush1.bf16.msra.mxu0 0
        %1999 = vmatprep.subr.bf16.mxu0 0
        %2000 = vmatpush1.bf16.msra.mxu0 0
        %2001 = vmatprep.subr.bf16.mxu0 0
        %2002 = vmatpush1.bf16.msra.mxu0 0
        %2003 = vmatprep.subr.bf16.mxu0 0
        %2004 = vmatpush1.bf16.msra.mxu0 0
        %2005 = vmatprep.subr.bf16.mxu0 0
        %2006 = vmatpush1.bf16.msra.mxu0 0
        %2007 = vmatprep.subr.bf16.mxu0 0
        %2008 = vmatpush1.bf16.msra.mxu0 0
        %2009 = vmatprep.subr.bf16.mxu0 0
        %2010 = vmatpush1.bf16.msra.mxu0 0
        %2011 = vmatprep.subr.bf16.mxu0 0
        %2012 = vmatpush1.bf16.msra.mxu0 0
        %2013 = vmatprep.subr.bf16.mxu0 0
        %2014 = vmatpush1.bf16.msra.mxu0 0
        %2015 = vmatprep.subr.bf16.mxu0 0
        %2016 = vmatpush1.bf16.msra.mxu0 0
        %2017 = vmatprep.mubr.bf16.mxu0 0
        %2018 = vmatmul.mubr.bf16.gmra.mrb[0].mxu0 %v1889
        %v2019 = vpop.f32.mrb[0].mxu0
        %v2020 = vadd.f32 %v814, %v2019
        %v2021 = vpop.f32.mrb[0].mxu0
        %v2022 = vpop.f32.mrb[0].mxu0
        %v2023 = vpop.f32.mrb[0].mxu0
        %2024 = vdwg.mxu0
        %v2025 = vmul.f32 %v1977, %v2020
        %v2026 = vadd.f32 %v1883, %v2025
        %v2027 = vtanh.pop %v2026
        %v2028 = vsub.f32 %v1488, %v2027
        %v2029 = vmul.f32 %v1984, %v2028
        %v2030 = vadd.f32 %v2027, %v2029
        %s2031 = scalar_lea.vmem %s438, 1
        %v2032 = vld [vmem:[%s2031] sm:$0x1]
        %v2034 = vsel %vm540, %v2032, 0
        %2036 = vmatprep.subr.bf16.mxu0 0
        %2037 = vmatpush1.bf16.msra.mxu0 %v885
        %2038 = vmatprep.subr.bf16.mxu0 0
        %2039 = vmatpush1.bf16.msra.mxu0 %v886
        %2040 = vmatprep.subr.bf16.mxu0 0
        %2041 = vmatpush1.bf16.msra.mxu0 0
        %2042 = vmatprep.subr.bf16.mxu0 0
        %2043 = vmatpush1.bf16.msra.mxu0 0
        %2044 = vmatprep.subr.bf16.mxu0 0
        %2045 = vmatpush1.bf16.msra.mxu0 0
        %2046 = vmatprep.subr.bf16.mxu0 0
        %2047 = vmatpush1.bf16.msra.mxu0 0
        %2048 = vmatprep.subr.bf16.mxu0 0
        %2049 = vmatpush1.bf16.msra.mxu0 0
        %2050 = vmatprep.subr.bf16.mxu0 0
        %2051 = vmatpush1.bf16.msra.mxu0 0
        %2052 = vmatprep.subr.bf16.mxu0 0
        %2053 = vmatpush1.bf16.msra.mxu0 0
        %2054 = vmatprep.subr.bf16.mxu0 0
        %2055 = vmatpush1.bf16.msra.mxu0 0
        %2056 = vmatprep.subr.bf16.mxu0 0
        %2057 = vmatpush1.bf16.msra.mxu0 0
        %2058 = vmatprep.subr.bf16.mxu0 0
        %2059 = vmatpush1.bf16.msra.mxu0 0
        %2060 = vmatprep.subr.bf16.mxu0 0
        %2061 = vmatpush1.bf16.msra.mxu0 0
        %2062 = vmatprep.subr.bf16.mxu0 0
        %2063 = vmatpush1.bf16.msra.mxu0 0
        %2064 = vmatprep.subr.bf16.mxu0 0
        %2065 = vmatpush1.bf16.msra.mxu0 0
        %2066 = vmatprep.subr.bf16.mxu0 0
        %2067 = vmatpush1.bf16.msra.mxu0 0
        %2068 = vmatprep.mubr.bf16.mxu0 0
        %2069 = vmatmul.mubr.bf16.gmra.mrb[0].mxu0 %v2034
        %v2070 = vpop.f32.mrb[0].mxu0
        %v2071 = vadd.f32 %v875, %v2070
        %v2072 = vpop.f32.mrb[0].mxu0
        %v2073 = vpop.f32.mrb[0].mxu0
        %v2074 = vpop.f32.mrb[0].mxu0
        %2075 = vdwg.mxu0
        %2076 = vmatprep.subr.bf16.mxu0 0
        %2077 = vmatpush1.bf16.msra.mxu0 %v946
        %2078 = vmatprep.subr.bf16.mxu0 0
        %2079 = vmatpush1.bf16.msra.mxu0 %v947
        %2080 = vmatprep.subr.bf16.mxu0 0
        %2081 = vmatpush1.bf16.msra.mxu0 0
        %2082 = vmatprep.subr.bf16.mxu0 0
        %2083 = vmatpush1.bf16.msra.mxu0 0
        %2084 = vmatprep.subr.bf16.mxu0 0
        %2085 = vmatpush1.bf16.msra.mxu0 0
        %2086 = vmatprep.subr.bf16.mxu0 0
        %2087 = vmatpush1.bf16.msra.mxu0 0
        %2088 = vmatprep.subr.bf16.mxu0 0
        %2089 = vmatpush1.bf16.msra.mxu0 0
        %2090 = vmatprep.subr.bf16.mxu0 0
        %2091 = vmatpush1.bf16.msra.mxu0 0
        %2092 = vmatprep.subr.bf16.mxu0 0
        %2093 = vmatpush1.bf16.msra.mxu0 0
        %2094 = vmatprep.subr.bf16.mxu0 0
        %2095 = vmatpush1.bf16.msra.mxu0 0
        %2096 = vmatprep.subr.bf16.mxu0 0
        %2097 = vmatpush1.bf16.msra.mxu0 0
        %2098 = vmatprep.subr.bf16.mxu0 0
        %2099 = vmatpush1.bf16.msra.mxu0 0
        %2100 = vmatprep.subr.bf16.mxu0 0
        %2101 = vmatpush1.bf16.msra.mxu0 0
        %2102 = vmatprep.subr.bf16.mxu0 0
        %2103 = vmatpush1.bf16.msra.mxu0 0
        %2104 = vmatprep.subr.bf16.mxu0 0
        %2105 = vmatpush1.bf16.msra.mxu0 0
        %2106 = vmatprep.subr.bf16.mxu0 0
        %2107 = vmatpush1.bf16.msra.mxu0 0
        %2108 = vmatprep.mubr.bf16.mxu0 0
        %2109 = vmatmul.mubr.bf16.gmra.mrb[0].mxu0 %v2034
        %v2110 = vpop.f32.mrb[0].mxu0
        %v2111 = vadd.f32 %v936, %v2110
        %v2112 = vpop.f32.mrb[0].mxu0
        %v2113 = vpop.f32.mrb[0].mxu0
        %v2114 = vpop.f32.mrb[0].mxu0
        %2115 = vdwg.mxu0
        %2116 = vmatprep.subr.bf16.mxu0 0
        %2117 = vmatpush1.bf16.msra.mxu0 %v1004
        %2118 = vmatprep.subr.bf16.mxu0 0
        %2119 = vmatpush1.bf16.msra.mxu0 %v1005
        %2120 = vmatprep.subr.bf16.mxu0 0
        %2121 = vmatpush1.bf16.msra.mxu0 0
        %2122 = vmatprep.subr.bf16.mxu0 0
        %2123 = vmatpush1.bf16.msra.mxu0 0
        %2124 = vmatprep.subr.bf16.mxu0 0
        %2125 = vmatpush1.bf16.msra.mxu0 0
        %2126 = vmatprep.subr.bf16.mxu0 0
        %2127 = vmatpush1.bf16.msra.mxu0 0
        %2128 = vmatprep.subr.bf16.mxu0 0
        %2129 = vmatpush1.bf16.msra.mxu0 0
        %2130 = vmatprep.subr.bf16.mxu0 0
        %2131 = vmatpush1.bf16.msra.mxu0 0
        %2132 = vmatprep.subr.bf16.mxu0 0
        %2133 = vmatpush1.bf16.msra.mxu0 0
        %2134 = vmatprep.subr.bf16.mxu0 0
        %2135 = vmatpush1.bf16.msra.mxu0 0
        %2136 = vmatprep.subr.bf16.mxu0 0
        %2137 = vmatpush1.bf16.msra.mxu0 0
        %2138 = vmatprep.subr.bf16.mxu0 0
        %2139 = vmatpush1.bf16.msra.mxu0 0
        %2140 = vmatprep.subr.bf16.mxu0 0
        %2141 = vmatpush1.bf16.msra.mxu0 0
        %2142 = vmatprep.subr.bf16.mxu0 0
        %2143 = vmatpush1.bf16.msra.mxu0 0
        %2144 = vmatprep.subr.bf16.mxu0 0
        %2145 = vmatpush1.bf16.msra.mxu0 0
        %2146 = vmatprep.subr.bf16.mxu0 0
        %2147 = vmatpush1.bf16.msra.mxu0 0
        %2148 = vmatprep.mubr.bf16.mxu0 0
        %2149 = vmatmul.mubr.bf16.gmra.mrb[0].mxu0 %v2034
        %v2150 = vpop.f32.mrb[0].mxu0
        %v2151 = vadd.f32 %v994, %v2150
        %v2152 = vpop.f32.mrb[0].mxu0
        %v2153 = vpop.f32.mrb[0].mxu0
        %v2154 = vpop.f32.mrb[0].mxu0
        %2155 = vdwg.mxu0
        %v2157 = vsel %vm706, %v1760, 0
        %2159 = vmatprep.subr.bf16.mxu0 0
        %2160 = vmatpush1.bf16.msra.mxu0 %v1052
        %2161 = vmatprep.subr.bf16.mxu0 0
        %2162 = vmatpush1.bf16.msra.mxu0 0
        %2163 = vmatprep.subr.bf16.mxu0 0
        %2164 = vmatpush1.bf16.msra.mxu0 0
        %2165 = vmatprep.subr.bf16.mxu0 0
        %2166 = vmatpush1.bf16.msra.mxu0 0
        %2167 = vmatprep.subr.bf16.mxu0 0
        %2168 = vmatpush1.bf16.msra.mxu0 0
        %2169 = vmatprep.subr.bf16.mxu0 0
        %2170 = vmatpush1.bf16.msra.mxu0 0
        %2171 = vmatprep.subr.bf16.mxu0 0
        %2172 = vmatpush1.bf16.msra.mxu0 0
        %2173 = vmatprep.subr.bf16.mxu0 0
        %2174 = vmatpush1.bf16.msra.mxu0 0
        %2175 = vmatprep.subr.bf16.mxu0 0
        %2176 = vmatpush1.bf16.msra.mxu0 0
        %2177 = vmatprep.subr.bf16.mxu0 0
        %2178 = vmatpush1.bf16.msra.mxu0 0
        %2179 = vmatprep.subr.bf16.mxu0 0
        %2180 = vmatpush1.bf16.msra.mxu0 0
        %2181 = vmatprep.subr.bf16.mxu0 0
        %2182 = vmatpush1.bf16.msra.mxu0 0
        %2183 = vmatprep.subr.bf16.mxu0 0
        %2184 = vmatpush1.bf16.msra.mxu0 0
        %2185 = vmatprep.subr.bf16.mxu0 0
        %2186 = vmatpush1.bf16.msra.mxu0 0
        %2187 = vmatprep.subr.bf16.mxu0 0
        %2188 = vmatpush1.bf16.msra.mxu0 0
        %2189 = vmatprep.subr.bf16.mxu0 0
        %2190 = vmatpush1.bf16.msra.mxu0 0
        %2191 = vmatprep.mubr.bf16.mxu0 0
        %2192 = vmatmul.mubr.bf16.gmra.mrb[0].mxu0 %v2157
        %v2193 = vpop.f32.mrb[0].mxu0
        %v2194 = vadd.f32 0.0, %v2193
        %v2195 = vpop.f32.mrb[0].mxu0
        %v2196 = vpop.f32.mrb[0].mxu0
        %v2197 = vpop.f32.mrb[0].mxu0
        %2198 = vdwg.mxu0
        %2199 = vmatprep.subr.bf16.mxu0 0
        %2200 = vmatpush1.bf16.msra.mxu0 %v1101
        %2201 = vmatprep.subr.bf16.mxu0 0
        %2202 = vmatpush1.bf16.msra.mxu0 0
        %2203 = vmatprep.subr.bf16.mxu0 0
        %2204 = vmatpush1.bf16.msra.mxu0 0
        %2205 = vmatprep.subr.bf16.mxu0 0
        %2206 = vmatpush1.bf16.msra.mxu0 0
        %2207 = vmatprep.subr.bf16.mxu0 0
        %2208 = vmatpush1.bf16.msra.mxu0 0
        %2209 = vmatprep.subr.bf16.mxu0 0
        %2210 = vmatpush1.bf16.msra.mxu0 0
        %2211 = vmatprep.subr.bf16.mxu0 0
        %2212 = vmatpush1.bf16.msra.mxu0 0
        %2213 = vmatprep.subr.bf16.mxu0 0
        %2214 = vmatpush1.bf16.msra.mxu0 0
        %2215 = vmatprep.subr.bf16.mxu0 0
        %2216 = vmatpush1.bf16.msra.mxu0 0
        %2217 = vmatprep.subr.bf16.mxu0 0
        %2218 = vmatpush1.bf16.msra.mxu0 0
        %2219 = vmatprep.subr.bf16.mxu0 0
        %2220 = vmatpush1.bf16.msra.mxu0 0
        %2221 = vmatprep.subr.bf16.mxu0 0
        %2222 = vmatpush1.bf16.msra.mxu0 0
        %2223 = vmatprep.subr.bf16.mxu0 0
        %2224 = vmatpush1.bf16.msra.mxu0 0
        %2225 = vmatprep.subr.bf16.mxu0 0
        %2226 = vmatpush1.bf16.msra.mxu0 0
        %2227 = vmatprep.subr.bf16.mxu0 0
        %2228 = vmatpush1.bf16.msra.mxu0 0
        %2229 = vmatprep.subr.bf16.mxu0 0
        %2230 = vmatpush1.bf16.msra.mxu0 0
        %2231 = vmatprep.mubr.bf16.mxu0 0
        %2232 = vmatmul.mubr.bf16.gmra.mrb[0].mxu0 %v2157
        %v2233 = vpop.f32.mrb[0].mxu0
        %v2234 = vadd.f32 0.0, %v2233
        %v2235 = vpop.f32.mrb[0].mxu0
        %v2236 = vpop.f32.mrb[0].mxu0
        %v2237 = vpop.f32.mrb[0].mxu0
        %2238 = vdwg.mxu0
        %v2239 = vadd.f32 %v2071, %v2194
        %v2240 = vxor.u32 %v2239, 2147483648
        %v2241 = vmul.f32 %v2240, 1.442695
        %v2242 = vpow.pop %v2241
        %v2243 = vadd.f32 %v2242, 1.0
        %v2244 = vrcp.pop %v2243
        %v2245 = vmul.f32 1.0, %v2244
        %v2246 = vadd.f32 %v2111, %v2234
        %v2247 = vxor.u32 %v2246, 2147483648
        %v2248 = vmul.f32 %v2247, 1.442695
        %v2249 = vpow.pop %v2248
        %v2250 = vadd.f32 %v2249, 1.0
        %v2251 = vrcp.pop %v2250
        %v2252 = vmul.f32 1.0, %v2251
        %2253 = vmatprep.subr.bf16.mxu0 0
        %2254 = vmatpush1.bf16.msra.mxu0 %v1167
        %2255 = vmatprep.subr.bf16.mxu0 0
        %2256 = vmatpush1.bf16.msra.mxu0 0
        %2257 = vmatprep.subr.bf16.mxu0 0
        %2258 = vmatpush1.bf16.msra.mxu0 0
        %2259 = vmatprep.subr.bf16.mxu0 0
        %2260 = vmatpush1.bf16.msra.mxu0 0
        %2261 = vmatprep.subr.bf16.mxu0 0
        %2262 = vmatpush1.bf16.msra.mxu0 0
        %2263 = vmatprep.subr.bf16.mxu0 0
        %2264 = vmatpush1.bf16.msra.mxu0 0
        %2265 = vmatprep.subr.bf16.mxu0 0
        %2266 = vmatpush1.bf16.msra.mxu0 0
        %2267 = vmatprep.subr.bf16.mxu0 0
        %2268 = vmatpush1.bf16.msra.mxu0 0
        %2269 = vmatprep.subr.bf16.mxu0 0
        %2270 = vmatpush1.bf16.msra.mxu0 0
        %2271 = vmatprep.subr.bf16.mxu0 0
        %2272 = vmatpush1.bf16.msra.mxu0 0
        %2273 = vmatprep.subr.bf16.mxu0 0
        %2274 = vmatpush1.bf16.msra.mxu0 0
        %2275 = vmatprep.subr.bf16.mxu0 0
        %2276 = vmatpush1.bf16.msra.mxu0 0
        %2277 = vmatprep.subr.bf16.mxu0 0
        %2278 = vmatpush1.bf16.msra.mxu0 0
        %2279 = vmatprep.subr.bf16.mxu0 0
        %2280 = vmatpush1.bf16.msra.mxu0 0
        %2281 = vmatprep.subr.bf16.mxu0 0
        %2282 = vmatpush1.bf16.msra.mxu0 0
        %2283 = vmatprep.subr.bf16.mxu0 0
        %2284 = vmatpush1.bf16.msra.mxu0 0
        %2285 = vmatprep.mubr.bf16.mxu0 0
        %2286 = vmatmul.mubr.bf16.gmra.mrb[0].mxu0 %v2157
        %v2287 = vpop.f32.mrb[0].mxu0
        %v2288 = vadd.f32 %v1161, %v2287
        %v2289 = vpop.f32.mrb[0].mxu0
        %v2290 = vpop.f32.mrb[0].mxu0
        %v2291 = vpop.f32.mrb[0].mxu0
        %2292 = vdwg.mxu0
        %v2293 = vmul.f32 %v2245, %v2288
        %v2294 = vadd.f32 %v2151, %v2293
        %v2295 = vtanh.pop %v2294
        %v2296 = vsub.f32 %v1756, %v2295
        %v2297 = vmul.f32 %v2252, %v2296
        %v2298 = vadd.f32 %v2295, %v2297
        %v2299 = vpack.c.bf16 %v2030, %v2030
        %s2300 = scalar_lea.vmem %s444, 2
        %2301 = vst.msk [vmem:[%s2300] sm:$0x1] %vm1216, %v2299
        %v2302 = vpack.c.bf16 %v2298, %v2298
        %s2303 = scalar_lea.vmem %s450, 1
        %2304 = vst.msk [vmem:[%s2303] sm:$0x1] %vm1216, %v2302
        %s2305 = scalar_lea.vmem %s432, 3
        %v2306 = vld [vmem:[%s2305] sm:$0x1]
        %v2308 = vsel %vm540, %v2306, 0
        %2310 = vmatprep.subr.bf16.mxu0 0
        %2311 = vmatpush1.bf16.msra.mxu0 %v536
        %2312 = vmatprep.subr.bf16.mxu0 0
        %2313 = vmatpush1.bf16.msra.mxu0 %v537
        %2314 = vmatprep.subr.bf16.mxu0 0
        %2315 = vmatpush1.bf16.msra.mxu0 0
        %2316 = vmatprep.subr.bf16.mxu0 0
        %2317 = vmatpush1.bf16.msra.mxu0 0
        %2318 = vmatprep.subr.bf16.mxu0 0
        %2319 = vmatpush1.bf16.msra.mxu0 0
        %2320 = vmatprep.subr.bf16.mxu0 0
        %2321 = vmatpush1.bf16.msra.mxu0 0
        %2322 = vmatprep.subr.bf16.mxu0 0
        %2323 = vmatpush1.bf16.msra.mxu0 0
        %2324 = vmatprep.subr.bf16.mxu0 0
        %2325 = vmatpush1.bf16.msra.mxu0 0
        %2326 = vmatprep.subr.bf16.mxu0 0
        %2327 = vmatpush1.bf16.msra.mxu0 0
        %2328 = vmatprep.subr.bf16.mxu0 0
        %2329 = vmatpush1.bf16.msra.mxu0 0
        %2330 = vmatprep.subr.bf16.mxu0 0
        %2331 = vmatpush1.bf16.msra.mxu0 0
        %2332 = vmatprep.subr.bf16.mxu0 0
        %2333 = vmatpush1.bf16.msra.mxu0 0
        %2334 = vmatprep.subr.bf16.mxu0 0
        %2335 = vmatpush1.bf16.msra.mxu0 0
        %2336 = vmatprep.subr.bf16.mxu0 0
        %2337 = vmatpush1.bf16.msra.mxu0 0
        %2338 = vmatprep.subr.bf16.mxu0 0
        %2339 = vmatpush1.bf16.msra.mxu0 0
        %2340 = vmatprep.subr.bf16.mxu0 0
        %2341 = vmatpush1.bf16.msra.mxu0 0
        %2342 = vmatprep.mubr.bf16.mxu0 0
        %2343 = vmatmul.mubr.bf16.gmra.mrb[0].mxu0 %v2308
        %v2344 = vpop.f32.mrb[0].mxu0
        %v2345 = vadd.f32 %v526, %v2344
        %v2346 = vpop.f32.mrb[0].mxu0
        %v2347 = vpop.f32.mrb[0].mxu0
        %v2348 = vpop.f32.mrb[0].mxu0
        %2349 = vdwg.mxu0
        %2350 = vmatprep.subr.bf16.mxu0 0
        %2351 = vmatpush1.bf16.msra.mxu0 %v598
        %2352 = vmatprep.subr.bf16.mxu0 0
        %2353 = vmatpush1.bf16.msra.mxu0 %v599
        %2354 = vmatprep.subr.bf16.mxu0 0
        %2355 = vmatpush1.bf16.msra.mxu0 0
        %2356 = vmatprep.subr.bf16.mxu0 0
        %2357 = vmatpush1.bf16.msra.mxu0 0
        %2358 = vmatprep.subr.bf16.mxu0 0
        %2359 = vmatpush1.bf16.msra.mxu0 0
        %2360 = vmatprep.subr.bf16.mxu0 0
        %2361 = vmatpush1.bf16.msra.mxu0 0
        %2362 = vmatprep.subr.bf16.mxu0 0
        %2363 = vmatpush1.bf16.msra.mxu0 0
        %2364 = vmatprep.subr.bf16.mxu0 0
        %2365 = vmatpush1.bf16.msra.mxu0 0
        %2366 = vmatprep.subr.bf16.mxu0 0
        %2367 = vmatpush1.bf16.msra.mxu0 0
        %2368 = vmatprep.subr.bf16.mxu0 0
        %2369 = vmatpush1.bf16.msra.mxu0 0
        %2370 = vmatprep.subr.bf16.mxu0 0
        %2371 = vmatpush1.bf16.msra.mxu0 0
        %2372 = vmatprep.subr.bf16.mxu0 0
        %2373 = vmatpush1.bf16.msra.mxu0 0
        %2374 = vmatprep.subr.bf16.mxu0 0
        %2375 = vmatpush1.bf16.msra.mxu0 0
        %2376 = vmatprep.subr.bf16.mxu0 0
        %2377 = vmatpush1.bf16.msra.mxu0 0
        %2378 = vmatprep.subr.bf16.mxu0 0
        %2379 = vmatpush1.bf16.msra.mxu0 0
        %2380 = vmatprep.subr.bf16.mxu0 0
        %2381 = vmatpush1.bf16.msra.mxu0 0
        %2382 = vmatprep.mubr.bf16.mxu0 0
        %2383 = vmatmul.mubr.bf16.gmra.mrb[0].mxu0 %v2308
        %v2384 = vpop.f32.mrb[0].mxu0
        %v2385 = vadd.f32 %v588, %v2384
        %v2386 = vpop.f32.mrb[0].mxu0
        %v2387 = vpop.f32.mrb[0].mxu0
        %v2388 = vpop.f32.mrb[0].mxu0
        %2389 = vdwg.mxu0
        %2390 = vmatprep.subr.bf16.mxu0 0
        %2391 = vmatpush1.bf16.msra.mxu0 %v656
        %2392 = vmatprep.subr.bf16.mxu0 0
        %2393 = vmatpush1.bf16.msra.mxu0 %v657
        %2394 = vmatprep.subr.bf16.mxu0 0
        %2395 = vmatpush1.bf16.msra.mxu0 0
        %2396 = vmatprep.subr.bf16.mxu0 0
        %2397 = vmatpush1.bf16.msra.mxu0 0
        %2398 = vmatprep.subr.bf16.mxu0 0
        %2399 = vmatpush1.bf16.msra.mxu0 0
        %2400 = vmatprep.subr.bf16.mxu0 0
        %2401 = vmatpush1.bf16.msra.mxu0 0
        %2402 = vmatprep.subr.bf16.mxu0 0
        %2403 = vmatpush1.bf16.msra.mxu0 0
        %2404 = vmatprep.subr.bf16.mxu0 0
        %2405 = vmatpush1.bf16.msra.mxu0 0
        %2406 = vmatprep.subr.bf16.mxu0 0
        %2407 = vmatpush1.bf16.msra.mxu0 0
        %2408 = vmatprep.subr.bf16.mxu0 0
        %2409 = vmatpush1.bf16.msra.mxu0 0
        %2410 = vmatprep.subr.bf16.mxu0 0
        %2411 = vmatpush1.bf16.msra.mxu0 0
        %2412 = vmatprep.subr.bf16.mxu0 0
        %2413 = vmatpush1.bf16.msra.mxu0 0
        %2414 = vmatprep.subr.bf16.mxu0 0
        %2415 = vmatpush1.bf16.msra.mxu0 0
        %2416 = vmatprep.subr.bf16.mxu0 0
        %2417 = vmatpush1.bf16.msra.mxu0 0
        %2418 = vmatprep.subr.bf16.mxu0 0
        %2419 = vmatpush1.bf16.msra.mxu0 0
        %2420 = vmatprep.subr.bf16.mxu0 0
        %2421 = vmatpush1.bf16.msra.mxu0 0
        %2422 = vmatprep.mubr.bf16.mxu0 0
        %2423 = vmatmul.mubr.bf16.gmra.mrb[0].mxu0 %v2308
        %v2424 = vpop.f32.mrb[0].mxu0
        %v2425 = vadd.f32 %v646, %v2424
        %v2426 = vpop.f32.mrb[0].mxu0
        %v2427 = vpop.f32.mrb[0].mxu0
        %v2428 = vpop.f32.mrb[0].mxu0
        %2429 = vdwg.mxu0
        %v2431 = vsel %vm706, %v2299, 0
        %2433 = vmatprep.subr.bf16.mxu0 0
        %2434 = vmatpush1.bf16.msra.mxu0 %v704
        %2435 = vmatprep.subr.bf16.mxu0 0
        %2436 = vmatpush1.bf16.msra.mxu0 0
        %2437 = vmatprep.subr.bf16.mxu0 0
        %2438 = vmatpush1.bf16.msra.mxu0 0
        %2439 = vmatprep.subr.bf16.mxu0 0
        %2440 = vmatpush1.bf16.msra.mxu0 0
        %2441 = vmatprep.subr.bf16.mxu0 0
        %2442 = vmatpush1.bf16.msra.mxu0 0
        %2443 = vmatprep.subr.bf16.mxu0 0
        %2444 = vmatpush1.bf16.msra.mxu0 0
        %2445 = vmatprep.subr.bf16.mxu0 0
        %2446 = vmatpush1.bf16.msra.mxu0 0
        %2447 = vmatprep.subr.bf16.mxu0 0
        %2448 = vmatpush1.bf16.msra.mxu0 0
        %2449 = vmatprep.subr.bf16.mxu0 0
        %2450 = vmatpush1.bf16.msra.mxu0 0
        %2451 = vmatprep.subr.bf16.mxu0 0
        %2452 = vmatpush1.bf16.msra.mxu0 0
        %2453 = vmatprep.subr.bf16.mxu0 0
        %2454 = vmatpush1.bf16.msra.mxu0 0
        %2455 = vmatprep.subr.bf16.mxu0 0
        %2456 = vmatpush1.bf16.msra.mxu0 0
        %2457 = vmatprep.subr.bf16.mxu0 0
        %2458 = vmatpush1.bf16.msra.mxu0 0
        %2459 = vmatprep.subr.bf16.mxu0 0
        %2460 = vmatpush1.bf16.msra.mxu0 0
        %2461 = vmatprep.subr.bf16.mxu0 0
        %2462 = vmatpush1.bf16.msra.mxu0 0
        %2463 = vmatprep.subr.bf16.mxu0 0
        %2464 = vmatpush1.bf16.msra.mxu0 0
        %2465 = vmatprep.mubr.bf16.mxu0 0
        %2466 = vmatmul.mubr.bf16.gmra.mrb[0].mxu0 %v2431
        %v2467 = vpop.f32.mrb[0].mxu0
        %v2468 = vadd.f32 0.0, %v2467
        %v2469 = vpop.f32.mrb[0].mxu0
        %v2470 = vpop.f32.mrb[0].mxu0
        %v2471 = vpop.f32.mrb[0].mxu0
        %2472 = vdwg.mxu0
        %2473 = vmatprep.subr.bf16.mxu0 0
        %2474 = vmatpush1.bf16.msra.mxu0 %v754
        %2475 = vmatprep.subr.bf16.mxu0 0
        %2476 = vmatpush1.bf16.msra.mxu0 0
        %2477 = vmatprep.subr.bf16.mxu0 0
        %2478 = vmatpush1.bf16.msra.mxu0 0
        %2479 = vmatprep.subr.bf16.mxu0 0
        %2480 = vmatpush1.bf16.msra.mxu0 0
        %2481 = vmatprep.subr.bf16.mxu0 0
        %2482 = vmatpush1.bf16.msra.mxu0 0
        %2483 = vmatprep.subr.bf16.mxu0 0
        %2484 = vmatpush1.bf16.msra.mxu0 0
        %2485 = vmatprep.subr.bf16.mxu0 0
        %2486 = vmatpush1.bf16.msra.mxu0 0
        %2487 = vmatprep.subr.bf16.mxu0 0
        %2488 = vmatpush1.bf16.msra.mxu0 0
        %2489 = vmatprep.subr.bf16.mxu0 0
        %2490 = vmatpush1.bf16.msra.mxu0 0
        %2491 = vmatprep.subr.bf16.mxu0 0
        %2492 = vmatpush1.bf16.msra.mxu0 0
        %2493 = vmatprep.subr.bf16.mxu0 0
        %2494 = vmatpush1.bf16.msra.mxu0 0
        %2495 = vmatprep.subr.bf16.mxu0 0
        %2496 = vmatpush1.bf16.msra.mxu0 0
        %2497 = vmatprep.subr.bf16.mxu0 0
        %2498 = vmatpush1.bf16.msra.mxu0 0
        %2499 = vmatprep.subr.bf16.mxu0 0
        %2500 = vmatpush1.bf16.msra.mxu0 0
        %2501 = vmatprep.subr.bf16.mxu0 0
        %2502 = vmatpush1.bf16.msra.mxu0 0
        %2503 = vmatprep.subr.bf16.mxu0 0
        %2504 = vmatpush1.bf16.msra.mxu0 0
        %2505 = vmatprep.mubr.bf16.mxu0 0
        %2506 = vmatmul.mubr.bf16.gmra.mrb[0].mxu0 %v2431
        %v2507 = vpop.f32.mrb[0].mxu0
        %v2508 = vadd.f32 0.0, %v2507
        %v2509 = vpop.f32.mrb[0].mxu0
        %v2510 = vpop.f32.mrb[0].mxu0
        %v2511 = vpop.f32.mrb[0].mxu0
        %2512 = vdwg.mxu0
        %v2513 = vadd.f32 %v2345, %v2468
        %v2514 = vxor.u32 %v2513, 2147483648
        %v2515 = vmul.f32 %v2514, 1.442695
        %v2516 = vpow.pop %v2515
        %v2517 = vadd.f32 %v2516, 1.0
        %v2518 = vrcp.pop %v2517
        %v2519 = vmul.f32 1.0, %v2518
        %v2520 = vadd.f32 %v2385, %v2508
        %v2521 = vxor.u32 %v2520, 2147483648
        %v2522 = vmul.f32 %v2521, 1.442695
        %v2523 = vpow.pop %v2522
        %v2524 = vadd.f32 %v2523, 1.0
        %v2525 = vrcp.pop %v2524
        %v2526 = vmul.f32 1.0, %v2525
        %2527 = vmatprep.subr.bf16.mxu0 0
        %2528 = vmatpush1.bf16.msra.mxu0 %v820
        %2529 = vmatprep.subr.bf16.mxu0 0
        %2530 = vmatpush1.bf16.msra.mxu0 0
        %2531 = vmatprep.subr.bf16.mxu0 0
        %2532 = vmatpush1.bf16.msra.mxu0 0
        %2533 = vmatprep.subr.bf16.mxu0 0
        %2534 = vmatpush1.bf16.msra.mxu0 0
        %2535 = vmatprep.subr.bf16.mxu0 0
        %2536 = vmatpush1.bf16.msra.mxu0 0
        %2537 = vmatprep.subr.bf16.mxu0 0
        %2538 = vmatpush1.bf16.msra.mxu0 0
        %2539 = vmatprep.subr.bf16.mxu0 0
        %2540 = vmatpush1.bf16.msra.mxu0 0
        %2541 = vmatprep.subr.bf16.mxu0 0
        %2542 = vmatpush1.bf16.msra.mxu0 0
        %2543 = vmatprep.subr.bf16.mxu0 0
        %2544 = vmatpush1.bf16.msra.mxu0 0
        %2545 = vmatprep.subr.bf16.mxu0 0
        %2546 = vmatpush1.bf16.msra.mxu0 0
        %2547 = vmatprep.subr.bf16.mxu0 0
        %2548 = vmatpush1.bf16.msra.mxu0 0
        %2549 = vmatprep.subr.bf16.mxu0 0
        %2550 = vmatpush1.bf16.msra.mxu0 0
        %2551 = vmatprep.subr.bf16.mxu0 0
        %2552 = vmatpush1.bf16.msra.mxu0 0
        %2553 = vmatprep.subr.bf16.mxu0 0
        %2554 = vmatpush1.bf16.msra.mxu0 0
        %2555 = vmatprep.subr.bf16.mxu0 0
        %2556 = vmatpush1.bf16.msra.mxu0 0
        %2557 = vmatprep.subr.bf16.mxu0 0
        %2558 = vmatpush1.bf16.msra.mxu0 0
        %2559 = vmatprep.mubr.bf16.mxu0 0
        %2560 = vmatmul.mubr.bf16.gmra.mrb[0].mxu0 %v2431
        %v2561 = vpop.f32.mrb[0].mxu0
        %v2562 = vadd.f32 %v814, %v2561
        %v2563 = vpop.f32.mrb[0].mxu0
        %v2564 = vpop.f32.mrb[0].mxu0
        %v2565 = vpop.f32.mrb[0].mxu0
        %2566 = vdwg.mxu0
        %v2567 = vmul.f32 %v2519, %v2562
        %v2568 = vadd.f32 %v2425, %v2567
        %v2569 = vtanh.pop %v2568
        %v2570 = vsub.f32 %v2030, %v2569
        %v2571 = vmul.f32 %v2526, %v2570
        %v2572 = vadd.f32 %v2569, %v2571
        %v2573 = vld [vmem:[%s438] sm:$0x1]
        %v2575 = vsel %vm540, %v2573, 0
        %2577 = vmatprep.subr.bf16.mxu0 0
        %2578 = vmatpush1.bf16.msra.mxu0 %v885
        %2579 = vmatprep.subr.bf16.mxu0 0
        %2580 = vmatpush1.bf16.msra.mxu0 %v886
        %2581 = vmatprep.subr.bf16.mxu0 0
        %2582 = vmatpush1.bf16.msra.mxu0 0
        %2583 = vmatprep.subr.bf16.mxu0 0
        %2584 = vmatpush1.bf16.msra.mxu0 0
        %2585 = vmatprep.subr.bf16.mxu0 0
        %2586 = vmatpush1.bf16.msra.mxu0 0
        %2587 = vmatprep.subr.bf16.mxu0 0
        %2588 = vmatpush1.bf16.msra.mxu0 0
        %2589 = vmatprep.subr.bf16.mxu0 0
        %2590 = vmatpush1.bf16.msra.mxu0 0
        %2591 = vmatprep.subr.bf16.mxu0 0
        %2592 = vmatpush1.bf16.msra.mxu0 0
        %2593 = vmatprep.subr.bf16.mxu0 0
        %2594 = vmatpush1.bf16.msra.mxu0 0
        %2595 = vmatprep.subr.bf16.mxu0 0
        %2596 = vmatpush1.bf16.msra.mxu0 0
        %2597 = vmatprep.subr.bf16.mxu0 0
        %2598 = vmatpush1.bf16.msra.mxu0 0
        %2599 = vmatprep.subr.bf16.mxu0 0
        %2600 = vmatpush1.bf16.msra.mxu0 0
        %2601 = vmatprep.subr.bf16.mxu0 0
        %2602 = vmatpush1.bf16.msra.mxu0 0
        %2603 = vmatprep.subr.bf16.mxu0 0
        %2604 = vmatpush1.bf16.msra.mxu0 0
        %2605 = vmatprep.subr.bf16.mxu0 0
        %2606 = vmatpush1.bf16.msra.mxu0 0
        %2607 = vmatprep.subr.bf16.mxu0 0
        %2608 = vmatpush1.bf16.msra.mxu0 0
        %2609 = vmatprep.mubr.bf16.mxu0 0
        %2610 = vmatmul.mubr.bf16.gmra.mrb[0].mxu0 %v2575
        %v2611 = vpop.f32.mrb[0].mxu0
        %v2612 = vadd.f32 %v875, %v2611
        %v2613 = vpop.f32.mrb[0].mxu0
        %v2614 = vpop.f32.mrb[0].mxu0
        %v2615 = vpop.f32.mrb[0].mxu0
        %2616 = vdwg.mxu0
        %2617 = vmatprep.subr.bf16.mxu0 0
        %2618 = vmatpush1.bf16.msra.mxu0 %v946
        %2619 = vmatprep.subr.bf16.mxu0 0
        %2620 = vmatpush1.bf16.msra.mxu0 %v947
        %2621 = vmatprep.subr.bf16.mxu0 0
        %2622 = vmatpush1.bf16.msra.mxu0 0
        %2623 = vmatprep.subr.bf16.mxu0 0
        %2624 = vmatpush1.bf16.msra.mxu0 0
        %2625 = vmatprep.subr.bf16.mxu0 0
        %2626 = vmatpush1.bf16.msra.mxu0 0
        %2627 = vmatprep.subr.bf16.mxu0 0
        %2628 = vmatpush1.bf16.msra.mxu0 0
        %2629 = vmatprep.subr.bf16.mxu0 0
        %2630 = vmatpush1.bf16.msra.mxu0 0
        %2631 = vmatprep.subr.bf16.mxu0 0
        %2632 = vmatpush1.bf16.msra.mxu0 0
        %2633 = vmatprep.subr.bf16.mxu0 0
        %2634 = vmatpush1.bf16.msra.mxu0 0
        %2635 = vmatprep.subr.bf16.mxu0 0
        %2636 = vmatpush1.bf16.msra.mxu0 0
        %2637 = vmatprep.subr.bf16.mxu0 0
        %2638 = vmatpush1.bf16.msra.mxu0 0
        %2639 = vmatprep.subr.bf16.mxu0 0
        %2640 = vmatpush1.bf16.msra.mxu0 0
        %2641 = vmatprep.subr.bf16.mxu0 0
        %2642 = vmatpush1.bf16.msra.mxu0 0
        %2643 = vmatprep.subr.bf16.mxu0 0
        %2644 = vmatpush1.bf16.msra.mxu0 0
        %2645 = vmatprep.subr.bf16.mxu0 0
        %2646 = vmatpush1.bf16.msra.mxu0 0
        %2647 = vmatprep.subr.bf16.mxu0 0
        %2648 = vmatpush1.bf16.msra.mxu0 0
        %2649 = vmatprep.mubr.bf16.mxu0 0
        %2650 = vmatmul.mubr.bf16.gmra.mrb[0].mxu0 %v2575
        %v2651 = vpop.f32.mrb[0].mxu0
        %v2652 = vadd.f32 %v936, %v2651
        %v2653 = vpop.f32.mrb[0].mxu0
        %v2654 = vpop.f32.mrb[0].mxu0
        %v2655 = vpop.f32.mrb[0].mxu0
        %2656 = vdwg.mxu0
        %2657 = vmatprep.subr.bf16.mxu0 0
        %2658 = vmatpush1.bf16.msra.mxu0 %v1004
        %2659 = vmatprep.subr.bf16.mxu0 0
        %2660 = vmatpush1.bf16.msra.mxu0 %v1005
        %2661 = vmatprep.subr.bf16.mxu0 0
        %2662 = vmatpush1.bf16.msra.mxu0 0
        %2663 = vmatprep.subr.bf16.mxu0 0
        %2664 = vmatpush1.bf16.msra.mxu0 0
        %2665 = vmatprep.subr.bf16.mxu0 0
        %2666 = vmatpush1.bf16.msra.mxu0 0
        %2667 = vmatprep.subr.bf16.mxu0 0
        %2668 = vmatpush1.bf16.msra.mxu0 0
        %2669 = vmatprep.subr.bf16.mxu0 0
        %2670 = vmatpush1.bf16.msra.mxu0 0
        %2671 = vmatprep.subr.bf16.mxu0 0
        %2672 = vmatpush1.bf16.msra.mxu0 0
        %2673 = vmatprep.subr.bf16.mxu0 0
        %2674 = vmatpush1.bf16.msra.mxu0 0
        %2675 = vmatprep.subr.bf16.mxu0 0
        %2676 = vmatpush1.bf16.msra.mxu0 0
        %2677 = vmatprep.subr.bf16.mxu0 0
        %2678 = vmatpush1.bf16.msra.mxu0 0
        %2679 = vmatprep.subr.bf16.mxu0 0
        %2680 = vmatpush1.bf16.msra.mxu0 0
        %2681 = vmatprep.subr.bf16.mxu0 0
        %2682 = vmatpush1.bf16.msra.mxu0 0
        %2683 = vmatprep.subr.bf16.mxu0 0
        %2684 = vmatpush1.bf16.msra.mxu0 0
        %2685 = vmatprep.subr.bf16.mxu0 0
        %2686 = vmatpush1.bf16.msra.mxu0 0
        %2687 = vmatprep.subr.bf16.mxu0 0
        %2688 = vmatpush1.bf16.msra.mxu0 0
        %2689 = vmatprep.mubr.bf16.mxu0 0
        %2690 = vmatmul.mubr.bf16.gmra.mrb[0].mxu0 %v2575
        %v2691 = vpop.f32.mrb[0].mxu0
        %v2692 = vadd.f32 %v994, %v2691
        %v2693 = vpop.f32.mrb[0].mxu0
        %v2694 = vpop.f32.mrb[0].mxu0
        %v2695 = vpop.f32.mrb[0].mxu0
        %2696 = vdwg.mxu0
        %v2698 = vsel %vm706, %v2302, 0
        %2700 = vmatprep.subr.bf16.mxu0 0
        %2701 = vmatpush1.bf16.msra.mxu0 %v1052
        %2702 = vmatprep.subr.bf16.mxu0 0
        %2703 = vmatpush1.bf16.msra.mxu0 0
        %2704 = vmatprep.subr.bf16.mxu0 0
        %2705 = vmatpush1.bf16.msra.mxu0 0
        %2706 = vmatprep.subr.bf16.mxu0 0
        %2707 = vmatpush1.bf16.msra.mxu0 0
        %2708 = vmatprep.subr.bf16.mxu0 0
        %2709 = vmatpush1.bf16.msra.mxu0 0
        %2710 = vmatprep.subr.bf16.mxu0 0
        %2711 = vmatpush1.bf16.msra.mxu0 0
        %2712 = vmatprep.subr.bf16.mxu0 0
        %2713 = vmatpush1.bf16.msra.mxu0 0
        %2714 = vmatprep.subr.bf16.mxu0 0
        %2715 = vmatpush1.bf16.msra.mxu0 0
        %2716 = vmatprep.subr.bf16.mxu0 0
        %2717 = vmatpush1.bf16.msra.mxu0 0
        %2718 = vmatprep.subr.bf16.mxu0 0
        %2719 = vmatpush1.bf16.msra.mxu0 0
        %2720 = vmatprep.subr.bf16.mxu0 0
        %2721 = vmatpush1.bf16.msra.mxu0 0
        %2722 = vmatprep.subr.bf16.mxu0 0
        %2723 = vmatpush1.bf16.msra.mxu0 0
        %2724 = vmatprep.subr.bf16.mxu0 0
        %2725 = vmatpush1.bf16.msra.mxu0 0
        %2726 = vmatprep.subr.bf16.mxu0 0
        %2727 = vmatpush1.bf16.msra.mxu0 0
        %2728 = vmatprep.subr.bf16.mxu0 0
        %2729 = vmatpush1.bf16.msra.mxu0 0
        %2730 = vmatprep.subr.bf16.mxu0 0
        %2731 = vmatpush1.bf16.msra.mxu0 0
        %2732 = vmatprep.mubr.bf16.mxu0 0
        %2733 = vmatmul.mubr.bf16.gmra.mrb[0].mxu0 %v2698
        %v2734 = vpop.f32.mrb[0].mxu0
        %v2735 = vadd.f32 0.0, %v2734
        %v2736 = vpop.f32.mrb[0].mxu0
        %v2737 = vpop.f32.mrb[0].mxu0
        %v2738 = vpop.f32.mrb[0].mxu0
        %2739 = vdwg.mxu0
        %2740 = vmatprep.subr.bf16.mxu0 0
        %2741 = vmatpush1.bf16.msra.mxu0 %v1101
        %2742 = vmatprep.subr.bf16.mxu0 0
        %2743 = vmatpush1.bf16.msra.mxu0 0
        %2744 = vmatprep.subr.bf16.mxu0 0
        %2745 = vmatpush1.bf16.msra.mxu0 0
        %2746 = vmatprep.subr.bf16.mxu0 0
        %2747 = vmatpush1.bf16.msra.mxu0 0
        %2748 = vmatprep.subr.bf16.mxu0 0
        %2749 = vmatpush1.bf16.msra.mxu0 0
        %2750 = vmatprep.subr.bf16.mxu0 0
        %2751 = vmatpush1.bf16.msra.mxu0 0
        %2752 = vmatprep.subr.bf16.mxu0 0
        %2753 = vmatpush1.bf16.msra.mxu0 0
        %2754 = vmatprep.subr.bf16.mxu0 0
        %2755 = vmatpush1.bf16.msra.mxu0 0
        %2756 = vmatprep.subr.bf16.mxu0 0
        %2757 = vmatpush1.bf16.msra.mxu0 0
        %2758 = vmatprep.subr.bf16.mxu0 0
        %2759 = vmatpush1.bf16.msra.mxu0 0
        %2760 = vmatprep.subr.bf16.mxu0 0
        %2761 = vmatpush1.bf16.msra.mxu0 0
        %2762 = vmatprep.subr.bf16.mxu0 0
        %2763 = vmatpush1.bf16.msra.mxu0 0
        %2764 = vmatprep.subr.bf16.mxu0 0
        %2765 = vmatpush1.bf16.msra.mxu0 0
        %2766 = vmatprep.subr.bf16.mxu0 0
        %2767 = vmatpush1.bf16.msra.mxu0 0
        %2768 = vmatprep.subr.bf16.mxu0 0
        %2769 = vmatpush1.bf16.msra.mxu0 0
        %2770 = vmatprep.subr.bf16.mxu0 0
        %2771 = vmatpush1.bf16.msra.mxu0 0
        %2772 = vmatprep.mubr.bf16.mxu0 0
        %2773 = vmatmul.mubr.bf16.gmra.mrb[0].mxu0 %v2698
        %v2774 = vpop.f32.mrb[0].mxu0
        %v2775 = vadd.f32 0.0, %v2774
        %v2776 = vpop.f32.mrb[0].mxu0
        %v2777 = vpop.f32.mrb[0].mxu0
        %v2778 = vpop.f32.mrb[0].mxu0
        %2779 = vdwg.mxu0
        %v2780 = vadd.f32 %v2612, %v2735
        %v2781 = vxor.u32 %v2780, 2147483648
        %v2782 = vmul.f32 %v2781, 1.442695
        %v2783 = vpow.pop %v2782
        %v2784 = vadd.f32 %v2783, 1.0
        %v2785 = vrcp.pop %v2784
        %v2786 = vmul.f32 1.0, %v2785
        %v2787 = vadd.f32 %v2652, %v2775
        %v2788 = vxor.u32 %v2787, 2147483648
        %v2789 = vmul.f32 %v2788, 1.442695
        %v2790 = vpow.pop %v2789
        %v2791 = vadd.f32 %v2790, 1.0
        %v2792 = vrcp.pop %v2791
        %v2793 = vmul.f32 1.0, %v2792
        %2794 = vmatprep.subr.bf16.mxu0 0
        %2795 = vmatpush1.bf16.msra.mxu0 %v1167
        %2796 = vmatprep.subr.bf16.mxu0 0
        %2797 = vmatpush1.bf16.msra.mxu0 0
        %2798 = vmatprep.subr.bf16.mxu0 0
        %2799 = vmatpush1.bf16.msra.mxu0 0
        %2800 = vmatprep.subr.bf16.mxu0 0
        %2801 = vmatpush1.bf16.msra.mxu0 0
        %2802 = vmatprep.subr.bf16.mxu0 0
        %2803 = vmatpush1.bf16.msra.mxu0 0
        %2804 = vmatprep.subr.bf16.mxu0 0
        %2805 = vmatpush1.bf16.msra.mxu0 0
        %2806 = vmatprep.subr.bf16.mxu0 0
        %2807 = vmatpush1.bf16.msra.mxu0 0
        %2808 = vmatprep.subr.bf16.mxu0 0
        %2809 = vmatpush1.bf16.msra.mxu0 0
        %2810 = vmatprep.subr.bf16.mxu0 0
        %2811 = vmatpush1.bf16.msra.mxu0 0
        %2812 = vmatprep.subr.bf16.mxu0 0
        %2813 = vmatpush1.bf16.msra.mxu0 0
        %2814 = vmatprep.subr.bf16.mxu0 0
        %2815 = vmatpush1.bf16.msra.mxu0 0
        %2816 = vmatprep.subr.bf16.mxu0 0
        %2817 = vmatpush1.bf16.msra.mxu0 0
        %2818 = vmatprep.subr.bf16.mxu0 0
        %2819 = vmatpush1.bf16.msra.mxu0 0
        %2820 = vmatprep.subr.bf16.mxu0 0
        %2821 = vmatpush1.bf16.msra.mxu0 0
        %2822 = vmatprep.subr.bf16.mxu0 0
        %2823 = vmatpush1.bf16.msra.mxu0 0
        %2824 = vmatprep.subr.bf16.mxu0 0
        %2825 = vmatpush1.bf16.msra.mxu0 0
        %2826 = vmatprep.mubr.bf16.mxu0 0
        %2827 = vmatmul.mubr.bf16.gmra.mrb[0].mxu0 %v2698
        %v2828 = vpop.f32.mrb[0].mxu0
        %v2829 = vadd.f32 %v1161, %v2828
        %v2830 = vpop.f32.mrb[0].mxu0
        %v2831 = vpop.f32.mrb[0].mxu0
        %v2832 = vpop.f32.mrb[0].mxu0
        %2833 = vdwg.mxu0
        %v2834 = vmul.f32 %v2786, %v2829
        %v2835 = vadd.f32 %v2692, %v2834
        %v2836 = vtanh.pop %v2835
        %v2837 = vsub.f32 %v2298, %v2836
        %v2838 = vmul.f32 %v2793, %v2837
        %v2839 = vadd.f32 %v2836, %v2838
        %v2840 = vpack.c.bf16 %v2572, %v2572
        %s2841 = scalar_lea.vmem %s444, 3
        %2842 = vst.msk [vmem:[%s2841] sm:$0x1] %vm1216, %v2840
        %v2843 = vpack.c.bf16 %v2839, %v2839
        %2844 = vst.msk [vmem:[%s450] sm:$0x1] %vm1216, %v2843
        %vm2845 = vcmask 123904
        %2846 = vst.msk [vmem:[#allocation2] sm:$0x3] %vm2845, %v2572
        %2847 = vst.msk [vmem:[%s518] sm:$0x3] %vm2845, %v2839
        %s2848 = smul.u32 4, %s25
        %p2849 = scmp.lt.s32.totalorder %s2848, 7
        %s2850 = scalar_select %p2849, %s2848, 7
        %s2851 = scalar_lea.vmem %s10, %s2850
        %s2852 = ssub.s32 1, %s25
        %s2853 = smul.u32 4, %s2852
        %p2854 = scmp.lt.s32.totalorder %s2853, 7
        %s2855 = scalar_select %p2854, %s2853, 7
        %s2856 = scalar_lea.vmem %s11, %s2855
        // Predicated region
        $region65: #{encoder_forward.1} parent=59 // pred_check
          %p2857 = pneg %p265
        $region66: #{encoder_forward.1} parent=59 // pred_check_branch
          %2859 = sbr.rel (%p2857) target = $region68
        $region67: #{encoder_forward.1} parent=59 // pred_region
          %s2860 = smul.u32 4, %s25
        $region68: #{encoder_forward.1} parent=59 // pred_fallthru
          _
        // Predicated region
        $region69: #{encoder_forward.1} parent=59 // pred_check
          %p2861 = pneg %p293
        $region70: #{encoder_forward.1} parent=59 // pred_check_branch
          %2863 = sbr.rel (%p2861) target = $region72
        $region71: #{encoder_forward.1} parent=59 // pred_region
          %s2864 = ssub.s32 1, %s25
          %s2865 = smul.u32 4, %s2864
        $region72: #{encoder_forward.1} parent=59 // pred_fallthru
          _
        // Predicated region
        $region73: #{encoder_forward.1} parent=59 // pred_check
          %p2866 = pneg %p314
        $region74: #{encoder_forward.1} parent=59 // pred_check_branch
          %2868 = sbr.rel (%p2866) target = $region76
        $region75: #{encoder_forward.1} parent=59 // pred_region
          %s2870 = ssub.s32 64, 64
          %2871 = vsyncadd [#allocation3], %s2870
          %s2872 = sshll.u32 [#allocation2], 4
          %s2873 = int_to_ptr.vmem [resolvable:$true] %s2872
          %2878 = dma.vmem_to_hbm [thread:$0]  %s2873, 64, %s12, [#allocation3], 32, 32, 2
        $region76: #{encoder_forward.1} parent=59 // pred_fallthru
          _
        // Predicated region
        $region77: #{encoder_forward.1} parent=59 // pred_check
          %p2879 = pneg %p314
        $region78: #{encoder_forward.1} parent=59 // pred_check_branch
          %2881 = sbr.rel (%p2879) target = $region80
        $region79: #{encoder_forward.1} parent=59 // pred_region
          %2882 = dma.done [#allocation3], 64
        $region80: #{encoder_forward.1} parent=59 // pred_fallthru
          _
      $region60: #{encoder_forward.1} parent=5 // pred_fallthru
        _
      %p2883 = scmp.le.s32.totalorder 2, %s20
      // Predicated region
      $region81: #{encoder_forward.1} parent=5 // pred_check
        %p2884 = pneg %p2883
      $region82: #{encoder_forward.1} parent=5 // pred_check_branch
        %2886 = sbr.rel (%p2884) target = $region84
      $region83: #{encoder_forward.1} parent=5 // pred_region
        %s2887 = ssub.s32 %s20, 2
        // Predicated region
        $region85: #{encoder_forward.1} parent=83 // pred_check
          %p2888 = pneg %p271
        $region86: #{encoder_forward.1} parent=83 // pred_check_branch
          %2890 = sbr.rel (%p2888) target = $region88
        $region87: #{encoder_forward.1} parent=83 // pred_region
          %s2891 = smul.u32 4, %s26
          %p2892 = scmp.lt.s32.totalorder %s2891, 7
          %s2893 = scalar_select %p2892, %s2891, 7
          %s2894 = scalar_lea.vmem %s10, %s2893
        $region88: #{encoder_forward.1} parent=83 // pred_fallthru
          _
        // Predicated region
        $region89: #{encoder_forward.1} parent=83 // pred_check
          %p2895 = pneg %p299
        $region90: #{encoder_forward.1} parent=83 // pred_check_branch
          %2897 = sbr.rel (%p2895) target = $region92
        $region91: #{encoder_forward.1} parent=83 // pred_region
          %s2898 = ssub.s32 1, %s26
          %s2899 = smul.u32 4, %s2898
          %p2900 = scmp.lt.s32.totalorder %s2899, 7
          %s2901 = scalar_select %p2900, %s2899, 7
          %s2902 = scalar_lea.vmem %s11, %s2901
        $region92: #{encoder_forward.1} parent=83 // pred_fallthru
          _
      $region84: #{encoder_forward.1} parent=5 // pred_fallthru
        _
    $region6: #{encoder_forward.1} parent=1 // loop_footer
      %s24 = sadd.s32 1, %s20
    $region7: #{encoder_forward.1} parent=1 // loop_footer_branch
      %19 = sbr.rel target = $region3
    $region8: #{encoder_forward.1} parent=1 // loop_exit
      _
    %2903 = vsyncpa [#allocation3], 1
    %s2904 = scalar_lea.sflag [#allocation3], 1
    %2905 = vsyncpa %s2904, 1

</llo_original>
